<compile_context>
chip_gen: v7x
topology: tpu7x:2x2x1
jax: 0.10.0
libtpu: 0.0.40
codegen_flags: <defaults>
</compile_context>

<pallas_src>
import jax
import jax.numpy as jnp
from jax.experimental import pallas as pl
from jax.experimental.pallas import tpu as pltpu


# ----------------------------- configuration --------------------------------
CFG = dict(
    char_vocab_size=20,
    char_embedding_size=16,
    word_vocab_size=24,
    filters_width=(2, 3),
    num_filters=(16, 16),
    num_layers=2,
    hidden_size=32,
    dropout=0.0,
)
BATCH, SEQ_LEN, WORD_LEN = 2, 8, 9


# ------------------------- fused forward kernel ------------------------------
def make_fused_kernel(batch, seq_len, word_len, char_vocab,
                      filters_width, num_filters, hidden, num_layers):
    n_tok = batch * seq_len
    n_convs = len(filters_width)

    def kernel(*refs):
        pos = 0
        x_ref = refs[pos]; pos += 1                        # (N, W) int32
        emb_ref = refs[pos]; pos += 1                      # (V_char, E)
        wall_ref = refs[pos]; pos += 1                     # (E, sum(width*F))
        cb_refs = refs[pos:pos + n_convs]; pos += n_convs  # conv biases (1, F)
        tw_ref = refs[pos]; pos += 1                       # (1, sum_f)
        tb_ref = refs[pos]; pos += 1                       # (1, 1)
        hw_ref = refs[pos]; pos += 1                       # (sum_f, sum_f)
        hb_ref = refs[pos]; pos += 1                       # (1, sum_f)
        lstm_refs = refs[pos:pos + 3 * num_layers]; pos += 3 * num_layers
        h0_ref = refs[pos]; pos += 1                       # (L, B, H)
        c0_ref = refs[pos]; pos += 1                       # (L, B, H)
        ow_ref = refs[pos]; pos += 1                       # (H, V_word)
        ob_ref = refs[pos]; pos += 1                       # (1, V_word)
        out_ref = refs[pos]; pos += 1                      # (N, V_word)
        hn_ref = refs[pos]; pos += 1                       # (L, B, H)
        cn_ref = refs[pos]; pos += 1                       # (L, B, H)
        y_scr = refs[pos]                                  # (N, H) scratch

        # ---- char embedding via one-hot MXU matmul -------------------------
        # Rows are laid out position-major: row r = p * N + n (n = b*S + s),
        # so each char position is a contiguous, aligned 16-row block.
        x_int = x_ref[...]                                             # (N, W)
        iota_v = jax.lax.broadcasted_iota(jnp.int32, (n_tok, char_vocab), 1)
        onehot = jnp.concatenate(
            [(x_int[:, p:p + 1] == iota_v).astype(jnp.float32)
             for p in range(word_len)], axis=0)                        # (W*N, V_char)
        emb = jnp.dot(onehot, emb_ref[...],
                      preferred_element_type=jnp.float32)              # (W*N, E)
        # One big tap-major matmul covering every (conv, tap) pair.
        z = jnp.dot(emb, wall_ref[...],
                    preferred_element_type=jnp.float32)                # (W*N, sum(width*F))

        # ---- tap-major conv: shifted adds + tanh + max over positions ------
        feats = []
        col = 0
        for ci in range(n_convs):
            width = filters_width[ci]
            nf = num_filters[ci]
            n_pos = word_len - width + 1
            rows = n_pos * n_tok
            g = z[0:rows, col:col + nf]
            col += nf
            for k in range(1, width):
                g = g + z[k * n_tok:k * n_tok + rows, col:col + nf]
                col += nf
            y = jnp.tanh(g + cb_refs[ci][...])                          # (n_pos*N, F)
            m = y[0:n_tok, :]
            for p in range(1, n_pos):                                   # max over time
                m = jnp.maximum(m, y[p * n_tok:(p + 1) * n_tok, :])
            feats.append(m)
        feat = jnp.concatenate(feats, axis=-1)                          # (N, sum_f)

        # ---- highway -------------------------------------------------------
        t = jax.nn.sigmoid(
            jnp.sum(feat * tw_ref[...], axis=-1, keepdims=True) + tb_ref[...])
        hcand = jnp.maximum(
            jnp.dot(feat, hw_ref[...], preferred_element_type=jnp.float32)
            + hb_ref[...], 0.0)
        layer_in = t * hcand + (1.0 - t) * feat                         # (N, sum_f)

        # ---- LSTM: layer-outer / time-inner, hoisted input matmul ----------
        for l in range(num_layers):
            w_ihT = lstm_refs[3 * l][...]
            w_hhT = lstm_refs[3 * l + 1][...]
            bias = lstm_refs[3 * l + 2][...]
            # One matmul for all timesteps of this layer's input gates.
            gin = jnp.dot(layer_in, w_ihT,
                          preferred_element_type=jnp.float32) + bias    # (N, 4H)
            h = h0_ref[l]                                               # (B, H)
            c = c0_ref[l]
            for s in range(seq_len):                                    # unrolled
                g_in = jnp.concatenate(
                    [gin[b * seq_len + s:b * seq_len + s + 1, :]
                     for b in range(batch)], axis=0)                    # (B, 4H)
                gates = g_in + jnp.dot(h, w_hhT,
                                       preferred_element_type=jnp.float32)
                i_g = jax.nn.sigmoid(gates[:, 0 * hidden:1 * hidden])
                f_g = jax.nn.sigmoid(gates[:, 1 * hidden:2 * hidden])
                g_g = jnp.tanh(gates[:, 2 * hidden:3 * hidden])
                o_g = jax.nn.sigmoid(gates[:, 3 * hidden:4 * hidden])
                c = f_g * c + i_g * g_g
                h = o_g * jnp.tanh(c)
                for b in range(batch):                                  # token row b*S+s
                    y_scr[pl.ds(b * seq_len + s, 1), :] = h[b:b + 1, :]
            hn_ref[l] = h
            cn_ref[l] = c
            # TODO(synk): nn.LSTM inter-layer dropout is identity in eval mode; skipped.
            layer_in = y_scr[...]                                       # (N, H)

        # ---- fused output projection (one slab store) -----------------------
        # TODO(synk): drop_layer (nn.Dropout) is identity in eval mode; skipped.
        out_ref[...] = (jnp.dot(layer_in, ow_ref[...],
                                preferred_element_type=jnp.float32) + ob_ref[...])

    return kernel


# ------------------------------ full forward ---------------------------------
def char_cnn_lstm_forward(params, x_idx, h0, c0):
    b, s, wl = x_idx.shape
    e = CFG["char_embedding_size"]
    hid = CFG["hidden_size"]
    n = b * s
    x_flat = x_idx.reshape(n, wl)                       # free reshape, no transpose
    # Stack every (conv, tap) weight into one (E, sum(width*F)) matrix.
    w_all = jnp.concatenate(
        [w.transpose(1, 0, 2).reshape(e, -1) for w in params["conv_w"]], axis=1)

    args = [x_flat, params["char_emb"], w_all]
    args += list(params["conv_b"])
    args += [params["t_w"], params["t_b"], params["h_wT"], params["h_b"]]
    for (w_ihT, w_hhT, bias) in params["lstm"]:
        args += [w_ihT, w_hhT, bias]
    args += [h0, c0, params["out_wT"], params["out_b"]]

    kernel = make_fused_kernel(b, s, wl, CFG["char_vocab_size"],
                               tuple(CFG["filters_width"]),
                               tuple(CFG["num_filters"]),
                               hid, CFG["num_layers"])
    vmem = pl.BlockSpec(memory_space=pltpu.MemorySpace.VMEM)
    out_shape = (
        jax.ShapeDtypeStruct((n, CFG["word_vocab_size"]), jnp.float32),
        jax.ShapeDtypeStruct((CFG["num_layers"], b, hid), jnp.float32),
        jax.ShapeDtypeStruct((CFG["num_layers"], b, hid), jnp.float32),
    )
    logits, h_n, c_n = pl.pallas_call(
        kernel,
        out_shape=out_shape,
        in_specs=[vmem] * len(args),
        out_specs=(vmem, vmem, vmem),
        scratch_shapes=[pltpu.VMEM((n, hid), jnp.float32)],
    )(*args)
    return logits.reshape(b, s, -1), (h_n, c_n)


# --------------------------- parameter construction --------------------------
def init_params(key):
    ks = iter(jax.random.split(key, 24))
    scale = 0.1
    nrm = lambda shape: scale * jax.random.normal(next(ks), shape, jnp.float32)

    e = CFG["char_embedding_size"]
    h = CFG["hidden_size"]
    sum_f = sum(CFG["num_filters"])

    params = {}
    params["char_emb"] = nrm((CFG["char_vocab_size"], e))
    # Conv1d weight in PyTorch is (F, E, width); stored here as (width, E, F).
    params["conv_w"] = [nrm((w, e, f)) for w, f in
                        zip(CFG["filters_width"], CFG["num_filters"])]
    params["conv_b"] = [nrm((1, f)) for f in CFG["num_filters"]]
    # Highway: T = Linear(sum_f, 1) (weight (1, sum_f)), H = Linear(sum_f, sum_f).
    params["t_w"] = nrm((1, sum_f))
    params["t_b"] = nrm((1, 1))
    params["h_wT"] = nrm((sum_f, sum_f))        # H weight, pre-transposed
    params["h_b"] = nrm((1, sum_f))
    # LSTM: per layer pre-transposed gate weights (order i, f, g, o) and
    # combined bias (b_ih + b_hh).
    lstm = []
    in_sz = sum_f
    for _ in range(CFG["num_layers"]):
        lstm.append((nrm((in_sz, 4 * h)), nrm((h, 4 * h)), nrm((1, 4 * h))))
        in_sz = h
    params["lstm"] = lstm
    params["out_wT"] = nrm((h, CFG["word_vocab_size"]))
    params["out_b"] = nrm((1, CFG["word_vocab_size"]))
    return params


# ----------------------------- pure-JAX reference ----------------------------
def reference_forward(params, x_idx, h0, c0):
    b, s, wl = x_idx.shape
    hdim = CFG["hidden_size"]
    flat = x_idx.reshape(-1, wl)
    emb = params["char_emb"][flat]
    feats = []
    for w, bias, width in zip(params["conv_w"], params["conv_b"],
                              CFG["filters_width"]):
        ys = []
        for p in range(wl - width + 1):
            g = sum(emb[:, p + k, :] @ w[k] for k in range(width)) + bias
            ys.append(jnp.tanh(g))
        feats.append(jnp.max(jnp.stack(ys, axis=1), axis=1))
    feat = jnp.concatenate(feats, axis=-1)
    t = jax.nn.sigmoid(feat @ params["t_w"].T + params["t_b"])
    feat = t * jax.nn.relu(feat @ params["h_wT"] + params["h_b"]) + (1 - t) * feat
    x_bsf = feat.reshape(b, s, -1)

    hs = [h0[l] for l in range(CFG["num_layers"])]
    cs = [c0[l] for l in range(CFG["num_layers"])]
    outs = []
    for step in range(s):
        inp = x_bsf[:, step, :]
        for l, (w_ihT, w_hhT, bias) in enumerate(params["lstm"]):
            gates = inp @ w_ihT + hs[l] @ w_hhT + bias
            i_g = jax.nn.sigmoid(gates[:, 0 * hdim:1 * hdim])
            f_g = jax.nn.sigmoid(gates[:, 1 * hdim:2 * hdim])
            g_g = jnp.tanh(gates[:, 2 * hdim:3 * hdim])
            o_g = jax.nn.sigmoid(gates[:, 3 * hdim:4 * hdim])
            cs[l] = f_g * cs[l] + i_g * g_g
            hs[l] = o_g * jnp.tanh(cs[l])
            inp = hs[l]
        outs.append(inp)
    y = jnp.stack(outs, axis=1)
    logits = y.reshape(b * s, hdim) @ params["out_wT"] + params["out_b"]
    return logits.reshape(b, s, -1), (jnp.stack(hs), jnp.stack(cs))


# ----------------------------------- main ------------------------------------
if __name__ == "__main__":
    key = jax.random.PRNGKey(0)
    kp, kx = jax.random.split(key)
    params = init_params(kp)

    x = jax.random.randint(kx, (BATCH, SEQ_LEN, WORD_LEN), 0,
                           CFG["char_vocab_size"], dtype=jnp.int32)
    # init_hidden: zeros of shape (num_layers, batch, hidden)
    h0 = jnp.zeros((CFG["num_layers"], BATCH, CFG["hidden_size"]), jnp.float32)
    c0 = jnp.zeros((CFG["num_layers"], BATCH, CFG["hidden_size"]), jnp.float32)

    fwd = jax.jit(char_cnn_lstm_forward)
    logits, (h_n, c_n) = fwd(params, x, h0, c0)
    jax.block_until_ready((logits, h_n, c_n))

    ref_logits, (ref_h, ref_c) = reference_forward(params, x, h0, c0)
    assert logits.shape == (BATCH, SEQ_LEN, CFG["word_vocab_size"])
    assert jnp.allclose(logits, ref_logits, atol=1e-3, rtol=1e-3)
    assert jnp.allclose(h_n, ref_h, atol=1e-3, rtol=1e-3)
    assert jnp.allclose(c_n, ref_c, atol=1e-3, rtol=1e-3)

    print("KERNEL_OK")
</pallas_src>

<mosaic_0001>
module attributes {stable_mosaic.version = 11 : i64} {
  func.func @kernel(%arg0: memref<16x9xi32, #tpu.memory_space<vmem>>, %arg1: memref<20x16xf32, #tpu.memory_space<vmem>>, %arg2: memref<16x80xf32, #tpu.memory_space<vmem>>, %arg3: memref<1x16xf32, #tpu.memory_space<vmem>>, %arg4: memref<1x16xf32, #tpu.memory_space<vmem>>, %arg5: memref<1x32xf32, #tpu.memory_space<vmem>>, %arg6: memref<1x1xf32, #tpu.memory_space<vmem>>, %arg7: memref<32x32xf32, #tpu.memory_space<vmem>>, %arg8: memref<1x32xf32, #tpu.memory_space<vmem>>, %arg9: memref<32x128xf32, #tpu.memory_space<vmem>>, %arg10: memref<32x128xf32, #tpu.memory_space<vmem>>, %arg11: memref<1x128xf32, #tpu.memory_space<vmem>>, %arg12: memref<32x128xf32, #tpu.memory_space<vmem>>, %arg13: memref<32x128xf32, #tpu.memory_space<vmem>>, %arg14: memref<1x128xf32, #tpu.memory_space<vmem>>, %arg15: memref<2x2x32xf32, #tpu.memory_space<vmem>>, %arg16: memref<2x2x32xf32, #tpu.memory_space<vmem>>, %arg17: memref<32x24xf32, #tpu.memory_space<vmem>>, %arg18: memref<1x24xf32, #tpu.memory_space<vmem>>, %arg19: memref<16x24xf32, #tpu.memory_space<vmem>>, %arg20: memref<2x2x32xf32, #tpu.memory_space<vmem>>, %arg21: memref<2x2x32xf32, #tpu.memory_space<vmem>>, %arg22: memref<16x32xf32, #tpu.memory_space<vmem>>) attributes {dimension_semantics = [], scalar_prefetch = 0 : i64, scratch_operands = 1 : i64, tpu.core_type = #tpu.core_type<tc>} {
    %c0 = arith.constant 0 : index
    %c0_0 = arith.constant 0 : index
    %0 = vector.load %arg0[%c0, %c0_0] : memref<16x9xi32, #tpu.memory_space<vmem>>, vector<16x9xi32>
    %1 = tpu.iota {dimensions = array<i32: 1>} : vector<16x20xi32>
    %2 = vector.extract_strided_slice %0 {offsets = [0, 0], sizes = [16, 1], strides = [1, 1]} : vector<16x9xi32> to vector<16x1xi32>
    %3 = vector.broadcast %2 : vector<16x1xi32> to vector<16x20xi32>
    %4 = arith.cmpi eq, %3, %1 : vector<16x20xi32>
    %5 = arith.extui %4 : vector<16x20xi1> to vector<16x20xi32>
    %6 = arith.sitofp %5 : vector<16x20xi32> to vector<16x20xf32>
    %7 = vector.extract_strided_slice %0 {offsets = [0, 1], sizes = [16, 1], strides = [1, 1]} : vector<16x9xi32> to vector<16x1xi32>
    %8 = vector.broadcast %7 : vector<16x1xi32> to vector<16x20xi32>
    %9 = arith.cmpi eq, %8, %1 : vector<16x20xi32>
    %10 = arith.extui %9 : vector<16x20xi1> to vector<16x20xi32>
    %11 = arith.sitofp %10 : vector<16x20xi32> to vector<16x20xf32>
    %12 = vector.extract_strided_slice %0 {offsets = [0, 2], sizes = [16, 1], strides = [1, 1]} : vector<16x9xi32> to vector<16x1xi32>
    %13 = vector.broadcast %12 : vector<16x1xi32> to vector<16x20xi32>
    %14 = arith.cmpi eq, %13, %1 : vector<16x20xi32>
    %15 = arith.extui %14 : vector<16x20xi1> to vector<16x20xi32>
    %16 = arith.sitofp %15 : vector<16x20xi32> to vector<16x20xf32>
    %17 = vector.extract_strided_slice %0 {offsets = [0, 3], sizes = [16, 1], strides = [1, 1]} : vector<16x9xi32> to vector<16x1xi32>
    %18 = vector.broadcast %17 : vector<16x1xi32> to vector<16x20xi32>
    %19 = arith.cmpi eq, %18, %1 : vector<16x20xi32>
    %20 = arith.extui %19 : vector<16x20xi1> to vector<16x20xi32>
    %21 = arith.sitofp %20 : vector<16x20xi32> to vector<16x20xf32>
    %22 = vector.extract_strided_slice %0 {offsets = [0, 4], sizes = [16, 1], strides = [1, 1]} : vector<16x9xi32> to vector<16x1xi32>
    %23 = vector.broadcast %22 : vector<16x1xi32> to vector<16x20xi32>
    %24 = arith.cmpi eq, %23, %1 : vector<16x20xi32>
    %25 = arith.extui %24 : vector<16x20xi1> to vector<16x20xi32>
    %26 = arith.sitofp %25 : vector<16x20xi32> to vector<16x20xf32>
    %27 = vector.extract_strided_slice %0 {offsets = [0, 5], sizes = [16, 1], strides = [1, 1]} : vector<16x9xi32> to vector<16x1xi32>
    %28 = vector.broadcast %27 : vector<16x1xi32> to vector<16x20xi32>
    %29 = arith.cmpi eq, %28, %1 : vector<16x20xi32>
    %30 = arith.extui %29 : vector<16x20xi1> to vector<16x20xi32>
    %31 = arith.sitofp %30 : vector<16x20xi32> to vector<16x20xf32>
    %32 = vector.extract_strided_slice %0 {offsets = [0, 6], sizes = [16, 1], strides = [1, 1]} : vector<16x9xi32> to vector<16x1xi32>
    %33 = vector.broadcast %32 : vector<16x1xi32> to vector<16x20xi32>
    %34 = arith.cmpi eq, %33, %1 : vector<16x20xi32>
    %35 = arith.extui %34 : vector<16x20xi1> to vector<16x20xi32>
    %36 = arith.sitofp %35 : vector<16x20xi32> to vector<16x20xf32>
    %37 = vector.extract_strided_slice %0 {offsets = [0, 7], sizes = [16, 1], strides = [1, 1]} : vector<16x9xi32> to vector<16x1xi32>
    %38 = vector.broadcast %37 : vector<16x1xi32> to vector<16x20xi32>
    %39 = arith.cmpi eq, %38, %1 : vector<16x20xi32>
    %40 = arith.extui %39 : vector<16x20xi1> to vector<16x20xi32>
    %41 = arith.sitofp %40 : vector<16x20xi32> to vector<16x20xf32>
    %42 = vector.extract_strided_slice %0 {offsets = [0, 8], sizes = [16, 1], strides = [1, 1]} : vector<16x9xi32> to vector<16x1xi32>
    %43 = vector.broadcast %42 : vector<16x1xi32> to vector<16x20xi32>
    %44 = arith.cmpi eq, %43, %1 : vector<16x20xi32>
    %45 = arith.extui %44 : vector<16x20xi1> to vector<16x20xi32>
    %46 = arith.sitofp %45 : vector<16x20xi32> to vector<16x20xf32>
    %47 = tpu.concatenate %6, %11, %16, %21, %26, %31, %36, %41, %46 in 0 : vector<16x20xf32>, vector<16x20xf32>, vector<16x20xf32>, vector<16x20xf32>, vector<16x20xf32>, vector<16x20xf32>, vector<16x20xf32>, vector<16x20xf32>, vector<16x20xf32> -> vector<144x20xf32>
    %c0_1 = arith.constant 0 : index
    %c0_2 = arith.constant 0 : index
    %48 = vector.load %arg1[%c0_1, %c0_2] : memref<20x16xf32, #tpu.memory_space<vmem>>, vector<20x16xf32>
    %cst = arith.constant dense<0.000000e+00> : vector<144x16xf32>
    %49 = tpu.matmul %47, %48, %cst {dimension_numbers = #tpu.dot_dimension_numbers<[1], [0], [0], [1], [0, 0, 1, 1], [], []>} : vector<144x20xf32>, vector<20x16xf32>, vector<144x16xf32> -> vector<144x16xf32>
    %c0_3 = arith.constant 0 : index
    %c0_4 = arith.constant 0 : index
    %50 = vector.load %arg2[%c0_3, %c0_4] : memref<16x80xf32, #tpu.memory_space<vmem>>, vector<16x80xf32>
    %cst_5 = arith.constant dense<0.000000e+00> : vector<144x80xf32>
    %51 = tpu.matmul %49, %50, %cst_5 {dimension_numbers = #tpu.dot_dimension_numbers<[1], [0], [0], [1], [0, 0, 1, 1], [], []>} : vector<144x16xf32>, vector<16x80xf32>, vector<144x80xf32> -> vector<144x80xf32>
    %52 = vector.extract_strided_slice %51 {offsets = [0, 0], sizes = [128, 16], strides = [1, 1]} : vector<144x80xf32> to vector<128x16xf32>
    %53 = vector.extract_strided_slice %51 {offsets = [16, 16], sizes = [128, 16], strides = [1, 1]} : vector<144x80xf32> to vector<128x16xf32>
    %54 = arith.addf %52, %53 : vector<128x16xf32>
    %c0_6 = arith.constant 0 : index
    %c0_7 = arith.constant 0 : index
    %55 = vector.load %arg3[%c0_6, %c0_7] : memref<1x16xf32, #tpu.memory_space<vmem>>, vector<1x16xf32>
    %56 = vector.broadcast %55 : vector<1x16xf32> to vector<128x16xf32>
    %57 = arith.addf %54, %56 : vector<128x16xf32>
    %58 = math.tanh %57 : vector<128x16xf32>
    %59 = vector.extract_strided_slice %58 {offsets = [0, 0], sizes = [16, 16], strides = [1, 1]} : vector<128x16xf32> to vector<16x16xf32>
    %60 = vector.extract_strided_slice %58 {offsets = [16, 0], sizes = [16, 16], strides = [1, 1]} : vector<128x16xf32> to vector<16x16xf32>
    %61 = arith.maximumf %59, %60 : vector<16x16xf32>
    %62 = vector.extract_strided_slice %58 {offsets = [32, 0], sizes = [16, 16], strides = [1, 1]} : vector<128x16xf32> to vector<16x16xf32>
    %63 = arith.maximumf %61, %62 : vector<16x16xf32>
    %64 = vector.extract_strided_slice %58 {offsets = [48, 0], sizes = [16, 16], strides = [1, 1]} : vector<128x16xf32> to vector<16x16xf32>
    %65 = arith.maximumf %63, %64 : vector<16x16xf32>
    %66 = vector.extract_strided_slice %58 {offsets = [64, 0], sizes = [16, 16], strides = [1, 1]} : vector<128x16xf32> to vector<16x16xf32>
    %67 = arith.maximumf %65, %66 : vector<16x16xf32>
    %68 = vector.extract_strided_slice %58 {offsets = [80, 0], sizes = [16, 16], strides = [1, 1]} : vector<128x16xf32> to vector<16x16xf32>
    %69 = arith.maximumf %67, %68 : vector<16x16xf32>
    %70 = vector.extract_strided_slice %58 {offsets = [96, 0], sizes = [16, 16], strides = [1, 1]} : vector<128x16xf32> to vector<16x16xf32>
    %71 = arith.maximumf %69, %70 : vector<16x16xf32>
    %72 = vector.extract_strided_slice %58 {offsets = [112, 0], sizes = [16, 16], strides = [1, 1]} : vector<128x16xf32> to vector<16x16xf32>
    %73 = arith.maximumf %71, %72 : vector<16x16xf32>
    %74 = vector.extract_strided_slice %51 {offsets = [0, 32], sizes = [112, 16], strides = [1, 1]} : vector<144x80xf32> to vector<112x16xf32>
    %75 = vector.extract_strided_slice %51 {offsets = [16, 48], sizes = [112, 16], strides = [1, 1]} : vector<144x80xf32> to vector<112x16xf32>
    %76 = arith.addf %74, %75 : vector<112x16xf32>
    %77 = vector.extract_strided_slice %51 {offsets = [32, 64], sizes = [112, 16], strides = [1, 1]} : vector<144x80xf32> to vector<112x16xf32>
    %78 = arith.addf %76, %77 : vector<112x16xf32>
    %c0_8 = arith.constant 0 : index
    %c0_9 = arith.constant 0 : index
    %79 = vector.load %arg4[%c0_8, %c0_9] : memref<1x16xf32, #tpu.memory_space<vmem>>, vector<1x16xf32>
    %80 = vector.broadcast %79 : vector<1x16xf32> to vector<112x16xf32>
    %81 = arith.addf %78, %80 : vector<112x16xf32>
    %82 = math.tanh %81 : vector<112x16xf32>
    %83 = vector.extract_strided_slice %82 {offsets = [0, 0], sizes = [16, 16], strides = [1, 1]} : vector<112x16xf32> to vector<16x16xf32>
    %84 = vector.extract_strided_slice %82 {offsets = [16, 0], sizes = [16, 16], strides = [1, 1]} : vector<112x16xf32> to vector<16x16xf32>
    %85 = arith.maximumf %83, %84 : vector<16x16xf32>
    %86 = vector.extract_strided_slice %82 {offsets = [32, 0], sizes = [16, 16], strides = [1, 1]} : vector<112x16xf32> to vector<16x16xf32>
    %87 = arith.maximumf %85, %86 : vector<16x16xf32>
    %88 = vector.extract_strided_slice %82 {offsets = [48, 0], sizes = [16, 16], strides = [1, 1]} : vector<112x16xf32> to vector<16x16xf32>
    %89 = arith.maximumf %87, %88 : vector<16x16xf32>
    %90 = vector.extract_strided_slice %82 {offsets = [64, 0], sizes = [16, 16], strides = [1, 1]} : vector<112x16xf32> to vector<16x16xf32>
    %91 = arith.maximumf %89, %90 : vector<16x16xf32>
    %92 = vector.extract_strided_slice %82 {offsets = [80, 0], sizes = [16, 16], strides = [1, 1]} : vector<112x16xf32> to vector<16x16xf32>
    %93 = arith.maximumf %91, %92 : vector<16x16xf32>
    %94 = vector.extract_strided_slice %82 {offsets = [96, 0], sizes = [16, 16], strides = [1, 1]} : vector<112x16xf32> to vector<16x16xf32>
    %95 = arith.maximumf %93, %94 : vector<16x16xf32>
    %96 = tpu.concatenate %73, %95 in 1 : vector<16x16xf32>, vector<16x16xf32> -> vector<16x32xf32>
    %c0_10 = arith.constant 0 : index
    %c0_11 = arith.constant 0 : index
    %97 = vector.load %arg5[%c0_10, %c0_11] : memref<1x32xf32, #tpu.memory_space<vmem>>, vector<1x32xf32>
    %98 = vector.broadcast %97 : vector<1x32xf32> to vector<16x32xf32>
    %99 = arith.mulf %96, %98 : vector<16x32xf32>
    %cst_12 = arith.constant dense<0.000000e+00> : vector<16xf32>
    %100 = vector.multi_reduction <add>, %99, %cst_12 [1] : vector<16x32xf32> to vector<16xf32>
    %101 = vector.shape_cast %100 : vector<16xf32> to vector<16x1xf32>
    %c0_13 = arith.constant 0 : index
    %c0_14 = arith.constant 0 : index
    %102 = vector.load %arg6[%c0_13, %c0_14] : memref<1x1xf32, #tpu.memory_space<vmem>>, vector<1x1xf32>
    %103 = vector.broadcast %102 : vector<1x1xf32> to vector<16x1xf32>
    %104 = arith.addf %101, %103 : vector<16x1xf32>
    %105 = arith.negf %104 : vector<16x1xf32>
    %106 = math.exp %105 : vector<16x1xf32>
    %cst_15 = arith.constant 1.000000e+00 : f32
    %107 = vector.broadcast %cst_15 : f32 to vector<16x1xf32>
    %108 = arith.addf %107, %106 : vector<16x1xf32>
    %109 = arith.divf %107, %108 : vector<16x1xf32>
    %c0_16 = arith.constant 0 : index
    %c0_17 = arith.constant 0 : index
    %110 = vector.load %arg7[%c0_16, %c0_17] : memref<32x32xf32, #tpu.memory_space<vmem>>, vector<32x32xf32>
    %cst_18 = arith.constant dense<0.000000e+00> : vector<16x32xf32>
    %111 = tpu.matmul %96, %110, %cst_18 {dimension_numbers = #tpu.dot_dimension_numbers<[1], [0], [0], [1], [0, 0, 1, 1], [], []>} : vector<16x32xf32>, vector<32x32xf32>, vector<16x32xf32> -> vector<16x32xf32>
    %c0_19 = arith.constant 0 : index
    %c0_20 = arith.constant 0 : index
    %112 = vector.load %arg8[%c0_19, %c0_20] : memref<1x32xf32, #tpu.memory_space<vmem>>, vector<1x32xf32>
    %113 = vector.broadcast %112 : vector<1x32xf32> to vector<16x32xf32>
    %114 = arith.addf %111, %113 : vector<16x32xf32>
    %cst_21 = arith.constant 0.000000e+00 : f32
    %115 = vector.broadcast %cst_21 : f32 to vector<16x32xf32>
    %116 = arith.maximumf %114, %115 : vector<16x32xf32>
    %117 = vector.broadcast %109 : vector<16x1xf32> to vector<16x32xf32>
    %118 = arith.mulf %117, %116 : vector<16x32xf32>
    %cst_22 = arith.constant 1.000000e+00 : f32
    %119 = vector.broadcast %cst_22 : f32 to vector<16x1xf32>
    %120 = arith.subf %119, %109 : vector<16x1xf32>
    %121 = vector.broadcast %120 : vector<16x1xf32> to vector<16x32xf32>
    %122 = arith.mulf %121, %96 : vector<16x32xf32>
    %123 = arith.addf %118, %122 : vector<16x32xf32>
    %c0_23 = arith.constant 0 : index
    %c0_24 = arith.constant 0 : index
    %124 = vector.load %arg9[%c0_23, %c0_24] : memref<32x128xf32, #tpu.memory_space<vmem>>, vector<32x128xf32>
    %c0_25 = arith.constant 0 : index
    %c0_26 = arith.constant 0 : index
    %125 = vector.load %arg10[%c0_25, %c0_26] : memref<32x128xf32, #tpu.memory_space<vmem>>, vector<32x128xf32>
    %c0_27 = arith.constant 0 : index
    %c0_28 = arith.constant 0 : index
    %126 = vector.load %arg11[%c0_27, %c0_28] : memref<1x128xf32, #tpu.memory_space<vmem>>, vector<1x128xf32>
    %cst_29 = arith.constant dense<0.000000e+00> : vector<16x128xf32>
    %127 = tpu.matmul %123, %124, %cst_29 {dimension_numbers = #tpu.dot_dimension_numbers<[1], [0], [0], [1], [0, 0, 1, 1], [], []>} : vector<16x32xf32>, vector<32x128xf32>, vector<16x128xf32> -> vector<16x128xf32>
    %128 = vector.broadcast %126 : vector<1x128xf32> to vector<16x128xf32>
    %129 = arith.addf %127, %128 : vector<16x128xf32>
    %c0_30 = arith.constant 0 : index
    %c0_31 = arith.constant 0 : index
    %c0_32 = arith.constant 0 : index
    %130 = vector.load %arg15[%c0_30, %c0_31, %c0_32] : memref<2x2x32xf32, #tpu.memory_space<vmem>>, vector<1x2x32xf32>
    %131 = vector.shape_cast %130 : vector<1x2x32xf32> to vector<2x32xf32>
    %c0_33 = arith.constant 0 : index
    %c0_34 = arith.constant 0 : index
    %c0_35 = arith.constant 0 : index
    %132 = vector.load %arg16[%c0_33, %c0_34, %c0_35] : memref<2x2x32xf32, #tpu.memory_space<vmem>>, vector<1x2x32xf32>
    %133 = vector.shape_cast %132 : vector<1x2x32xf32> to vector<2x32xf32>
    %134 = vector.extract_strided_slice %129 {offsets = [0, 0], sizes = [1, 128], strides = [1, 1]} : vector<16x128xf32> to vector<1x128xf32>
    %135 = vector.extract_strided_slice %129 {offsets = [8, 0], sizes = [1, 128], strides = [1, 1]} : vector<16x128xf32> to vector<1x128xf32>
    %136 = tpu.concatenate %134, %135 in 0 : vector<1x128xf32>, vector<1x128xf32> -> vector<2x128xf32>
    %cst_36 = arith.constant dense<0.000000e+00> : vector<2x128xf32>
    %137 = tpu.matmul %131, %125, %cst_36 {dimension_numbers = #tpu.dot_dimension_numbers<[1], [0], [0], [1], [0, 0, 1, 1], [], []>} : vector<2x32xf32>, vector<32x128xf32>, vector<2x128xf32> -> vector<2x128xf32>
    %138 = arith.addf %136, %137 : vector<2x128xf32>
    %139 = vector.extract_strided_slice %138 {offsets = [0, 0], sizes = [2, 32], strides = [1, 1]} : vector<2x128xf32> to vector<2x32xf32>
    %140 = arith.negf %139 : vector<2x32xf32>
    %141 = math.exp %140 : vector<2x32xf32>
    %cst_37 = arith.constant 1.000000e+00 : f32
    %142 = vector.broadcast %cst_37 : f32 to vector<2x32xf32>
    %143 = arith.addf %142, %141 : vector<2x32xf32>
    %144 = arith.divf %142, %143 : vector<2x32xf32>
    %145 = vector.extract_strided_slice %138 {offsets = [0, 32], sizes = [2, 32], strides = [1, 1]} : vector<2x128xf32> to vector<2x32xf32>
    %146 = arith.negf %145 : vector<2x32xf32>
    %147 = math.exp %146 : vector<2x32xf32>
    %cst_38 = arith.constant 1.000000e+00 : f32
    %148 = vector.broadcast %cst_38 : f32 to vector<2x32xf32>
    %149 = arith.addf %148, %147 : vector<2x32xf32>
    %150 = arith.divf %148, %149 : vector<2x32xf32>
    %151 = vector.extract_strided_slice %138 {offsets = [0, 64], sizes = [2, 32], strides = [1, 1]} : vector<2x128xf32> to vector<2x32xf32>
    %152 = math.tanh %151 : vector<2x32xf32>
    %153 = vector.extract_strided_slice %138 {offsets = [0, 96], sizes = [2, 32], strides = [1, 1]} : vector<2x128xf32> to vector<2x32xf32>
    %154 = arith.negf %153 : vector<2x32xf32>
    %155 = math.exp %154 : vector<2x32xf32>
    %cst_39 = arith.constant 1.000000e+00 : f32
    %156 = vector.broadcast %cst_39 : f32 to vector<2x32xf32>
    %157 = arith.addf %156, %155 : vector<2x32xf32>
    %158 = arith.divf %156, %157 : vector<2x32xf32>
    %159 = arith.mulf %150, %133 : vector<2x32xf32>
    %160 = arith.mulf %144, %152 : vector<2x32xf32>
    %161 = arith.addf %159, %160 : vector<2x32xf32>
    %162 = math.tanh %161 : vector<2x32xf32>
    %163 = arith.mulf %158, %162 : vector<2x32xf32>
    %164 = vector.extract_strided_slice %163 {offsets = [0, 0], sizes = [1, 32], strides = [1, 1]} : vector<2x32xf32> to vector<1x32xf32>
    %c0_40 = arith.constant 0 : index
    %c0_41 = arith.constant 0 : index
    %165 = vector.load %arg22[%c0_40, %c0_41] : memref<16x32xf32, #tpu.memory_space<vmem>>, vector<1x32xf32>
    tpu.vector_store %arg22[%c0_40, %c0_41], %164 {strides = array<i32>} : memref<16x32xf32, #tpu.memory_space<vmem>>, vector<1x32xf32>,
    %166 = vector.extract_strided_slice %163 {offsets = [1, 0], sizes = [1, 32], strides = [1, 1]} : vector<2x32xf32> to vector<1x32xf32>
    %c8 = arith.constant 8 : index
    %c0_42 = arith.constant 0 : index
    %167 = vector.load %arg22[%c8, %c0_42] : memref<16x32xf32, #tpu.memory_space<vmem>>, vector<1x32xf32>
    tpu.vector_store %arg22[%c8, %c0_42], %166 {strides = array<i32>} : memref<16x32xf32, #tpu.memory_space<vmem>>, vector<1x32xf32>,
    %168 = vector.extract_strided_slice %129 {offsets = [1, 0], sizes = [1, 128], strides = [1, 1]} : vector<16x128xf32> to vector<1x128xf32>
    %169 = vector.extract_strided_slice %129 {offsets = [9, 0], sizes = [1, 128], strides = [1, 1]} : vector<16x128xf32> to vector<1x128xf32>
    %170 = tpu.concatenate %168, %169 in 0 : vector<1x128xf32>, vector<1x128xf32> -> vector<2x128xf32>
    %cst_43 = arith.constant dense<0.000000e+00> : vector<2x128xf32>
    %171 = tpu.matmul %163, %125, %cst_43 {dimension_numbers = #tpu.dot_dimension_numbers<[1], [0], [0], [1], [0, 0, 1, 1], [], []>} : vector<2x32xf32>, vector<32x128xf32>, vector<2x128xf32> -> vector<2x128xf32>
    %172 = arith.addf %170, %171 : vector<2x128xf32>
    %173 = vector.extract_strided_slice %172 {offsets = [0, 0], sizes = [2, 32], strides = [1, 1]} : vector<2x128xf32> to vector<2x32xf32>
    %174 = arith.negf %173 : vector<2x32xf32>
    %175 = math.exp %174 : vector<2x32xf32>
    %cst_44 = arith.constant 1.000000e+00 : f32
    %176 = vector.broadcast %cst_44 : f32 to vector<2x32xf32>
    %177 = arith.addf %176, %175 : vector<2x32xf32>
    %178 = arith.divf %176, %177 : vector<2x32xf32>
    %179 = vector.extract_strided_slice %172 {offsets = [0, 32], sizes = [2, 32], strides = [1, 1]} : vector<2x128xf32> to vector<2x32xf32>
    %180 = arith.negf %179 : vector<2x32xf32>
    %181 = math.exp %180 : vector<2x32xf32>
    %cst_45 = arith.constant 1.000000e+00 : f32
    %182 = vector.broadcast %cst_45 : f32 to vector<2x32xf32>
    %183 = arith.addf %182, %181 : vector<2x32xf32>
    %184 = arith.divf %182, %183 : vector<2x32xf32>
    %185 = vector.extract_strided_slice %172 {offsets = [0, 64], sizes = [2, 32], strides = [1, 1]} : vector<2x128xf32> to vector<2x32xf32>
    %186 = math.tanh %185 : vector<2x32xf32>
    %187 = vector.extract_strided_slice %172 {offsets = [0, 96], sizes = [2, 32], strides = [1, 1]} : vector<2x128xf32> to vector<2x32xf32>
    %188 = arith.negf %187 : vector<2x32xf32>
    %189 = math.exp %188 : vector<2x32xf32>
    %cst_46 = arith.constant 1.000000e+00 : f32
    %190 = vector.broadcast %cst_46 : f32 to vector<2x32xf32>
    %191 = arith.addf %190, %189 : vector<2x32xf32>
    %192 = arith.divf %190, %191 : vector<2x32xf32>
    %193 = arith.mulf %184, %161 : vector<2x32xf32>
    %194 = arith.mulf %178, %186 : vector<2x32xf32>
    %195 = arith.addf %193, %194 : vector<2x32xf32>
    %196 = math.tanh %195 : vector<2x32xf32>
    %197 = arith.mulf %192, %196 : vector<2x32xf32>
    %198 = vector.extract_strided_slice %197 {offsets = [0, 0], sizes = [1, 32], strides = [1, 1]} : vector<2x32xf32> to vector<1x32xf32>
    %c1 = arith.constant 1 : index
    %c0_47 = arith.constant 0 : index
    %199 = vector.load %arg22[%c1, %c0_47] : memref<16x32xf32, #tpu.memory_space<vmem>>, vector<1x32xf32>
    tpu.vector_store %arg22[%c1, %c0_47], %198 {strides = array<i32>} : memref<16x32xf32, #tpu.memory_space<vmem>>, vector<1x32xf32>,
    %200 = vector.extract_strided_slice %197 {offsets = [1, 0], sizes = [1, 32], strides = [1, 1]} : vector<2x32xf32> to vector<1x32xf32>
    %c9 = arith.constant 9 : index
    %c0_48 = arith.constant 0 : index
    %201 = vector.load %arg22[%c9, %c0_48] : memref<16x32xf32, #tpu.memory_space<vmem>>, vector<1x32xf32>
    tpu.vector_store %arg22[%c9, %c0_48], %200 {strides = array<i32>} : memref<16x32xf32, #tpu.memory_space<vmem>>, vector<1x32xf32>,
    %202 = vector.extract_strided_slice %129 {offsets = [2, 0], sizes = [1, 128], strides = [1, 1]} : vector<16x128xf32> to vector<1x128xf32>
    %203 = vector.extract_strided_slice %129 {offsets = [10, 0], sizes = [1, 128], strides = [1, 1]} : vector<16x128xf32> to vector<1x128xf32>
    %204 = tpu.concatenate %202, %203 in 0 : vector<1x128xf32>, vector<1x128xf32> -> vector<2x128xf32>
    %cst_49 = arith.constant dense<0.000000e+00> : vector<2x128xf32>
    %205 = tpu.matmul %197, %125, %cst_49 {dimension_numbers = #tpu.dot_dimension_numbers<[1], [0], [0], [1], [0, 0, 1, 1], [], []>} : vector<2x32xf32>, vector<32x128xf32>, vector<2x128xf32> -> vector<2x128xf32>
    %206 = arith.addf %204, %205 : vector<2x128xf32>
    %207 = vector.extract_strided_slice %206 {offsets = [0, 0], sizes = [2, 32], strides = [1, 1]} : vector<2x128xf32> to vector<2x32xf32>
    %208 = arith.negf %207 : vector<2x32xf32>
    %209 = math.exp %208 : vector<2x32xf32>
    %cst_50 = arith.constant 1.000000e+00 : f32
    %210 = vector.broadcast %cst_50 : f32 to vector<2x32xf32>
    %211 = arith.addf %210, %209 : vector<2x32xf32>
    %212 = arith.divf %210, %211 : vector<2x32xf32>
    %213 = vector.extract_strided_slice %206 {offsets = [0, 32], sizes = [2, 32], strides = [1, 1]} : vector<2x128xf32> to vector<2x32xf32>
    %214 = arith.negf %213 : vector<2x32xf32>
    %215 = math.exp %214 : vector<2x32xf32>
    %cst_51 = arith.constant 1.000000e+00 : f32
    %216 = vector.broadcast %cst_51 : f32 to vector<2x32xf32>
    %217 = arith.addf %216, %215 : vector<2x32xf32>
    %218 = arith.divf %216, %217 : vector<2x32xf32>
    %219 = vector.extract_strided_slice %206 {offsets = [0, 64], sizes = [2, 32], strides = [1, 1]} : vector<2x128xf32> to vector<2x32xf32>
    %220 = math.tanh %219 : vector<2x32xf32>
    %221 = vector.extract_strided_slice %206 {offsets = [0, 96], sizes = [2, 32], strides = [1, 1]} : vector<2x128xf32> to vector<2x32xf32>
    %222 = arith.negf %221 : vector<2x32xf32>
    %223 = math.exp %222 : vector<2x32xf32>
    %cst_52 = arith.constant 1.000000e+00 : f32
    %224 = vector.broadcast %cst_52 : f32 to vector<2x32xf32>
    %225 = arith.addf %224, %223 : vector<2x32xf32>
    %226 = arith.divf %224, %225 : vector<2x32xf32>
    %227 = arith.mulf %218, %195 : vector<2x32xf32>
    %228 = arith.mulf %212, %220 : vector<2x32xf32>
    %229 = arith.addf %227, %228 : vector<2x32xf32>
    %230 = math.tanh %229 : vector<2x32xf32>
    %231 = arith.mulf %226, %230 : vector<2x32xf32>
    %232 = vector.extract_strided_slice %231 {offsets = [0, 0], sizes = [1, 32], strides = [1, 1]} : vector<2x32xf32> to vector<1x32xf32>
    %c2 = arith.constant 2 : index
    %c0_53 = arith.constant 0 : index
    %233 = vector.load %arg22[%c2, %c0_53] : memref<16x32xf32, #tpu.memory_space<vmem>>, vector<1x32xf32>
    tpu.vector_store %arg22[%c2, %c0_53], %232 {strides = array<i32>} : memref<16x32xf32, #tpu.memory_space<vmem>>, vector<1x32xf32>,
    %234 = vector.extract_strided_slice %231 {offsets = [1, 0], sizes = [1, 32], strides = [1, 1]} : vector<2x32xf32> to vector<1x32xf32>
    %c10 = arith.constant 10 : index
    %c0_54 = arith.constant 0 : index
    %235 = vector.load %arg22[%c10, %c0_54] : memref<16x32xf32, #tpu.memory_space<vmem>>, vector<1x32xf32>
    tpu.vector_store %arg22[%c10, %c0_54], %234 {strides = array<i32>} : memref<16x32xf32, #tpu.memory_space<vmem>>, vector<1x32xf32>,
    %236 = vector.extract_strided_slice %129 {offsets = [3, 0], sizes = [1, 128], strides = [1, 1]} : vector<16x128xf32> to vector<1x128xf32>
    %237 = vector.extract_strided_slice %129 {offsets = [11, 0], sizes = [1, 128], strides = [1, 1]} : vector<16x128xf32> to vector<1x128xf32>
    %238 = tpu.concatenate %236, %237 in 0 : vector<1x128xf32>, vector<1x128xf32> -> vector<2x128xf32>
    %cst_55 = arith.constant dense<0.000000e+00> : vector<2x128xf32>
    %239 = tpu.matmul %231, %125, %cst_55 {dimension_numbers = #tpu.dot_dimension_numbers<[1], [0], [0], [1], [0, 0, 1, 1], [], []>} : vector<2x32xf32>, vector<32x128xf32>, vector<2x128xf32> -> vector<2x128xf32>
    %240 = arith.addf %238, %239 : vector<2x128xf32>
    %241 = vector.extract_strided_slice %240 {offsets = [0, 0], sizes = [2, 32], strides = [1, 1]} : vector<2x128xf32> to vector<2x32xf32>
    %242 = arith.negf %241 : vector<2x32xf32>
    %243 = math.exp %242 : vector<2x32xf32>
    %cst_56 = arith.constant 1.000000e+00 : f32
    %244 = vector.broadcast %cst_56 : f32 to vector<2x32xf32>
    %245 = arith.addf %244, %243 : vector<2x32xf32>
    %246 = arith.divf %244, %245 : vector<2x32xf32>
    %247 = vector.extract_strided_slice %240 {offsets = [0, 32], sizes = [2, 32], strides = [1, 1]} : vector<2x128xf32> to vector<2x32xf32>
    %248 = arith.negf %247 : vector<2x32xf32>
    %249 = math.exp %248 : vector<2x32xf32>
    %cst_57 = arith.constant 1.000000e+00 : f32
    %250 = vector.broadcast %cst_57 : f32 to vector<2x32xf32>
    %251 = arith.addf %250, %249 : vector<2x32xf32>
    %252 = arith.divf %250, %251 : vector<2x32xf32>
    %253 = vector.extract_strided_slice %240 {offsets = [0, 64], sizes = [2, 32], strides = [1, 1]} : vector<2x128xf32> to vector<2x32xf32>
    %254 = math.tanh %253 : vector<2x32xf32>
    %255 = vector.extract_strided_slice %240 {offsets = [0, 96], sizes = [2, 32], strides = [1, 1]} : vector<2x128xf32> to vector<2x32xf32>
    %256 = arith.negf %255 : vector<2x32xf32>
    %257 = math.exp %256 : vector<2x32xf32>
    %cst_58 = arith.constant 1.000000e+00 : f32
    %258 = vector.broadcast %cst_58 : f32 to vector<2x32xf32>
    %259 = arith.addf %258, %257 : vector<2x32xf32>
    %260 = arith.divf %258, %259 : vector<2x32xf32>
    %261 = arith.mulf %252, %229 : vector<2x32xf32>
    %262 = arith.mulf %246, %254 : vector<2x32xf32>
    %263 = arith.addf %261, %262 : vector<2x32xf32>
    %264 = math.tanh %263 : vector<2x32xf32>
    %265 = arith.mulf %260, %264 : vector<2x32xf32>
    %266 = vector.extract_strided_slice %265 {offsets = [0, 0], sizes = [1, 32], strides = [1, 1]} : vector<2x32xf32> to vector<1x32xf32>
    %c3 = arith.constant 3 : index
    %c0_59 = arith.constant 0 : index
    %267 = vector.load %arg22[%c3, %c0_59] : memref<16x32xf32, #tpu.memory_space<vmem>>, vector<1x32xf32>
    tpu.vector_store %arg22[%c3, %c0_59], %266 {strides = array<i32>} : memref<16x32xf32, #tpu.memory_space<vmem>>, vector<1x32xf32>,
    %268 = vector.extract_strided_slice %265 {offsets = [1, 0], sizes = [1, 32], strides = [1, 1]} : vector<2x32xf32> to vector<1x32xf32>
    %c11 = arith.constant 11 : index
    %c0_60 = arith.constant 0 : index
    %269 = vector.load %arg22[%c11, %c0_60] : memref<16x32xf32, #tpu.memory_space<vmem>>, vector<1x32xf32>
    tpu.vector_store %arg22[%c11, %c0_60], %268 {strides = array<i32>} : memref<16x32xf32, #tpu.memory_space<vmem>>, vector<1x32xf32>,
    %270 = vector.extract_strided_slice %129 {offsets = [4, 0], sizes = [1, 128], strides = [1, 1]} : vector<16x128xf32> to vector<1x128xf32>
    %271 = vector.extract_strided_slice %129 {offsets = [12, 0], sizes = [1, 128], strides = [1, 1]} : vector<16x128xf32> to vector<1x128xf32>
    %272 = tpu.concatenate %270, %271 in 0 : vector<1x128xf32>, vector<1x128xf32> -> vector<2x128xf32>
    %cst_61 = arith.constant dense<0.000000e+00> : vector<2x128xf32>
    %273 = tpu.matmul %265, %125, %cst_61 {dimension_numbers = #tpu.dot_dimension_numbers<[1], [0], [0], [1], [0, 0, 1, 1], [], []>} : vector<2x32xf32>, vector<32x128xf32>, vector<2x128xf32> -> vector<2x128xf32>
    %274 = arith.addf %272, %273 : vector<2x128xf32>
    %275 = vector.extract_strided_slice %274 {offsets = [0, 0], sizes = [2, 32], strides = [1, 1]} : vector<2x128xf32> to vector<2x32xf32>
    %276 = arith.negf %275 : vector<2x32xf32>
    %277 = math.exp %276 : vector<2x32xf32>
    %cst_62 = arith.constant 1.000000e+00 : f32
    %278 = vector.broadcast %cst_62 : f32 to vector<2x32xf32>
    %279 = arith.addf %278, %277 : vector<2x32xf32>
    %280 = arith.divf %278, %279 : vector<2x32xf32>
    %281 = vector.extract_strided_slice %274 {offsets = [0, 32], sizes = [2, 32], strides = [1, 1]} : vector<2x128xf32> to vector<2x32xf32>
    %282 = arith.negf %281 : vector<2x32xf32>
    %283 = math.exp %282 : vector<2x32xf32>
    %cst_63 = arith.constant 1.000000e+00 : f32
    %284 = vector.broadcast %cst_63 : f32 to vector<2x32xf32>
    %285 = arith.addf %284, %283 : vector<2x32xf32>
    %286 = arith.divf %284, %285 : vector<2x32xf32>
    %287 = vector.extract_strided_slice %274 {offsets = [0, 64], sizes = [2, 32], strides = [1, 1]} : vector<2x128xf32> to vector<2x32xf32>
    %288 = math.tanh %287 : vector<2x32xf32>
    %289 = vector.extract_strided_slice %274 {offsets = [0, 96], sizes = [2, 32], strides = [1, 1]} : vector<2x128xf32> to vector<2x32xf32>
    %290 = arith.negf %289 : vector<2x32xf32>
    %291 = math.exp %290 : vector<2x32xf32>
    %cst_64 = arith.constant 1.000000e+00 : f32
    %292 = vector.broadcast %cst_64 : f32 to vector<2x32xf32>
    %293 = arith.addf %292, %291 : vector<2x32xf32>
    %294 = arith.divf %292, %293 : vector<2x32xf32>
    %295 = arith.mulf %286, %263 : vector<2x32xf32>
    %296 = arith.mulf %280, %288 : vector<2x32xf32>
    %297 = arith.addf %295, %296 : vector<2x32xf32>
    %298 = math.tanh %297 : vector<2x32xf32>
    %299 = arith.mulf %294, %298 : vector<2x32xf32>
    %300 = vector.extract_strided_slice %299 {offsets = [0, 0], sizes = [1, 32], strides = [1, 1]} : vector<2x32xf32> to vector<1x32xf32>
    %c4 = arith.constant 4 : index
    %c0_65 = arith.constant 0 : index
    %301 = vector.load %arg22[%c4, %c0_65] : memref<16x32xf32, #tpu.memory_space<vmem>>, vector<1x32xf32>
    tpu.vector_store %arg22[%c4, %c0_65], %300 {strides = array<i32>} : memref<16x32xf32, #tpu.memory_space<vmem>>, vector<1x32xf32>,
    %302 = vector.extract_strided_slice %299 {offsets = [1, 0], sizes = [1, 32], strides = [1, 1]} : vector<2x32xf32> to vector<1x32xf32>
    %c12 = arith.constant 12 : index
    %c0_66 = arith.constant 0 : index
    %303 = vector.load %arg22[%c12, %c0_66] : memref<16x32xf32, #tpu.memory_space<vmem>>, vector<1x32xf32>
    tpu.vector_store %arg22[%c12, %c0_66], %302 {strides = array<i32>} : memref<16x32xf32, #tpu.memory_space<vmem>>, vector<1x32xf32>,
    %304 = vector.extract_strided_slice %129 {offsets = [5, 0], sizes = [1, 128], strides = [1, 1]} : vector<16x128xf32> to vector<1x128xf32>
    %305 = vector.extract_strided_slice %129 {offsets = [13, 0], sizes = [1, 128], strides = [1, 1]} : vector<16x128xf32> to vector<1x128xf32>
    %306 = tpu.concatenate %304, %305 in 0 : vector<1x128xf32>, vector<1x128xf32> -> vector<2x128xf32>
    %cst_67 = arith.constant dense<0.000000e+00> : vector<2x128xf32>
    %307 = tpu.matmul %299, %125, %cst_67 {dimension_numbers = #tpu.dot_dimension_numbers<[1], [0], [0], [1], [0, 0, 1, 1], [], []>} : vector<2x32xf32>, vector<32x128xf32>, vector<2x128xf32> -> vector<2x128xf32>
    %308 = arith.addf %306, %307 : vector<2x128xf32>
    %309 = vector.extract_strided_slice %308 {offsets = [0, 0], sizes = [2, 32], strides = [1, 1]} : vector<2x128xf32> to vector<2x32xf32>
    %310 = arith.negf %309 : vector<2x32xf32>
    %311 = math.exp %310 : vector<2x32xf32>
    %cst_68 = arith.constant 1.000000e+00 : f32
    %312 = vector.broadcast %cst_68 : f32 to vector<2x32xf32>
    %313 = arith.addf %312, %311 : vector<2x32xf32>
    %314 = arith.divf %312, %313 : vector<2x32xf32>
    %315 = vector.extract_strided_slice %308 {offsets = [0, 32], sizes = [2, 32], strides = [1, 1]} : vector<2x128xf32> to vector<2x32xf32>
    %316 = arith.negf %315 : vector<2x32xf32>
    %317 = math.exp %316 : vector<2x32xf32>
    %cst_69 = arith.constant 1.000000e+00 : f32
    %318 = vector.broadcast %cst_69 : f32 to vector<2x32xf32>
    %319 = arith.addf %318, %317 : vector<2x32xf32>
    %320 = arith.divf %318, %319 : vector<2x32xf32>
    %321 = vector.extract_strided_slice %308 {offsets = [0, 64], sizes = [2, 32], strides = [1, 1]} : vector<2x128xf32> to vector<2x32xf32>
    %322 = math.tanh %321 : vector<2x32xf32>
    %323 = vector.extract_strided_slice %308 {offsets = [0, 96], sizes = [2, 32], strides = [1, 1]} : vector<2x128xf32> to vector<2x32xf32>
    %324 = arith.negf %323 : vector<2x32xf32>
    %325 = math.exp %324 : vector<2x32xf32>
    %cst_70 = arith.constant 1.000000e+00 : f32
    %326 = vector.broadcast %cst_70 : f32 to vector<2x32xf32>
    %327 = arith.addf %326, %325 : vector<2x32xf32>
    %328 = arith.divf %326, %327 : vector<2x32xf32>
    %329 = arith.mulf %320, %297 : vector<2x32xf32>
    %330 = arith.mulf %314, %322 : vector<2x32xf32>
    %331 = arith.addf %329, %330 : vector<2x32xf32>
    %332 = math.tanh %331 : vector<2x32xf32>
    %333 = arith.mulf %328, %332 : vector<2x32xf32>
    %334 = vector.extract_strided_slice %333 {offsets = [0, 0], sizes = [1, 32], strides = [1, 1]} : vector<2x32xf32> to vector<1x32xf32>
    %c5 = arith.constant 5 : index
    %c0_71 = arith.constant 0 : index
    %335 = vector.load %arg22[%c5, %c0_71] : memref<16x32xf32, #tpu.memory_space<vmem>>, vector<1x32xf32>
    tpu.vector_store %arg22[%c5, %c0_71], %334 {strides = array<i32>} : memref<16x32xf32, #tpu.memory_space<vmem>>, vector<1x32xf32>,
    %336 = vector.extract_strided_slice %333 {offsets = [1, 0], sizes = [1, 32], strides = [1, 1]} : vector<2x32xf32> to vector<1x32xf32>
    %c13 = arith.constant 13 : index
    %c0_72 = arith.constant 0 : index
    %337 = vector.load %arg22[%c13, %c0_72] : memref<16x32xf32, #tpu.memory_space<vmem>>, vector<1x32xf32>
    tpu.vector_store %arg22[%c13, %c0_72], %336 {strides = array<i32>} : memref<16x32xf32, #tpu.memory_space<vmem>>, vector<1x32xf32>,
    %338 = vector.extract_strided_slice %129 {offsets = [6, 0], sizes = [1, 128], strides = [1, 1]} : vector<16x128xf32> to vector<1x128xf32>
    %339 = vector.extract_strided_slice %129 {offsets = [14, 0], sizes = [1, 128], strides = [1, 1]} : vector<16x128xf32> to vector<1x128xf32>
    %340 = tpu.concatenate %338, %339 in 0 : vector<1x128xf32>, vector<1x128xf32> -> vector<2x128xf32>
    %cst_73 = arith.constant dense<0.000000e+00> : vector<2x128xf32>
    %341 = tpu.matmul %333, %125, %cst_73 {dimension_numbers = #tpu.dot_dimension_numbers<[1], [0], [0], [1], [0, 0, 1, 1], [], []>} : vector<2x32xf32>, vector<32x128xf32>, vector<2x128xf32> -> vector<2x128xf32>
    %342 = arith.addf %340, %341 : vector<2x128xf32>
    %343 = vector.extract_strided_slice %342 {offsets = [0, 0], sizes = [2, 32], strides = [1, 1]} : vector<2x128xf32> to vector<2x32xf32>
    %344 = arith.negf %343 : vector<2x32xf32>
    %345 = math.exp %344 : vector<2x32xf32>
    %cst_74 = arith.constant 1.000000e+00 : f32
    %346 = vector.broadcast %cst_74 : f32 to vector<2x32xf32>
    %347 = arith.addf %346, %345 : vector<2x32xf32>
    %348 = arith.divf %346, %347 : vector<2x32xf32>
    %349 = vector.extract_strided_slice %342 {offsets = [0, 32], sizes = [2, 32], strides = [1, 1]} : vector<2x128xf32> to vector<2x32xf32>
    %350 = arith.negf %349 : vector<2x32xf32>
    %351 = math.exp %350 : vector<2x32xf32>
    %cst_75 = arith.constant 1.000000e+00 : f32
    %352 = vector.broadcast %cst_75 : f32 to vector<2x32xf32>
    %353 = arith.addf %352, %351 : vector<2x32xf32>
    %354 = arith.divf %352, %353 : vector<2x32xf32>
    %355 = vector.extract_strided_slice %342 {offsets = [0, 64], sizes = [2, 32], strides = [1, 1]} : vector<2x128xf32> to vector<2x32xf32>
    %356 = math.tanh %355 : vector<2x32xf32>
    %357 = vector.extract_strided_slice %342 {offsets = [0, 96], sizes = [2, 32], strides = [1, 1]} : vector<2x128xf32> to vector<2x32xf32>
    %358 = arith.negf %357 : vector<2x32xf32>
    %359 = math.exp %358 : vector<2x32xf32>
    %cst_76 = arith.constant 1.000000e+00 : f32
    %360 = vector.broadcast %cst_76 : f32 to vector<2x32xf32>
    %361 = arith.addf %360, %359 : vector<2x32xf32>
    %362 = arith.divf %360, %361 : vector<2x32xf32>
    %363 = arith.mulf %354, %331 : vector<2x32xf32>
    %364 = arith.mulf %348, %356 : vector<2x32xf32>
    %365 = arith.addf %363, %364 : vector<2x32xf32>
    %366 = math.tanh %365 : vector<2x32xf32>
    %367 = arith.mulf %362, %366 : vector<2x32xf32>
    %368 = vector.extract_strided_slice %367 {offsets = [0, 0], sizes = [1, 32], strides = [1, 1]} : vector<2x32xf32> to vector<1x32xf32>
    %c6 = arith.constant 6 : index
    %c0_77 = arith.constant 0 : index
    %369 = vector.load %arg22[%c6, %c0_77] : memref<16x32xf32, #tpu.memory_space<vmem>>, vector<1x32xf32>
    tpu.vector_store %arg22[%c6, %c0_77], %368 {strides = array<i32>} : memref<16x32xf32, #tpu.memory_space<vmem>>, vector<1x32xf32>,
    %370 = vector.extract_strided_slice %367 {offsets = [1, 0], sizes = [1, 32], strides = [1, 1]} : vector<2x32xf32> to vector<1x32xf32>
    %c14 = arith.constant 14 : index
    %c0_78 = arith.constant 0 : index
    %371 = vector.load %arg22[%c14, %c0_78] : memref<16x32xf32, #tpu.memory_space<vmem>>, vector<1x32xf32>
    tpu.vector_store %arg22[%c14, %c0_78], %370 {strides = array<i32>} : memref<16x32xf32, #tpu.memory_space<vmem>>, vector<1x32xf32>,
    %372 = vector.extract_strided_slice %129 {offsets = [7, 0], sizes = [1, 128], strides = [1, 1]} : vector<16x128xf32> to vector<1x128xf32>
    %373 = vector.extract_strided_slice %129 {offsets = [15, 0], sizes = [1, 128], strides = [1, 1]} : vector<16x128xf32> to vector<1x128xf32>
    %374 = tpu.concatenate %372, %373 in 0 : vector<1x128xf32>, vector<1x128xf32> -> vector<2x128xf32>
    %cst_79 = arith.constant dense<0.000000e+00> : vector<2x128xf32>
    %375 = tpu.matmul %367, %125, %cst_79 {dimension_numbers = #tpu.dot_dimension_numbers<[1], [0], [0], [1], [0, 0, 1, 1], [], []>} : vector<2x32xf32>, vector<32x128xf32>, vector<2x128xf32> -> vector<2x128xf32>
    %376 = arith.addf %374, %375 : vector<2x128xf32>
    %377 = vector.extract_strided_slice %376 {offsets = [0, 0], sizes = [2, 32], strides = [1, 1]} : vector<2x128xf32> to vector<2x32xf32>
    %378 = arith.negf %377 : vector<2x32xf32>
    %379 = math.exp %378 : vector<2x32xf32>
    %cst_80 = arith.constant 1.000000e+00 : f32
    %380 = vector.broadcast %cst_80 : f32 to vector<2x32xf32>
    %381 = arith.addf %380, %379 : vector<2x32xf32>
    %382 = arith.divf %380, %381 : vector<2x32xf32>
    %383 = vector.extract_strided_slice %376 {offsets = [0, 32], sizes = [2, 32], strides = [1, 1]} : vector<2x128xf32> to vector<2x32xf32>
    %384 = arith.negf %383 : vector<2x32xf32>
    %385 = math.exp %384 : vector<2x32xf32>
    %cst_81 = arith.constant 1.000000e+00 : f32
    %386 = vector.broadcast %cst_81 : f32 to vector<2x32xf32>
    %387 = arith.addf %386, %385 : vector<2x32xf32>
    %388 = arith.divf %386, %387 : vector<2x32xf32>
    %389 = vector.extract_strided_slice %376 {offsets = [0, 64], sizes = [2, 32], strides = [1, 1]} : vector<2x128xf32> to vector<2x32xf32>
    %390 = math.tanh %389 : vector<2x32xf32>
    %391 = vector.extract_strided_slice %376 {offsets = [0, 96], sizes = [2, 32], strides = [1, 1]} : vector<2x128xf32> to vector<2x32xf32>
    %392 = arith.negf %391 : vector<2x32xf32>
    %393 = math.exp %392 : vector<2x32xf32>
    %cst_82 = arith.constant 1.000000e+00 : f32
    %394 = vector.broadcast %cst_82 : f32 to vector<2x32xf32>
    %395 = arith.addf %394, %393 : vector<2x32xf32>
    %396 = arith.divf %394, %395 : vector<2x32xf32>
    %397 = arith.mulf %388, %365 : vector<2x32xf32>
    %398 = arith.mulf %382, %390 : vector<2x32xf32>
    %399 = arith.addf %397, %398 : vector<2x32xf32>
    %400 = math.tanh %399 : vector<2x32xf32>
    %401 = arith.mulf %396, %400 : vector<2x32xf32>
    %402 = vector.extract_strided_slice %401 {offsets = [0, 0], sizes = [1, 32], strides = [1, 1]} : vector<2x32xf32> to vector<1x32xf32>
    %c7 = arith.constant 7 : index
    %c0_83 = arith.constant 0 : index
    %403 = vector.load %arg22[%c7, %c0_83] : memref<16x32xf32, #tpu.memory_space<vmem>>, vector<1x32xf32>
    tpu.vector_store %arg22[%c7, %c0_83], %402 {strides = array<i32>} : memref<16x32xf32, #tpu.memory_space<vmem>>, vector<1x32xf32>,
    %404 = vector.extract_strided_slice %401 {offsets = [1, 0], sizes = [1, 32], strides = [1, 1]} : vector<2x32xf32> to vector<1x32xf32>
    %c15 = arith.constant 15 : index
    %c0_84 = arith.constant 0 : index
    %405 = vector.load %arg22[%c15, %c0_84] : memref<16x32xf32, #tpu.memory_space<vmem>>, vector<1x32xf32>
    tpu.vector_store %arg22[%c15, %c0_84], %404 {strides = array<i32>} : memref<16x32xf32, #tpu.memory_space<vmem>>, vector<1x32xf32>,
    %c0_85 = arith.constant 0 : index
    %c0_86 = arith.constant 0 : index
    %c0_87 = arith.constant 0 : index
    %406 = vector.load %arg20[%c0_85, %c0_86, %c0_87] : memref<2x2x32xf32, #tpu.memory_space<vmem>>, vector<1x2x32xf32>
    %407 = vector.shape_cast %406 : vector<1x2x32xf32> to vector<2x32xf32>
    %408 = vector.shape_cast %401 : vector<2x32xf32> to vector<1x2x32xf32>
    tpu.vector_store %arg20[%c0_85, %c0_86, %c0_87], %408 {strides = array<i32>} : memref<2x2x32xf32, #tpu.memory_space<vmem>>, vector<1x2x32xf32>,
    %c0_88 = arith.constant 0 : index
    %c0_89 = arith.constant 0 : index
    %c0_90 = arith.constant 0 : index
    %409 = vector.load %arg21[%c0_88, %c0_89, %c0_90] : memref<2x2x32xf32, #tpu.memory_space<vmem>>, vector<1x2x32xf32>
    %410 = vector.shape_cast %409 : vector<1x2x32xf32> to vector<2x32xf32>
    %411 = vector.shape_cast %399 : vector<2x32xf32> to vector<1x2x32xf32>
    tpu.vector_store %arg21[%c0_88, %c0_89, %c0_90], %411 {strides = array<i32>} : memref<2x2x32xf32, #tpu.memory_space<vmem>>, vector<1x2x32xf32>,
    %c0_91 = arith.constant 0 : index
    %c0_92 = arith.constant 0 : index
    %412 = vector.load %arg22[%c0_91, %c0_92] : memref<16x32xf32, #tpu.memory_space<vmem>>, vector<16x32xf32>
    %c0_93 = arith.constant 0 : index
    %c0_94 = arith.constant 0 : index
    %413 = vector.load %arg12[%c0_93, %c0_94] : memref<32x128xf32, #tpu.memory_space<vmem>>, vector<32x128xf32>
    %c0_95 = arith.constant 0 : index
    %c0_96 = arith.constant 0 : index
    %414 = vector.load %arg13[%c0_95, %c0_96] : memref<32x128xf32, #tpu.memory_space<vmem>>, vector<32x128xf32>
    %c0_97 = arith.constant 0 : index
    %c0_98 = arith.constant 0 : index
    %415 = vector.load %arg14[%c0_97, %c0_98] : memref<1x128xf32, #tpu.memory_space<vmem>>, vector<1x128xf32>
    %cst_99 = arith.constant dense<0.000000e+00> : vector<16x128xf32>
    %416 = tpu.matmul %412, %413, %cst_99 {dimension_numbers = #tpu.dot_dimension_numbers<[1], [0], [0], [1], [0, 0, 1, 1], [], []>} : vector<16x32xf32>, vector<32x128xf32>, vector<16x128xf32> -> vector<16x128xf32>
    %417 = vector.broadcast %415 : vector<1x128xf32> to vector<16x128xf32>
    %418 = arith.addf %416, %417 : vector<16x128xf32>
    %c1_100 = arith.constant 1 : index
    %c0_101 = arith.constant 0 : index
    %c0_102 = arith.constant 0 : index
    %419 = vector.load %arg15[%c1_100, %c0_101, %c0_102] : memref<2x2x32xf32, #tpu.memory_space<vmem>>, vector<1x2x32xf32>
    %420 = vector.shape_cast %419 : vector<1x2x32xf32> to vector<2x32xf32>
    %c1_103 = arith.constant 1 : index
    %c0_104 = arith.constant 0 : index
    %c0_105 = arith.constant 0 : index
    %421 = vector.load %arg16[%c1_103, %c0_104, %c0_105] : memref<2x2x32xf32, #tpu.memory_space<vmem>>, vector<1x2x32xf32>
    %422 = vector.shape_cast %421 : vector<1x2x32xf32> to vector<2x32xf32>
    %423 = vector.extract_strided_slice %418 {offsets = [0, 0], sizes = [1, 128], strides = [1, 1]} : vector<16x128xf32> to vector<1x128xf32>
    %424 = vector.extract_strided_slice %418 {offsets = [8, 0], sizes = [1, 128], strides = [1, 1]} : vector<16x128xf32> to vector<1x128xf32>
    %425 = tpu.concatenate %423, %424 in 0 : vector<1x128xf32>, vector<1x128xf32> -> vector<2x128xf32>
    %cst_106 = arith.constant dense<0.000000e+00> : vector<2x128xf32>
    %426 = tpu.matmul %420, %414, %cst_106 {dimension_numbers = #tpu.dot_dimension_numbers<[1], [0], [0], [1], [0, 0, 1, 1], [], []>} : vector<2x32xf32>, vector<32x128xf32>, vector<2x128xf32> -> vector<2x128xf32>
    %427 = arith.addf %425, %426 : vector<2x128xf32>
    %428 = vector.extract_strided_slice %427 {offsets = [0, 0], sizes = [2, 32], strides = [1, 1]} : vector<2x128xf32> to vector<2x32xf32>
    %429 = arith.negf %428 : vector<2x32xf32>
    %430 = math.exp %429 : vector<2x32xf32>
    %cst_107 = arith.constant 1.000000e+00 : f32
    %431 = vector.broadcast %cst_107 : f32 to vector<2x32xf32>
    %432 = arith.addf %431, %430 : vector<2x32xf32>
    %433 = arith.divf %431, %432 : vector<2x32xf32>
    %434 = vector.extract_strided_slice %427 {offsets = [0, 32], sizes = [2, 32], strides = [1, 1]} : vector<2x128xf32> to vector<2x32xf32>
    %435 = arith.negf %434 : vector<2x32xf32>
    %436 = math.exp %435 : vector<2x32xf32>
    %cst_108 = arith.constant 1.000000e+00 : f32
    %437 = vector.broadcast %cst_108 : f32 to vector<2x32xf32>
    %438 = arith.addf %437, %436 : vector<2x32xf32>
    %439 = arith.divf %437, %438 : vector<2x32xf32>
    %440 = vector.extract_strided_slice %427 {offsets = [0, 64], sizes = [2, 32], strides = [1, 1]} : vector<2x128xf32> to vector<2x32xf32>
    %441 = math.tanh %440 : vector<2x32xf32>
    %442 = vector.extract_strided_slice %427 {offsets = [0, 96], sizes = [2, 32], strides = [1, 1]} : vector<2x128xf32> to vector<2x32xf32>
    %443 = arith.negf %442 : vector<2x32xf32>
    %444 = math.exp %443 : vector<2x32xf32>
    %cst_109 = arith.constant 1.000000e+00 : f32
    %445 = vector.broadcast %cst_109 : f32 to vector<2x32xf32>
    %446 = arith.addf %445, %444 : vector<2x32xf32>
    %447 = arith.divf %445, %446 : vector<2x32xf32>
    %448 = arith.mulf %439, %422 : vector<2x32xf32>
    %449 = arith.mulf %433, %441 : vector<2x32xf32>
    %450 = arith.addf %448, %449 : vector<2x32xf32>
    %451 = math.tanh %450 : vector<2x32xf32>
    %452 = arith.mulf %447, %451 : vector<2x32xf32>
    %453 = vector.extract_strided_slice %452 {offsets = [0, 0], sizes = [1, 32], strides = [1, 1]} : vector<2x32xf32> to vector<1x32xf32>
    %c0_110 = arith.constant 0 : index
    %c0_111 = arith.constant 0 : index
    %454 = vector.load %arg22[%c0_110, %c0_111] : memref<16x32xf32, #tpu.memory_space<vmem>>, vector<1x32xf32>
    tpu.vector_store %arg22[%c0_110, %c0_111], %453 {strides = array<i32>} : memref<16x32xf32, #tpu.memory_space<vmem>>, vector<1x32xf32>,
    %455 = vector.extract_strided_slice %452 {offsets = [1, 0], sizes = [1, 32], strides = [1, 1]} : vector<2x32xf32> to vector<1x32xf32>
    %c8_112 = arith.constant 8 : index
    %c0_113 = arith.constant 0 : index
    %456 = vector.load %arg22[%c8_112, %c0_113] : memref<16x32xf32, #tpu.memory_space<vmem>>, vector<1x32xf32>
    tpu.vector_store %arg22[%c8_112, %c0_113], %455 {strides = array<i32>} : memref<16x32xf32, #tpu.memory_space<vmem>>, vector<1x32xf32>,
    %457 = vector.extract_strided_slice %418 {offsets = [1, 0], sizes = [1, 128], strides = [1, 1]} : vector<16x128xf32> to vector<1x128xf32>
    %458 = vector.extract_strided_slice %418 {offsets = [9, 0], sizes = [1, 128], strides = [1, 1]} : vector<16x128xf32> to vector<1x128xf32>
    %459 = tpu.concatenate %457, %458 in 0 : vector<1x128xf32>, vector<1x128xf32> -> vector<2x128xf32>
    %cst_114 = arith.constant dense<0.000000e+00> : vector<2x128xf32>
    %460 = tpu.matmul %452, %414, %cst_114 {dimension_numbers = #tpu.dot_dimension_numbers<[1], [0], [0], [1], [0, 0, 1, 1], [], []>} : vector<2x32xf32>, vector<32x128xf32>, vector<2x128xf32> -> vector<2x128xf32>
    %461 = arith.addf %459, %460 : vector<2x128xf32>
    %462 = vector.extract_strided_slice %461 {offsets = [0, 0], sizes = [2, 32], strides = [1, 1]} : vector<2x128xf32> to vector<2x32xf32>
    %463 = arith.negf %462 : vector<2x32xf32>
    %464 = math.exp %463 : vector<2x32xf32>
    %cst_115 = arith.constant 1.000000e+00 : f32
    %465 = vector.broadcast %cst_115 : f32 to vector<2x32xf32>
    %466 = arith.addf %465, %464 : vector<2x32xf32>
    %467 = arith.divf %465, %466 : vector<2x32xf32>
    %468 = vector.extract_strided_slice %461 {offsets = [0, 32], sizes = [2, 32], strides = [1, 1]} : vector<2x128xf32> to vector<2x32xf32>
    %469 = arith.negf %468 : vector<2x32xf32>
    %470 = math.exp %469 : vector<2x32xf32>
    %cst_116 = arith.constant 1.000000e+00 : f32
    %471 = vector.broadcast %cst_116 : f32 to vector<2x32xf32>
    %472 = arith.addf %471, %470 : vector<2x32xf32>
    %473 = arith.divf %471, %472 : vector<2x32xf32>
    %474 = vector.extract_strided_slice %461 {offsets = [0, 64], sizes = [2, 32], strides = [1, 1]} : vector<2x128xf32> to vector<2x32xf32>
    %475 = math.tanh %474 : vector<2x32xf32>
    %476 = vector.extract_strided_slice %461 {offsets = [0, 96], sizes = [2, 32], strides = [1, 1]} : vector<2x128xf32> to vector<2x32xf32>
    %477 = arith.negf %476 : vector<2x32xf32>
    %478 = math.exp %477 : vector<2x32xf32>
    %cst_117 = arith.constant 1.000000e+00 : f32
    %479 = vector.broadcast %cst_117 : f32 to vector<2x32xf32>
    %480 = arith.addf %479, %478 : vector<2x32xf32>
    %481 = arith.divf %479, %480 : vector<2x32xf32>
    %482 = arith.mulf %473, %450 : vector<2x32xf32>
    %483 = arith.mulf %467, %475 : vector<2x32xf32>
    %484 = arith.addf %482, %483 : vector<2x32xf32>
    %485 = math.tanh %484 : vector<2x32xf32>
    %486 = arith.mulf %481, %485 : vector<2x32xf32>
    %487 = vector.extract_strided_slice %486 {offsets = [0, 0], sizes = [1, 32], strides = [1, 1]} : vector<2x32xf32> to vector<1x32xf32>
    %c1_118 = arith.constant 1 : index
    %c0_119 = arith.constant 0 : index
    %488 = vector.load %arg22[%c1_118, %c0_119] : memref<16x32xf32, #tpu.memory_space<vmem>>, vector<1x32xf32>
    tpu.vector_store %arg22[%c1_118, %c0_119], %487 {strides = array<i32>} : memref<16x32xf32, #tpu.memory_space<vmem>>, vector<1x32xf32>,
    %489 = vector.extract_strided_slice %486 {offsets = [1, 0], sizes = [1, 32], strides = [1, 1]} : vector<2x32xf32> to vector<1x32xf32>
    %c9_120 = arith.constant 9 : index
    %c0_121 = arith.constant 0 : index
    %490 = vector.load %arg22[%c9_120, %c0_121] : memref<16x32xf32, #tpu.memory_space<vmem>>, vector<1x32xf32>
    tpu.vector_store %arg22[%c9_120, %c0_121], %489 {strides = array<i32>} : memref<16x32xf32, #tpu.memory_space<vmem>>, vector<1x32xf32>,
    %491 = vector.extract_strided_slice %418 {offsets = [2, 0], sizes = [1, 128], strides = [1, 1]} : vector<16x128xf32> to vector<1x128xf32>
    %492 = vector.extract_strided_slice %418 {offsets = [10, 0], sizes = [1, 128], strides = [1, 1]} : vector<16x128xf32> to vector<1x128xf32>
    %493 = tpu.concatenate %491, %492 in 0 : vector<1x128xf32>, vector<1x128xf32> -> vector<2x128xf32>
    %cst_122 = arith.constant dense<0.000000e+00> : vector<2x128xf32>
    %494 = tpu.matmul %486, %414, %cst_122 {dimension_numbers = #tpu.dot_dimension_numbers<[1], [0], [0], [1], [0, 0, 1, 1], [], []>} : vector<2x32xf32>, vector<32x128xf32>, vector<2x128xf32> -> vector<2x128xf32>
    %495 = arith.addf %493, %494 : vector<2x128xf32>
    %496 = vector.extract_strided_slice %495 {offsets = [0, 0], sizes = [2, 32], strides = [1, 1]} : vector<2x128xf32> to vector<2x32xf32>
    %497 = arith.negf %496 : vector<2x32xf32>
    %498 = math.exp %497 : vector<2x32xf32>
    %cst_123 = arith.constant 1.000000e+00 : f32
    %499 = vector.broadcast %cst_123 : f32 to vector<2x32xf32>
    %500 = arith.addf %499, %498 : vector<2x32xf32>
    %501 = arith.divf %499, %500 : vector<2x32xf32>
    %502 = vector.extract_strided_slice %495 {offsets = [0, 32], sizes = [2, 32], strides = [1, 1]} : vector<2x128xf32> to vector<2x32xf32>
    %503 = arith.negf %502 : vector<2x32xf32>
    %504 = math.exp %503 : vector<2x32xf32>
    %cst_124 = arith.constant 1.000000e+00 : f32
    %505 = vector.broadcast %cst_124 : f32 to vector<2x32xf32>
    %506 = arith.addf %505, %504 : vector<2x32xf32>
    %507 = arith.divf %505, %506 : vector<2x32xf32>
    %508 = vector.extract_strided_slice %495 {offsets = [0, 64], sizes = [2, 32], strides = [1, 1]} : vector<2x128xf32> to vector<2x32xf32>
    %509 = math.tanh %508 : vector<2x32xf32>
    %510 = vector.extract_strided_slice %495 {offsets = [0, 96], sizes = [2, 32], strides = [1, 1]} : vector<2x128xf32> to vector<2x32xf32>
    %511 = arith.negf %510 : vector<2x32xf32>
    %512 = math.exp %511 : vector<2x32xf32>
    %cst_125 = arith.constant 1.000000e+00 : f32
    %513 = vector.broadcast %cst_125 : f32 to vector<2x32xf32>
    %514 = arith.addf %513, %512 : vector<2x32xf32>
    %515 = arith.divf %513, %514 : vector<2x32xf32>
    %516 = arith.mulf %507, %484 : vector<2x32xf32>
    %517 = arith.mulf %501, %509 : vector<2x32xf32>
    %518 = arith.addf %516, %517 : vector<2x32xf32>
    %519 = math.tanh %518 : vector<2x32xf32>
    %520 = arith.mulf %515, %519 : vector<2x32xf32>
    %521 = vector.extract_strided_slice %520 {offsets = [0, 0], sizes = [1, 32], strides = [1, 1]} : vector<2x32xf32> to vector<1x32xf32>
    %c2_126 = arith.constant 2 : index
    %c0_127 = arith.constant 0 : index
    %522 = vector.load %arg22[%c2_126, %c0_127] : memref<16x32xf32, #tpu.memory_space<vmem>>, vector<1x32xf32>
    tpu.vector_store %arg22[%c2_126, %c0_127], %521 {strides = array<i32>} : memref<16x32xf32, #tpu.memory_space<vmem>>, vector<1x32xf32>,
    %523 = vector.extract_strided_slice %520 {offsets = [1, 0], sizes = [1, 32], strides = [1, 1]} : vector<2x32xf32> to vector<1x32xf32>
    %c10_128 = arith.constant 10 : index
    %c0_129 = arith.constant 0 : index
    %524 = vector.load %arg22[%c10_128, %c0_129] : memref<16x32xf32, #tpu.memory_space<vmem>>, vector<1x32xf32>
    tpu.vector_store %arg22[%c10_128, %c0_129], %523 {strides = array<i32>} : memref<16x32xf32, #tpu.memory_space<vmem>>, vector<1x32xf32>,
    %525 = vector.extract_strided_slice %418 {offsets = [3, 0], sizes = [1, 128], strides = [1, 1]} : vector<16x128xf32> to vector<1x128xf32>
    %526 = vector.extract_strided_slice %418 {offsets = [11, 0], sizes = [1, 128], strides = [1, 1]} : vector<16x128xf32> to vector<1x128xf32>
    %527 = tpu.concatenate %525, %526 in 0 : vector<1x128xf32>, vector<1x128xf32> -> vector<2x128xf32>
    %cst_130 = arith.constant dense<0.000000e+00> : vector<2x128xf32>
    %528 = tpu.matmul %520, %414, %cst_130 {dimension_numbers = #tpu.dot_dimension_numbers<[1], [0], [0], [1], [0, 0, 1, 1], [], []>} : vector<2x32xf32>, vector<32x128xf32>, vector<2x128xf32> -> vector<2x128xf32>
    %529 = arith.addf %527, %528 : vector<2x128xf32>
    %530 = vector.extract_strided_slice %529 {offsets = [0, 0], sizes = [2, 32], strides = [1, 1]} : vector<2x128xf32> to vector<2x32xf32>
    %531 = arith.negf %530 : vector<2x32xf32>
    %532 = math.exp %531 : vector<2x32xf32>
    %cst_131 = arith.constant 1.000000e+00 : f32
    %533 = vector.broadcast %cst_131 : f32 to vector<2x32xf32>
    %534 = arith.addf %533, %532 : vector<2x32xf32>
    %535 = arith.divf %533, %534 : vector<2x32xf32>
    %536 = vector.extract_strided_slice %529 {offsets = [0, 32], sizes = [2, 32], strides = [1, 1]} : vector<2x128xf32> to vector<2x32xf32>
    %537 = arith.negf %536 : vector<2x32xf32>
    %538 = math.exp %537 : vector<2x32xf32>
    %cst_132 = arith.constant 1.000000e+00 : f32
    %539 = vector.broadcast %cst_132 : f32 to vector<2x32xf32>
    %540 = arith.addf %539, %538 : vector<2x32xf32>
    %541 = arith.divf %539, %540 : vector<2x32xf32>
    %542 = vector.extract_strided_slice %529 {offsets = [0, 64], sizes = [2, 32], strides = [1, 1]} : vector<2x128xf32> to vector<2x32xf32>
    %543 = math.tanh %542 : vector<2x32xf32>
    %544 = vector.extract_strided_slice %529 {offsets = [0, 96], sizes = [2, 32], strides = [1, 1]} : vector<2x128xf32> to vector<2x32xf32>
    %545 = arith.negf %544 : vector<2x32xf32>
    %546 = math.exp %545 : vector<2x32xf32>
    %cst_133 = arith.constant 1.000000e+00 : f32
    %547 = vector.broadcast %cst_133 : f32 to vector<2x32xf32>
    %548 = arith.addf %547, %546 : vector<2x32xf32>
    %549 = arith.divf %547, %548 : vector<2x32xf32>
    %550 = arith.mulf %541, %518 : vector<2x32xf32>
    %551 = arith.mulf %535, %543 : vector<2x32xf32>
    %552 = arith.addf %550, %551 : vector<2x32xf32>
    %553 = math.tanh %552 : vector<2x32xf32>
    %554 = arith.mulf %549, %553 : vector<2x32xf32>
    %555 = vector.extract_strided_slice %554 {offsets = [0, 0], sizes = [1, 32], strides = [1, 1]} : vector<2x32xf32> to vector<1x32xf32>
    %c3_134 = arith.constant 3 : index
    %c0_135 = arith.constant 0 : index
    %556 = vector.load %arg22[%c3_134, %c0_135] : memref<16x32xf32, #tpu.memory_space<vmem>>, vector<1x32xf32>
    tpu.vector_store %arg22[%c3_134, %c0_135], %555 {strides = array<i32>} : memref<16x32xf32, #tpu.memory_space<vmem>>, vector<1x32xf32>,
    %557 = vector.extract_strided_slice %554 {offsets = [1, 0], sizes = [1, 32], strides = [1, 1]} : vector<2x32xf32> to vector<1x32xf32>
    %c11_136 = arith.constant 11 : index
    %c0_137 = arith.constant 0 : index
    %558 = vector.load %arg22[%c11_136, %c0_137] : memref<16x32xf32, #tpu.memory_space<vmem>>, vector<1x32xf32>
    tpu.vector_store %arg22[%c11_136, %c0_137], %557 {strides = array<i32>} : memref<16x32xf32, #tpu.memory_space<vmem>>, vector<1x32xf32>,
    %559 = vector.extract_strided_slice %418 {offsets = [4, 0], sizes = [1, 128], strides = [1, 1]} : vector<16x128xf32> to vector<1x128xf32>
    %560 = vector.extract_strided_slice %418 {offsets = [12, 0], sizes = [1, 128], strides = [1, 1]} : vector<16x128xf32> to vector<1x128xf32>
    %561 = tpu.concatenate %559, %560 in 0 : vector<1x128xf32>, vector<1x128xf32> -> vector<2x128xf32>
    %cst_138 = arith.constant dense<0.000000e+00> : vector<2x128xf32>
    %562 = tpu.matmul %554, %414, %cst_138 {dimension_numbers = #tpu.dot_dimension_numbers<[1], [0], [0], [1], [0, 0, 1, 1], [], []>} : vector<2x32xf32>, vector<32x128xf32>, vector<2x128xf32> -> vector<2x128xf32>
    %563 = arith.addf %561, %562 : vector<2x128xf32>
    %564 = vector.extract_strided_slice %563 {offsets = [0, 0], sizes = [2, 32], strides = [1, 1]} : vector<2x128xf32> to vector<2x32xf32>
    %565 = arith.negf %564 : vector<2x32xf32>
    %566 = math.exp %565 : vector<2x32xf32>
    %cst_139 = arith.constant 1.000000e+00 : f32
    %567 = vector.broadcast %cst_139 : f32 to vector<2x32xf32>
    %568 = arith.addf %567, %566 : vector<2x32xf32>
    %569 = arith.divf %567, %568 : vector<2x32xf32>
    %570 = vector.extract_strided_slice %563 {offsets = [0, 32], sizes = [2, 32], strides = [1, 1]} : vector<2x128xf32> to vector<2x32xf32>
    %571 = arith.negf %570 : vector<2x32xf32>
    %572 = math.exp %571 : vector<2x32xf32>
    %cst_140 = arith.constant 1.000000e+00 : f32
    %573 = vector.broadcast %cst_140 : f32 to vector<2x32xf32>
    %574 = arith.addf %573, %572 : vector<2x32xf32>
    %575 = arith.divf %573, %574 : vector<2x32xf32>
    %576 = vector.extract_strided_slice %563 {offsets = [0, 64], sizes = [2, 32], strides = [1, 1]} : vector<2x128xf32> to vector<2x32xf32>
    %577 = math.tanh %576 : vector<2x32xf32>
    %578 = vector.extract_strided_slice %563 {offsets = [0, 96], sizes = [2, 32], strides = [1, 1]} : vector<2x128xf32> to vector<2x32xf32>
    %579 = arith.negf %578 : vector<2x32xf32>
    %580 = math.exp %579 : vector<2x32xf32>
    %cst_141 = arith.constant 1.000000e+00 : f32
    %581 = vector.broadcast %cst_141 : f32 to vector<2x32xf32>
    %582 = arith.addf %581, %580 : vector<2x32xf32>
    %583 = arith.divf %581, %582 : vector<2x32xf32>
    %584 = arith.mulf %575, %552 : vector<2x32xf32>
    %585 = arith.mulf %569, %577 : vector<2x32xf32>
    %586 = arith.addf %584, %585 : vector<2x32xf32>
    %587 = math.tanh %586 : vector<2x32xf32>
    %588 = arith.mulf %583, %587 : vector<2x32xf32>
    %589 = vector.extract_strided_slice %588 {offsets = [0, 0], sizes = [1, 32], strides = [1, 1]} : vector<2x32xf32> to vector<1x32xf32>
    %c4_142 = arith.constant 4 : index
    %c0_143 = arith.constant 0 : index
    %590 = vector.load %arg22[%c4_142, %c0_143] : memref<16x32xf32, #tpu.memory_space<vmem>>, vector<1x32xf32>
    tpu.vector_store %arg22[%c4_142, %c0_143], %589 {strides = array<i32>} : memref<16x32xf32, #tpu.memory_space<vmem>>, vector<1x32xf32>,
    %591 = vector.extract_strided_slice %588 {offsets = [1, 0], sizes = [1, 32], strides = [1, 1]} : vector<2x32xf32> to vector<1x32xf32>
    %c12_144 = arith.constant 12 : index
    %c0_145 = arith.constant 0 : index
    %592 = vector.load %arg22[%c12_144, %c0_145] : memref<16x32xf32, #tpu.memory_space<vmem>>, vector<1x32xf32>
    tpu.vector_store %arg22[%c12_144, %c0_145], %591 {strides = array<i32>} : memref<16x32xf32, #tpu.memory_space<vmem>>, vector<1x32xf32>,
    %593 = vector.extract_strided_slice %418 {offsets = [5, 0], sizes = [1, 128], strides = [1, 1]} : vector<16x128xf32> to vector<1x128xf32>
    %594 = vector.extract_strided_slice %418 {offsets = [13, 0], sizes = [1, 128], strides = [1, 1]} : vector<16x128xf32> to vector<1x128xf32>
    %595 = tpu.concatenate %593, %594 in 0 : vector<1x128xf32>, vector<1x128xf32> -> vector<2x128xf32>
    %cst_146 = arith.constant dense<0.000000e+00> : vector<2x128xf32>
    %596 = tpu.matmul %588, %414, %cst_146 {dimension_numbers = #tpu.dot_dimension_numbers<[1], [0], [0], [1], [0, 0, 1, 1], [], []>} : vector<2x32xf32>, vector<32x128xf32>, vector<2x128xf32> -> vector<2x128xf32>
    %597 = arith.addf %595, %596 : vector<2x128xf32>
    %598 = vector.extract_strided_slice %597 {offsets = [0, 0], sizes = [2, 32], strides = [1, 1]} : vector<2x128xf32> to vector<2x32xf32>
    %599 = arith.negf %598 : vector<2x32xf32>
    %600 = math.exp %599 : vector<2x32xf32>
    %cst_147 = arith.constant 1.000000e+00 : f32
    %601 = vector.broadcast %cst_147 : f32 to vector<2x32xf32>
    %602 = arith.addf %601, %600 : vector<2x32xf32>
    %603 = arith.divf %601, %602 : vector<2x32xf32>
    %604 = vector.extract_strided_slice %597 {offsets = [0, 32], sizes = [2, 32], strides = [1, 1]} : vector<2x128xf32> to vector<2x32xf32>
    %605 = arith.negf %604 : vector<2x32xf32>
    %606 = math.exp %605 : vector<2x32xf32>
    %cst_148 = arith.constant 1.000000e+00 : f32
    %607 = vector.broadcast %cst_148 : f32 to vector<2x32xf32>
    %608 = arith.addf %607, %606 : vector<2x32xf32>
    %609 = arith.divf %607, %608 : vector<2x32xf32>
    %610 = vector.extract_strided_slice %597 {offsets = [0, 64], sizes = [2, 32], strides = [1, 1]} : vector<2x128xf32> to vector<2x32xf32>
    %611 = math.tanh %610 : vector<2x32xf32>
    %612 = vector.extract_strided_slice %597 {offsets = [0, 96], sizes = [2, 32], strides = [1, 1]} : vector<2x128xf32> to vector<2x32xf32>
    %613 = arith.negf %612 : vector<2x32xf32>
    %614 = math.exp %613 : vector<2x32xf32>
    %cst_149 = arith.constant 1.000000e+00 : f32
    %615 = vector.broadcast %cst_149 : f32 to vector<2x32xf32>
    %616 = arith.addf %615, %614 : vector<2x32xf32>
    %617 = arith.divf %615, %616 : vector<2x32xf32>
    %618 = arith.mulf %609, %586 : vector<2x32xf32>
    %619 = arith.mulf %603, %611 : vector<2x32xf32>
    %620 = arith.addf %618, %619 : vector<2x32xf32>
    %621 = math.tanh %620 : vector<2x32xf32>
    %622 = arith.mulf %617, %621 : vector<2x32xf32>
    %623 = vector.extract_strided_slice %622 {offsets = [0, 0], sizes = [1, 32], strides = [1, 1]} : vector<2x32xf32> to vector<1x32xf32>
    %c5_150 = arith.constant 5 : index
    %c0_151 = arith.constant 0 : index
    %624 = vector.load %arg22[%c5_150, %c0_151] : memref<16x32xf32, #tpu.memory_space<vmem>>, vector<1x32xf32>
    tpu.vector_store %arg22[%c5_150, %c0_151], %623 {strides = array<i32>} : memref<16x32xf32, #tpu.memory_space<vmem>>, vector<1x32xf32>,
    %625 = vector.extract_strided_slice %622 {offsets = [1, 0], sizes = [1, 32], strides = [1, 1]} : vector<2x32xf32> to vector<1x32xf32>
    %c13_152 = arith.constant 13 : index
    %c0_153 = arith.constant 0 : index
    %626 = vector.load %arg22[%c13_152, %c0_153] : memref<16x32xf32, #tpu.memory_space<vmem>>, vector<1x32xf32>
    tpu.vector_store %arg22[%c13_152, %c0_153], %625 {strides = array<i32>} : memref<16x32xf32, #tpu.memory_space<vmem>>, vector<1x32xf32>,
    %627 = vector.extract_strided_slice %418 {offsets = [6, 0], sizes = [1, 128], strides = [1, 1]} : vector<16x128xf32> to vector<1x128xf32>
    %628 = vector.extract_strided_slice %418 {offsets = [14, 0], sizes = [1, 128], strides = [1, 1]} : vector<16x128xf32> to vector<1x128xf32>
    %629 = tpu.concatenate %627, %628 in 0 : vector<1x128xf32>, vector<1x128xf32> -> vector<2x128xf32>
    %cst_154 = arith.constant dense<0.000000e+00> : vector<2x128xf32>
    %630 = tpu.matmul %622, %414, %cst_154 {dimension_numbers = #tpu.dot_dimension_numbers<[1], [0], [0], [1], [0, 0, 1, 1], [], []>} : vector<2x32xf32>, vector<32x128xf32>, vector<2x128xf32> -> vector<2x128xf32>
    %631 = arith.addf %629, %630 : vector<2x128xf32>
    %632 = vector.extract_strided_slice %631 {offsets = [0, 0], sizes = [2, 32], strides = [1, 1]} : vector<2x128xf32> to vector<2x32xf32>
    %633 = arith.negf %632 : vector<2x32xf32>
    %634 = math.exp %633 : vector<2x32xf32>
    %cst_155 = arith.constant 1.000000e+00 : f32
    %635 = vector.broadcast %cst_155 : f32 to vector<2x32xf32>
    %636 = arith.addf %635, %634 : vector<2x32xf32>
    %637 = arith.divf %635, %636 : vector<2x32xf32>
    %638 = vector.extract_strided_slice %631 {offsets = [0, 32], sizes = [2, 32], strides = [1, 1]} : vector<2x128xf32> to vector<2x32xf32>
    %639 = arith.negf %638 : vector<2x32xf32>
    %640 = math.exp %639 : vector<2x32xf32>
    %cst_156 = arith.constant 1.000000e+00 : f32
    %641 = vector.broadcast %cst_156 : f32 to vector<2x32xf32>
    %642 = arith.addf %641, %640 : vector<2x32xf32>
    %643 = arith.divf %641, %642 : vector<2x32xf32>
    %644 = vector.extract_strided_slice %631 {offsets = [0, 64], sizes = [2, 32], strides = [1, 1]} : vector<2x128xf32> to vector<2x32xf32>
    %645 = math.tanh %644 : vector<2x32xf32>
    %646 = vector.extract_strided_slice %631 {offsets = [0, 96], sizes = [2, 32], strides = [1, 1]} : vector<2x128xf32> to vector<2x32xf32>
    %647 = arith.negf %646 : vector<2x32xf32>
    %648 = math.exp %647 : vector<2x32xf32>
    %cst_157 = arith.constant 1.000000e+00 : f32
    %649 = vector.broadcast %cst_157 : f32 to vector<2x32xf32>
    %650 = arith.addf %649, %648 : vector<2x32xf32>
    %651 = arith.divf %649, %650 : vector<2x32xf32>
    %652 = arith.mulf %643, %620 : vector<2x32xf32>
    %653 = arith.mulf %637, %645 : vector<2x32xf32>
    %654 = arith.addf %652, %653 : vector<2x32xf32>
    %655 = math.tanh %654 : vector<2x32xf32>
    %656 = arith.mulf %651, %655 : vector<2x32xf32>
    %657 = vector.extract_strided_slice %656 {offsets = [0, 0], sizes = [1, 32], strides = [1, 1]} : vector<2x32xf32> to vector<1x32xf32>
    %c6_158 = arith.constant 6 : index
    %c0_159 = arith.constant 0 : index
    %658 = vector.load %arg22[%c6_158, %c0_159] : memref<16x32xf32, #tpu.memory_space<vmem>>, vector<1x32xf32>
    tpu.vector_store %arg22[%c6_158, %c0_159], %657 {strides = array<i32>} : memref<16x32xf32, #tpu.memory_space<vmem>>, vector<1x32xf32>,
    %659 = vector.extract_strided_slice %656 {offsets = [1, 0], sizes = [1, 32], strides = [1, 1]} : vector<2x32xf32> to vector<1x32xf32>
    %c14_160 = arith.constant 14 : index
    %c0_161 = arith.constant 0 : index
    %660 = vector.load %arg22[%c14_160, %c0_161] : memref<16x32xf32, #tpu.memory_space<vmem>>, vector<1x32xf32>
    tpu.vector_store %arg22[%c14_160, %c0_161], %659 {strides = array<i32>} : memref<16x32xf32, #tpu.memory_space<vmem>>, vector<1x32xf32>,
    %661 = vector.extract_strided_slice %418 {offsets = [7, 0], sizes = [1, 128], strides = [1, 1]} : vector<16x128xf32> to vector<1x128xf32>
    %662 = vector.extract_strided_slice %418 {offsets = [15, 0], sizes = [1, 128], strides = [1, 1]} : vector<16x128xf32> to vector<1x128xf32>
    %663 = tpu.concatenate %661, %662 in 0 : vector<1x128xf32>, vector<1x128xf32> -> vector<2x128xf32>
    %cst_162 = arith.constant dense<0.000000e+00> : vector<2x128xf32>
    %664 = tpu.matmul %656, %414, %cst_162 {dimension_numbers = #tpu.dot_dimension_numbers<[1], [0], [0], [1], [0, 0, 1, 1], [], []>} : vector<2x32xf32>, vector<32x128xf32>, vector<2x128xf32> -> vector<2x128xf32>
    %665 = arith.addf %663, %664 : vector<2x128xf32>
    %666 = vector.extract_strided_slice %665 {offsets = [0, 0], sizes = [2, 32], strides = [1, 1]} : vector<2x128xf32> to vector<2x32xf32>
    %667 = arith.negf %666 : vector<2x32xf32>
    %668 = math.exp %667 : vector<2x32xf32>
    %cst_163 = arith.constant 1.000000e+00 : f32
    %669 = vector.broadcast %cst_163 : f32 to vector<2x32xf32>
    %670 = arith.addf %669, %668 : vector<2x32xf32>
    %671 = arith.divf %669, %670 : vector<2x32xf32>
    %672 = vector.extract_strided_slice %665 {offsets = [0, 32], sizes = [2, 32], strides = [1, 1]} : vector<2x128xf32> to vector<2x32xf32>
    %673 = arith.negf %672 : vector<2x32xf32>
    %674 = math.exp %673 : vector<2x32xf32>
    %cst_164 = arith.constant 1.000000e+00 : f32
    %675 = vector.broadcast %cst_164 : f32 to vector<2x32xf32>
    %676 = arith.addf %675, %674 : vector<2x32xf32>
    %677 = arith.divf %675, %676 : vector<2x32xf32>
    %678 = vector.extract_strided_slice %665 {offsets = [0, 64], sizes = [2, 32], strides = [1, 1]} : vector<2x128xf32> to vector<2x32xf32>
    %679 = math.tanh %678 : vector<2x32xf32>
    %680 = vector.extract_strided_slice %665 {offsets = [0, 96], sizes = [2, 32], strides = [1, 1]} : vector<2x128xf32> to vector<2x32xf32>
    %681 = arith.negf %680 : vector<2x32xf32>
    %682 = math.exp %681 : vector<2x32xf32>
    %cst_165 = arith.constant 1.000000e+00 : f32
    %683 = vector.broadcast %cst_165 : f32 to vector<2x32xf32>
    %684 = arith.addf %683, %682 : vector<2x32xf32>
    %685 = arith.divf %683, %684 : vector<2x32xf32>
    %686 = arith.mulf %677, %654 : vector<2x32xf32>
    %687 = arith.mulf %671, %679 : vector<2x32xf32>
    %688 = arith.addf %686, %687 : vector<2x32xf32>
    %689 = math.tanh %688 : vector<2x32xf32>
    %690 = arith.mulf %685, %689 : vector<2x32xf32>
    %691 = vector.extract_strided_slice %690 {offsets = [0, 0], sizes = [1, 32], strides = [1, 1]} : vector<2x32xf32> to vector<1x32xf32>
    %c7_166 = arith.constant 7 : index
    %c0_167 = arith.constant 0 : index
    %692 = vector.load %arg22[%c7_166, %c0_167] : memref<16x32xf32, #tpu.memory_space<vmem>>, vector<1x32xf32>
    tpu.vector_store %arg22[%c7_166, %c0_167], %691 {strides = array<i32>} : memref<16x32xf32, #tpu.memory_space<vmem>>, vector<1x32xf32>,
    %693 = vector.extract_strided_slice %690 {offsets = [1, 0], sizes = [1, 32], strides = [1, 1]} : vector<2x32xf32> to vector<1x32xf32>
    %c15_168 = arith.constant 15 : index
    %c0_169 = arith.constant 0 : index
    %694 = vector.load %arg22[%c15_168, %c0_169] : memref<16x32xf32, #tpu.memory_space<vmem>>, vector<1x32xf32>
    tpu.vector_store %arg22[%c15_168, %c0_169], %693 {strides = array<i32>} : memref<16x32xf32, #tpu.memory_space<vmem>>, vector<1x32xf32>,
    %c1_170 = arith.constant 1 : index
    %c0_171 = arith.constant 0 : index
    %c0_172 = arith.constant 0 : index
    %695 = vector.load %arg20[%c1_170, %c0_171, %c0_172] : memref<2x2x32xf32, #tpu.memory_space<vmem>>, vector<1x2x32xf32>
    %696 = vector.shape_cast %695 : vector<1x2x32xf32> to vector<2x32xf32>
    %697 = vector.shape_cast %690 : vector<2x32xf32> to vector<1x2x32xf32>
    tpu.vector_store %arg20[%c1_170, %c0_171, %c0_172], %697 {strides = array<i32>} : memref<2x2x32xf32, #tpu.memory_space<vmem>>, vector<1x2x32xf32>,
    %c1_173 = arith.constant 1 : index
    %c0_174 = arith.constant 0 : index
    %c0_175 = arith.constant 0 : index
    %698 = vector.load %arg21[%c1_173, %c0_174, %c0_175] : memref<2x2x32xf32, #tpu.memory_space<vmem>>, vector<1x2x32xf32>
    %699 = vector.shape_cast %698 : vector<1x2x32xf32> to vector<2x32xf32>
    %700 = vector.shape_cast %688 : vector<2x32xf32> to vector<1x2x32xf32>
    tpu.vector_store %arg21[%c1_173, %c0_174, %c0_175], %700 {strides = array<i32>} : memref<2x2x32xf32, #tpu.memory_space<vmem>>, vector<1x2x32xf32>,
    %c0_176 = arith.constant 0 : index
    %c0_177 = arith.constant 0 : index
    %701 = vector.load %arg22[%c0_176, %c0_177] : memref<16x32xf32, #tpu.memory_space<vmem>>, vector<16x32xf32>
    %c0_178 = arith.constant 0 : index
    %c0_179 = arith.constant 0 : index
    %702 = vector.load %arg17[%c0_178, %c0_179] : memref<32x24xf32, #tpu.memory_space<vmem>>, vector<32x24xf32>
    %cst_180 = arith.constant dense<0.000000e+00> : vector<16x24xf32>
    %703 = tpu.matmul %701, %702, %cst_180 {dimension_numbers = #tpu.dot_dimension_numbers<[1], [0], [0], [1], [0, 0, 1, 1], [], []>} : vector<16x32xf32>, vector<32x24xf32>, vector<16x24xf32> -> vector<16x24xf32>
    %c0_181 = arith.constant 0 : index
    %c0_182 = arith.constant 0 : index
    %704 = vector.load %arg18[%c0_181, %c0_182] : memref<1x24xf32, #tpu.memory_space<vmem>>, vector<1x24xf32>
    %705 = vector.broadcast %704 : vector<1x24xf32> to vector<16x24xf32>
    %706 = arith.addf %703, %705 : vector<16x24xf32>
    %c0_183 = arith.constant 0 : index
    %c0_184 = arith.constant 0 : index
    %707 = vector.load %arg19[%c0_183, %c0_184] : memref<16x24xf32, #tpu.memory_space<vmem>>, vector<16x24xf32>
    tpu.vector_store %arg19[%c0_183, %c0_184], %706 {strides = array<i32>} : memref<16x24xf32, #tpu.memory_space<vmem>>, vector<16x24xf32>,
    return
  }
}

</mosaic_0001>

<llo_original>
// kernel: char_cnn_lstm_forward.1
$region0: #{char_cnn_lstm_forward.1}
  #allocation0 [shape = 'u32[]', space=smem, size = 0x4, offset = 0x4, fixed_abs, tag = 'smem constant byte address 0x4 - core index']
  #allocation1 [shape = 'u32[144,128]{1,0:T(1,128)}', space=vmem, size = 0x12000, scoped, tag = 'internal scratch']
  #allocation2 [shape = 'f32[16,32]{1,0:T(8,128)}', space=vmem, size = 0x2000, scoped, tag = 'scratch operand']
  #allocation3 [shape = 'f32[1,1]{1,0:T(1,128)S(1)}', space=vmem, size = 0x200, scoped, tag = 'scoped memory for char_cnn_lstm_forward.1']
  %s0 = inlined_call_operand.vmem [shape: s32[16,9], index: 0, kind: input, shape index: {}]
  %s1 = inlined_call_operand.vmem [shape: f32[20,16], index: 1, kind: input, shape index: {}]
  %s2 = inlined_call_operand.vmem [shape: f32[16,80], index: 2, kind: input, shape index: {}]
  %s3 = inlined_call_operand.vmem [shape: f32[1,16], index: 3, kind: input, shape index: {}]
  %s4 = inlined_call_operand.vmem [shape: f32[1,16], index: 4, kind: input, shape index: {}]
  %s5 = inlined_call_operand.vmem [shape: f32[1,32], index: 5, kind: input, shape index: {}]
  %s6 = inlined_call_operand.<no memory space> [shape: f32[1,1], index: 6, kind: input, shape index: {}]
  %s7 = inlined_call_operand.vmem [shape: f32[32,32], index: 7, kind: input, shape index: {}]
  %s8 = inlined_call_operand.vmem [shape: f32[1,32], index: 8, kind: input, shape index: {}]
  %s9 = inlined_call_operand.vmem [shape: f32[32,128], index: 9, kind: input, shape index: {}]
  %s10 = inlined_call_operand.vmem [shape: f32[32,128], index: 10, kind: input, shape index: {}]
  %s11 = inlined_call_operand.vmem [shape: f32[1,128], index: 11, kind: input, shape index: {}]
  %s12 = inlined_call_operand.vmem [shape: f32[32,128], index: 12, kind: input, shape index: {}]
  %s13 = inlined_call_operand.vmem [shape: f32[32,128], index: 13, kind: input, shape index: {}]
  %s14 = inlined_call_operand.vmem [shape: f32[1,128], index: 14, kind: input, shape index: {}]
  %s15 = inlined_call_operand.vmem [shape: f32[2,2,32], index: 15, kind: input, shape index: {}]
  %s16 = inlined_call_operand.vmem [shape: f32[2,2,32], index: 16, kind: input, shape index: {}]
  %s17 = inlined_call_operand.vmem [shape: f32[32,24], index: 17, kind: input, shape index: {}]
  %s18 = inlined_call_operand.vmem [shape: f32[1,24], index: 18, kind: input, shape index: {}]
  %s19 = inlined_call_operand.hbm [shape: f32[16,24], index: 19, kind: output, shape index: {0}]
  %s20 = inlined_call_operand.hbm [shape: f32[2,2,32], index: 20, kind: output, shape index: {1}]
  %s21 = inlined_call_operand.hbm [shape: f32[2,2,32], index: 21, kind: output, shape index: {2}]
  %22 = xla_tuple %s19, %s20, %s21
  %s23 = sld [smem:[#allocation0]]
  $region102: #{char_cnn_lstm_forward.1} parent=0
    _
  %s25 = ssub.s32 1, %s23
  %s26 = scalar_select 0, %s25, %s23
  %v27 = vstv %s6
  %28 = vst [vmem:[#allocation3] sm:$0x1] %v27
  $region1: #{char_cnn_lstm_forward.1} parent=0
    #allocation4 [shape = 'u8[8192]{0}', space=vmem, size = 0x2000, scoped, tag = 'output window, operand 0, single buffered']
    #allocation5 [shape = 's32[1]{0}', space=sflag, size = 0x4, scoped, tag = 'scoped memory for char_cnn_lstm_forward.1']
    #allocation6 [shape = 'u8[2048]{0}', space=vmem, size = 0x800, scoped, tag = 'output window, operand 1, single buffered']
    #allocation7 [shape = 's32[1]{0}', space=sflag, size = 0x4, scoped, tag = 'scoped memory for char_cnn_lstm_forward.1']
    #allocation8 [shape = 'u8[2048]{0}', space=vmem, size = 0x800, scoped, tag = 'output window, operand 2, single buffered']
    %29 = vsyncpa [#allocation5], 0
    %30 = vsyncpa [#allocation7], 0
    // Predicated region
    $region2: #{char_cnn_lstm_forward.1} parent=1 // pred_check
      _
    $region3: #{char_cnn_lstm_forward.1} parent=1 // pred_check_branch
      %32 = sbr.rel (0) target = $region5
    $region4: #{char_cnn_lstm_forward.1} parent=1 // pred_region
      _
    $region5: #{char_cnn_lstm_forward.1} parent=1 // pred_fallthru
      _
    // Predicated region
    $region6: #{char_cnn_lstm_forward.1} parent=1 // pred_check
      _
    $region7: #{char_cnn_lstm_forward.1} parent=1 // pred_check_branch
      %34 = sbr.rel (0) target = $region9
    $region8: #{char_cnn_lstm_forward.1} parent=1 // pred_region
      _
    $region9: #{char_cnn_lstm_forward.1} parent=1 // pred_fallthru
      _
    // Predicated region
    $region10: #{char_cnn_lstm_forward.1} parent=1 // pred_check
      _
    $region11: #{char_cnn_lstm_forward.1} parent=1 // pred_check_branch
      %36 = sbr.rel (0) target = $region13
    $region12: #{char_cnn_lstm_forward.1} parent=1 // pred_region
      _
    $region13: #{char_cnn_lstm_forward.1} parent=1 // pred_fallthru
      _
    // Predicated region
    $region14: #{char_cnn_lstm_forward.1} parent=1 // pred_check
      _
    $region15: #{char_cnn_lstm_forward.1} parent=1 // pred_check_branch
      %38 = sbr.rel (0) target = $region17
    $region16: #{char_cnn_lstm_forward.1} parent=1 // pred_region
      _
    $region17: #{char_cnn_lstm_forward.1} parent=1 // pred_fallthru
      _
    // Predicated region
    $region18: #{char_cnn_lstm_forward.1} parent=1 // pred_check
      _
    $region19: #{char_cnn_lstm_forward.1} parent=1 // pred_check_branch
      %40 = sbr.rel (0) target = $region21
    $region20: #{char_cnn_lstm_forward.1} parent=1 // pred_region
      _
    $region21: #{char_cnn_lstm_forward.1} parent=1 // pred_fallthru
      _
    // Predicated region
    $region22: #{char_cnn_lstm_forward.1} parent=1 // pred_check
      _
    $region23: #{char_cnn_lstm_forward.1} parent=1 // pred_check_branch
      %42 = sbr.rel (0) target = $region25
    $region24: #{char_cnn_lstm_forward.1} parent=1 // pred_region
      _
    $region25: #{char_cnn_lstm_forward.1} parent=1 // pred_fallthru
      _
    // Predicated region
    $region26: #{char_cnn_lstm_forward.1} parent=1 // pred_check
      _
    $region27: #{char_cnn_lstm_forward.1} parent=1 // pred_check_branch
      %44 = sbr.rel (0) target = $region29
    $region28: #{char_cnn_lstm_forward.1} parent=1 // pred_region
      _
    $region29: #{char_cnn_lstm_forward.1} parent=1 // pred_fallthru
      _
    // Predicated region
    $region30: #{char_cnn_lstm_forward.1} parent=1 // pred_check
      _
    $region31: #{char_cnn_lstm_forward.1} parent=1 // pred_check_branch
      %46 = sbr.rel (0) target = $region33
    $region32: #{char_cnn_lstm_forward.1} parent=1 // pred_region
      _
    $region33: #{char_cnn_lstm_forward.1} parent=1 // pred_fallthru
      _
    // Predicated region
    $region34: #{char_cnn_lstm_forward.1} parent=1 // pred_check
      _
    $region35: #{char_cnn_lstm_forward.1} parent=1 // pred_check_branch
      %48 = sbr.rel (0) target = $region37
    $region36: #{char_cnn_lstm_forward.1} parent=1 // pred_region
      _
    $region37: #{char_cnn_lstm_forward.1} parent=1 // pred_fallthru
      _
    // Predicated region
    $region38: #{char_cnn_lstm_forward.1} parent=1 // pred_check
      _
    $region39: #{char_cnn_lstm_forward.1} parent=1 // pred_check_branch
      %50 = sbr.rel (0) target = $region41
    $region40: #{char_cnn_lstm_forward.1} parent=1 // pred_region
      _
    $region41: #{char_cnn_lstm_forward.1} parent=1 // pred_fallthru
      _
    // Predicated region
    $region42: #{char_cnn_lstm_forward.1} parent=1 // pred_check
      _
    $region43: #{char_cnn_lstm_forward.1} parent=1 // pred_check_branch
      %52 = sbr.rel (0) target = $region45
    $region44: #{char_cnn_lstm_forward.1} parent=1 // pred_region
      _
    $region45: #{char_cnn_lstm_forward.1} parent=1 // pred_fallthru
      _
    // Predicated region
    $region46: #{char_cnn_lstm_forward.1} parent=1 // pred_check
      _
    $region47: #{char_cnn_lstm_forward.1} parent=1 // pred_check_branch
      %54 = sbr.rel (0) target = $region49
    $region48: #{char_cnn_lstm_forward.1} parent=1 // pred_region
      _
    $region49: #{char_cnn_lstm_forward.1} parent=1 // pred_fallthru
      _
    // Predicated region
    $region50: #{char_cnn_lstm_forward.1} parent=1 // pred_check
      _
    $region51: #{char_cnn_lstm_forward.1} parent=1 // pred_check_branch
      %56 = sbr.rel (0) target = $region53
    $region52: #{char_cnn_lstm_forward.1} parent=1 // pred_region
      _
    $region53: #{char_cnn_lstm_forward.1} parent=1 // pred_fallthru
      _
    // Predicated region
    $region54: #{char_cnn_lstm_forward.1} parent=1 // pred_check
      _
    $region55: #{char_cnn_lstm_forward.1} parent=1 // pred_check_branch
      %58 = sbr.rel (0) target = $region57
    $region56: #{char_cnn_lstm_forward.1} parent=1 // pred_region
      _
    $region57: #{char_cnn_lstm_forward.1} parent=1 // pred_fallthru
      _
    // Predicated region
    $region58: #{char_cnn_lstm_forward.1} parent=1 // pred_check
      _
    $region59: #{char_cnn_lstm_forward.1} parent=1 // pred_check_branch
      %60 = sbr.rel (0) target = $region61
    $region60: #{char_cnn_lstm_forward.1} parent=1 // pred_region
      _
    $region61: #{char_cnn_lstm_forward.1} parent=1 // pred_fallthru
      _
    // Predicated region
    $region62: #{char_cnn_lstm_forward.1} parent=1 // pred_check
      _
    $region63: #{char_cnn_lstm_forward.1} parent=1 // pred_check_branch
      %62 = sbr.rel (0) target = $region65
    $region64: #{char_cnn_lstm_forward.1} parent=1 // pred_region
      _
    $region65: #{char_cnn_lstm_forward.1} parent=1 // pred_fallthru
      _
    // Predicated region
    $region66: #{char_cnn_lstm_forward.1} parent=1 // pred_check
      _
    $region67: #{char_cnn_lstm_forward.1} parent=1 // pred_check_branch
      %64 = sbr.rel (0) target = $region69
    $region68: #{char_cnn_lstm_forward.1} parent=1 // pred_region
      _
    $region69: #{char_cnn_lstm_forward.1} parent=1 // pred_fallthru
      _
    // Predicated region
    $region70: #{char_cnn_lstm_forward.1} parent=1 // pred_check
      _
    $region71: #{char_cnn_lstm_forward.1} parent=1 // pred_check_branch
      %66 = sbr.rel (0) target = $region73
    $region72: #{char_cnn_lstm_forward.1} parent=1 // pred_region
      _
    $region73: #{char_cnn_lstm_forward.1} parent=1 // pred_fallthru
      _
    // Predicated region
    $region74: #{char_cnn_lstm_forward.1} parent=1 // pred_check
      _
    $region75: #{char_cnn_lstm_forward.1} parent=1 // pred_check_branch
      %68 = sbr.rel (0) target = $region77
    $region76: #{char_cnn_lstm_forward.1} parent=1 // pred_region
      _
    $region77: #{char_cnn_lstm_forward.1} parent=1 // pred_fallthru
      _
    %v69 = vld [vmem:[%s0] sm:$0xff]
    %v70 = vld [vmem:[%s0 + $0x8] sm:$0xff]
    %v71 = vlaneseq
    %v72 = vand.u32 %v71, 127
    %73 = vset.pattern.permute.xlu0 0
    %74 = vperm.xlu0 %73, %v69
    %v75 = vpop.permute.xlu0 %74
    %76 = vset.pattern.permute.xlu0 0
    %77 = vperm.xlu0 %76, %v70
    %v78 = vpop.permute.xlu0 %77
    %vm79 = vcmp.eq.s32.totalorder %v75, %v72
    %vm80 = vcmp.eq.s32.totalorder %v78, %v72
    %v81 = vsel %vm79, 1, 0
    %v82 = vsel %vm80, 1, 0
    %v83 = vcvt.s32.f32 %v81
    %v84 = vcvt.s32.f32 %v82
    %85 = vset.pattern.permute.xlu0 1
    %86 = vperm.xlu0 %85, %v69
    %v87 = vpop.permute.xlu0 %86
    %88 = vset.pattern.permute.xlu0 1
    %89 = vperm.xlu0 %88, %v70
    %v90 = vpop.permute.xlu0 %89
    %vm91 = vcmp.eq.s32.totalorder %v87, %v72
    %vm92 = vcmp.eq.s32.totalorder %v90, %v72
    %v93 = vsel %vm91, 1, 0
    %v94 = vsel %vm92, 1, 0
    %v95 = vcvt.s32.f32 %v93
    %v96 = vcvt.s32.f32 %v94
    %97 = vset.pattern.permute.xlu0 2
    %98 = vperm.xlu0 %97, %v69
    %v99 = vpop.permute.xlu0 %98
    %100 = vset.pattern.permute.xlu0 2
    %101 = vperm.xlu0 %100, %v70
    %v102 = vpop.permute.xlu0 %101
    %vm103 = vcmp.eq.s32.totalorder %v99, %v72
    %vm104 = vcmp.eq.s32.totalorder %v102, %v72
    %v105 = vsel %vm103, 1, 0
    %v106 = vsel %vm104, 1, 0
    %v107 = vcvt.s32.f32 %v105
    %v108 = vcvt.s32.f32 %v106
    %109 = vset.pattern.permute.xlu0 3
    %110 = vperm.xlu0 %109, %v69
    %v111 = vpop.permute.xlu0 %110
    %112 = vset.pattern.permute.xlu0 3
    %113 = vperm.xlu0 %112, %v70
    %v114 = vpop.permute.xlu0 %113
    %vm115 = vcmp.eq.s32.totalorder %v111, %v72
    %vm116 = vcmp.eq.s32.totalorder %v114, %v72
    %v117 = vsel %vm115, 1, 0
    %v118 = vsel %vm116, 1, 0
    %v119 = vcvt.s32.f32 %v117
    %v120 = vcvt.s32.f32 %v118
    %121 = vset.pattern.permute.xlu0 4
    %122 = vperm.xlu0 %121, %v69
    %v123 = vpop.permute.xlu0 %122
    %124 = vset.pattern.permute.xlu0 4
    %125 = vperm.xlu0 %124, %v70
    %v126 = vpop.permute.xlu0 %125
    %vm127 = vcmp.eq.s32.totalorder %v123, %v72
    %vm128 = vcmp.eq.s32.totalorder %v126, %v72
    %v129 = vsel %vm127, 1, 0
    %v130 = vsel %vm128, 1, 0
    %v131 = vcvt.s32.f32 %v129
    %v132 = vcvt.s32.f32 %v130
    %133 = vset.pattern.permute.xlu0 5
    %134 = vperm.xlu0 %133, %v69
    %v135 = vpop.permute.xlu0 %134
    %136 = vset.pattern.permute.xlu0 5
    %137 = vperm.xlu0 %136, %v70
    %v138 = vpop.permute.xlu0 %137
    %vm139 = vcmp.eq.s32.totalorder %v135, %v72
    %vm140 = vcmp.eq.s32.totalorder %v138, %v72
    %v141 = vsel %vm139, 1, 0
    %v142 = vsel %vm140, 1, 0
    %v143 = vcvt.s32.f32 %v141
    %v144 = vcvt.s32.f32 %v142
    %145 = vset.pattern.permute.xlu0 6
    %146 = vperm.xlu0 %145, %v69
    %v147 = vpop.permute.xlu0 %146
    %148 = vset.pattern.permute.xlu0 6
    %149 = vperm.xlu0 %148, %v70
    %v150 = vpop.permute.xlu0 %149
    %vm151 = vcmp.eq.s32.totalorder %v147, %v72
    %vm152 = vcmp.eq.s32.totalorder %v150, %v72
    %v153 = vsel %vm151, 1, 0
    %v154 = vsel %vm152, 1, 0
    %v155 = vcvt.s32.f32 %v153
    %v156 = vcvt.s32.f32 %v154
    %157 = vset.pattern.permute.xlu0 7
    %158 = vperm.xlu0 %157, %v69
    %v159 = vpop.permute.xlu0 %158
    %160 = vset.pattern.permute.xlu0 7
    %161 = vperm.xlu0 %160, %v70
    %v162 = vpop.permute.xlu0 %161
    %vm163 = vcmp.eq.s32.totalorder %v159, %v72
    %vm164 = vcmp.eq.s32.totalorder %v162, %v72
    %v165 = vsel %vm163, 1, 0
    %v166 = vsel %vm164, 1, 0
    %v167 = vcvt.s32.f32 %v165
    %v168 = vcvt.s32.f32 %v166
    %169 = vset.pattern.permute.xlu0 8
    %170 = vperm.xlu0 %169, %v69
    %v171 = vpop.permute.xlu0 %170
    %172 = vset.pattern.permute.xlu0 8
    %173 = vperm.xlu0 %172, %v70
    %v174 = vpop.permute.xlu0 %173
    %vm175 = vcmp.eq.s32.totalorder %v171, %v72
    %vm176 = vcmp.eq.s32.totalorder %v174, %v72
    %v177 = vsel %vm175, 1, 0
    %v178 = vsel %vm176, 1, 0
    %v179 = vcvt.s32.f32 %v177
    %v180 = vcvt.s32.f32 %v178
    %v181 = vld [vmem:[%s1] sm:$0xff]
    %v182 = vld [vmem:[%s1 + $0x8] sm:$0xff]
    %v183 = vld [vmem:[%s1 + $0x10] sm:$0xf]
    %vm184 = vcmask 162816
    %v186 = vsel %vm184, %v83, 0
    %v189 = vsel %vm184, %v84, 0
    %v192 = vsel %vm184, %v95, 0
    %v195 = vsel %vm184, %v96, 0
    %v198 = vsel %vm184, %v107, 0
    %v201 = vsel %vm184, %v108, 0
    %v204 = vsel %vm184, %v119, 0
    %v207 = vsel %vm184, %v120, 0
    %v210 = vsel %vm184, %v131, 0
    %v213 = vsel %vm184, %v132, 0
    %v216 = vsel %vm184, %v143, 0
    %v219 = vsel %vm184, %v144, 0
    %v222 = vsel %vm184, %v155, 0
    %v225 = vsel %vm184, %v156, 0
    %v228 = vsel %vm184, %v167, 0
    %v231 = vsel %vm184, %v168, 0
    %v234 = vsel %vm184, %v179, 0
    %v237 = vsel %vm184, %v180, 0
    %vm239 = vcmask 1043456
    %v241 = vsel %vm239, %v183, 0
    %243 = vmatprep.subr.mxu0 0.0
    %244 = vmatpush1.msra.mxu0 %v181
    %245 = vmatprep.subr.mxu0 0.0
    %246 = vmatpush1.msra.mxu0 %v182
    %247 = vmatprep.subr.mxu0 0.0
    %248 = vmatpush1.msra.mxu0 %v241
    %249 = vmatprep.subr.mxu0 0.0
    %250 = vmatpush1.msra.mxu0 0.0
    %251 = vmatprep.subr.mxu0 0.0
    %252 = vmatpush1.msra.mxu0 0.0
    %253 = vmatprep.subr.mxu0 0.0
    %254 = vmatpush1.msra.mxu0 0.0
    %255 = vmatprep.subr.mxu0 0.0
    %256 = vmatpush1.msra.mxu0 0.0
    %257 = vmatprep.subr.mxu0 0.0
    %258 = vmatpush1.msra.mxu0 0.0
    %259 = vmatprep.subr.mxu0 0.0
    %260 = vmatpush1.msra.mxu0 0.0
    %261 = vmatprep.subr.mxu0 0.0
    %262 = vmatpush1.msra.mxu0 0.0
    %263 = vmatprep.subr.mxu0 0.0
    %264 = vmatpush1.msra.mxu0 0.0
    %265 = vmatprep.subr.mxu0 0.0
    %266 = vmatpush1.msra.mxu0 0.0
    %267 = vmatprep.subr.mxu0 0.0
    %268 = vmatpush1.msra.mxu0 0.0
    %269 = vmatprep.subr.mxu0 0.0
    %270 = vmatpush1.msra.mxu0 0.0
    %271 = vmatprep.subr.mxu0 0.0
    %272 = vmatpush1.msra.mxu0 0.0
    %273 = vmatprep.subr.mxu0 0.0
    %274 = vmatpush1.msra.mxu0 0.0
    %275 = vmatprep.subr.mxu0 0.0
    %276 = vmatpush1.msra.mxu0 0.0
    %277 = vmatprep.subr.mxu0 0.0
    %278 = vmatpush1.msra.mxu0 0.0
    %279 = vmatprep.subr.mxu0 0.0
    %280 = vmatpush1.msra.mxu0 0.0
    %281 = vmatprep.subr.mxu0 0.0
    %282 = vmatpush1.msra.mxu0 0.0
    %283 = vmatprep.subr.mxu0 0.0
    %284 = vmatpush1.msra.mxu0 0.0
    %285 = vmatprep.subr.mxu0 0.0
    %286 = vmatpush1.msra.mxu0 0.0
    %287 = vmatprep.subr.mxu0 0.0
    %288 = vmatpush1.msra.mxu0 0.0
    %289 = vmatprep.subr.mxu0 0.0
    %290 = vmatpush1.msra.mxu0 0.0
    %291 = vmatprep.subr.mxu0 0.0
    %292 = vmatpush1.msra.mxu0 0.0
    %293 = vmatprep.subr.mxu0 0.0
    %294 = vmatpush1.msra.mxu0 0.0
    %295 = vmatprep.subr.mxu0 0.0
    %296 = vmatpush1.msra.mxu0 0.0
    %297 = vmatprep.subr.mxu0 0.0
    %298 = vmatpush1.msra.mxu0 0.0
    %299 = vmatprep.subr.mxu0 0.0
    %300 = vmatpush1.msra.mxu0 0.0
    %301 = vmatprep.subr.mxu0 0.0
    %302 = vmatpush1.msra.mxu0 0.0
    %303 = vmatprep.subr.mxu0 0.0
    %304 = vmatpush1.msra.mxu0 0.0
    %305 = vmatprep.subr.mxu0 0.0
    %306 = vmatpush1.msra.mxu0 0.0
    %307 = vmatprep.mubr.f32.mxu0 0.0
    %308 = vmatmul.mubr.f32.gmra.mrb[0].mxu0 %v186
    %v309 = vpop.f32.mrb[0].mxu0
    %v310 = vadd.f32 0.0, %v309
    %v311 = vpop.f32.mrb[0].mxu0
    %312 = vmatprep.mubr.f32.mxu0 0.0
    %313 = vmatmul.mubr.f32.gmra.mrb[0].mxu0 %v189
    %v314 = vpop.f32.mrb[0].mxu0
    %v315 = vadd.f32 0.0, %v314
    %v316 = vpop.f32.mrb[0].mxu0
    %317 = vmatprep.mubr.f32.mxu0 0.0
    %318 = vmatmul.mubr.f32.gmra.mrb[0].mxu0 %v192
    %v319 = vpop.f32.mrb[0].mxu0
    %v320 = vadd.f32 0.0, %v319
    %v321 = vpop.f32.mrb[0].mxu0
    %322 = vmatprep.mubr.f32.mxu0 0.0
    %323 = vmatmul.mubr.f32.gmra.mrb[0].mxu0 %v195
    %v324 = vpop.f32.mrb[0].mxu0
    %v325 = vadd.f32 0.0, %v324
    %v326 = vpop.f32.mrb[0].mxu0
    %327 = vmatprep.mubr.f32.mxu0 0.0
    %328 = vmatmul.mubr.f32.gmra.mrb[0].mxu0 %v198
    %v329 = vpop.f32.mrb[0].mxu0
    %v330 = vadd.f32 0.0, %v329
    %v331 = vpop.f32.mrb[0].mxu0
    %332 = vmatprep.mubr.f32.mxu0 0.0
    %333 = vmatmul.mubr.f32.gmra.mrb[0].mxu0 %v201
    %v334 = vpop.f32.mrb[0].mxu0
    %v335 = vadd.f32 0.0, %v334
    %v336 = vpop.f32.mrb[0].mxu0
    %337 = vmatprep.mubr.f32.mxu0 0.0
    %338 = vmatmul.mubr.f32.gmra.mrb[0].mxu0 %v204
    %v339 = vpop.f32.mrb[0].mxu0
    %v340 = vadd.f32 0.0, %v339
    %v341 = vpop.f32.mrb[0].mxu0
    %342 = vmatprep.mubr.f32.mxu0 0.0
    %343 = vmatmul.mubr.f32.gmra.mrb[0].mxu0 %v207
    %v344 = vpop.f32.mrb[0].mxu0
    %v345 = vadd.f32 0.0, %v344
    %v346 = vpop.f32.mrb[0].mxu0
    %347 = vmatprep.mubr.f32.mxu0 0.0
    %348 = vmatmul.mubr.f32.gmra.mrb[0].mxu0 %v210
    %v349 = vpop.f32.mrb[0].mxu0
    %v350 = vadd.f32 0.0, %v349
    %v351 = vpop.f32.mrb[0].mxu0
    %352 = vmatprep.mubr.f32.mxu0 0.0
    %353 = vmatmul.mubr.f32.gmra.mrb[0].mxu0 %v213
    %v354 = vpop.f32.mrb[0].mxu0
    %v355 = vadd.f32 0.0, %v354
    %v356 = vpop.f32.mrb[0].mxu0
    %357 = vmatprep.mubr.f32.mxu0 0.0
    %358 = vmatmul.mubr.f32.gmra.mrb[0].mxu0 %v216
    %v359 = vpop.f32.mrb[0].mxu0
    %v360 = vadd.f32 0.0, %v359
    %v361 = vpop.f32.mrb[0].mxu0
    %362 = vmatprep.mubr.f32.mxu0 0.0
    %363 = vmatmul.mubr.f32.gmra.mrb[0].mxu0 %v219
    %v364 = vpop.f32.mrb[0].mxu0
    %v365 = vadd.f32 0.0, %v364
    %v366 = vpop.f32.mrb[0].mxu0
    %367 = vmatprep.mubr.f32.mxu0 0.0
    %368 = vmatmul.mubr.f32.gmra.mrb[0].mxu0 %v222
    %v369 = vpop.f32.mrb[0].mxu0
    %v370 = vadd.f32 0.0, %v369
    %v371 = vpop.f32.mrb[0].mxu0
    %372 = vmatprep.mubr.f32.mxu0 0.0
    %373 = vmatmul.mubr.f32.gmra.mrb[0].mxu0 %v225
    %v374 = vpop.f32.mrb[0].mxu0
    %v375 = vadd.f32 0.0, %v374
    %v376 = vpop.f32.mrb[0].mxu0
    %377 = vmatprep.mubr.f32.mxu0 0.0
    %378 = vmatmul.mubr.f32.gmra.mrb[0].mxu0 %v228
    %v379 = vpop.f32.mrb[0].mxu0
    %v380 = vadd.f32 0.0, %v379
    %v381 = vpop.f32.mrb[0].mxu0
    %382 = vmatprep.mubr.f32.mxu0 0.0
    %383 = vmatmul.mubr.f32.gmra.mrb[0].mxu0 %v231
    %v384 = vpop.f32.mrb[0].mxu0
    %v385 = vadd.f32 0.0, %v384
    %v386 = vpop.f32.mrb[0].mxu0
    %387 = vmatprep.mubr.f32.mxu0 0.0
    %388 = vmatmul.mubr.f32.gmra.mrb[0].mxu0 %v234
    %v389 = vpop.f32.mrb[0].mxu0
    %v390 = vadd.f32 0.0, %v389
    %v391 = vpop.f32.mrb[0].mxu0
    %392 = vmatprep.mubr.f32.mxu0 0.0
    %393 = vmatmul.mubr.f32.gmra.mrb[0].mxu0 %v237
    %v394 = vpop.f32.mrb[0].mxu0
    %v395 = vadd.f32 0.0, %v394
    %v396 = vpop.f32.mrb[0].mxu0
    %397 = vdwg.mxu0
    %v398 = vld [vmem:[%s2] sm:$0xff]
    %v399 = vld [vmem:[%s2 + $0x8] sm:$0xff]
    %vm400 = vcmask 130048
    %v402 = vsel %vm400, %v310, 0
    %v405 = vsel %vm400, %v315, 0
    %v408 = vsel %vm400, %v320, 0
    %v411 = vsel %vm400, %v325, 0
    %v414 = vsel %vm400, %v330, 0
    %v417 = vsel %vm400, %v335, 0
    %v420 = vsel %vm400, %v340, 0
    %v423 = vsel %vm400, %v345, 0
    %v426 = vsel %vm400, %v350, 0
    %v429 = vsel %vm400, %v355, 0
    %v432 = vsel %vm400, %v360, 0
    %v435 = vsel %vm400, %v365, 0
    %v438 = vsel %vm400, %v370, 0
    %v441 = vsel %vm400, %v375, 0
    %v444 = vsel %vm400, %v380, 0
    %v447 = vsel %vm400, %v385, 0
    %v450 = vsel %vm400, %v390, 0
    %v453 = vsel %vm400, %v395, 0
    %455 = vmatprep.subr.mxu0 0.0
    %456 = vmatpush1.msra.mxu0 %v398
    %457 = vmatprep.subr.mxu0 0.0
    %458 = vmatpush1.msra.mxu0 %v399
    %459 = vmatprep.subr.mxu0 0.0
    %460 = vmatpush1.msra.mxu0 0.0
    %461 = vmatprep.subr.mxu0 0.0
    %462 = vmatpush1.msra.mxu0 0.0
    %463 = vmatprep.subr.mxu0 0.0
    %464 = vmatpush1.msra.mxu0 0.0
    %465 = vmatprep.subr.mxu0 0.0
    %466 = vmatpush1.msra.mxu0 0.0
    %467 = vmatprep.subr.mxu0 0.0
    %468 = vmatpush1.msra.mxu0 0.0
    %469 = vmatprep.subr.mxu0 0.0
    %470 = vmatpush1.msra.mxu0 0.0
    %471 = vmatprep.subr.mxu0 0.0
    %472 = vmatpush1.msra.mxu0 0.0
    %473 = vmatprep.subr.mxu0 0.0
    %474 = vmatpush1.msra.mxu0 0.0
    %475 = vmatprep.subr.mxu0 0.0
    %476 = vmatpush1.msra.mxu0 0.0
    %477 = vmatprep.subr.mxu0 0.0
    %478 = vmatpush1.msra.mxu0 0.0
    %479 = vmatprep.subr.mxu0 0.0
    %480 = vmatpush1.msra.mxu0 0.0
    %481 = vmatprep.subr.mxu0 0.0
    %482 = vmatpush1.msra.mxu0 0.0
    %483 = vmatprep.subr.mxu0 0.0
    %484 = vmatpush1.msra.mxu0 0.0
    %485 = vmatprep.subr.mxu0 0.0
    %486 = vmatpush1.msra.mxu0 0.0
    %487 = vmatprep.subr.mxu0 0.0
    %488 = vmatpush1.msra.mxu0 0.0
    %489 = vmatprep.subr.mxu0 0.0
    %490 = vmatpush1.msra.mxu0 0.0
    %491 = vmatprep.subr.mxu0 0.0
    %492 = vmatpush1.msra.mxu0 0.0
    %493 = vmatprep.subr.mxu0 0.0
    %494 = vmatpush1.msra.mxu0 0.0
    %495 = vmatprep.subr.mxu0 0.0
    %496 = vmatpush1.msra.mxu0 0.0
    %497 = vmatprep.subr.mxu0 0.0
    %498 = vmatpush1.msra.mxu0 0.0
    %499 = vmatprep.subr.mxu0 0.0
    %500 = vmatpush1.msra.mxu0 0.0
    %501 = vmatprep.subr.mxu0 0.0
    %502 = vmatpush1.msra.mxu0 0.0
    %503 = vmatprep.subr.mxu0 0.0
    %504 = vmatpush1.msra.mxu0 0.0
    %505 = vmatprep.subr.mxu0 0.0
    %506 = vmatpush1.msra.mxu0 0.0
    %507 = vmatprep.subr.mxu0 0.0
    %508 = vmatpush1.msra.mxu0 0.0
    %509 = vmatprep.subr.mxu0 0.0
    %510 = vmatpush1.msra.mxu0 0.0
    %511 = vmatprep.subr.mxu0 0.0
    %512 = vmatpush1.msra.mxu0 0.0
    %513 = vmatprep.subr.mxu0 0.0
    %514 = vmatpush1.msra.mxu0 0.0
    %515 = vmatprep.subr.mxu0 0.0
    %516 = vmatpush1.msra.mxu0 0.0
    %517 = vmatprep.subr.mxu0 0.0
    %518 = vmatpush1.msra.mxu0 0.0
    %519 = vmatprep.mubr.f32.mxu0 0.0
    %520 = vmatmul.mubr.f32.gmra.mrb[0].mxu0 %v402
    %v521 = vpop.f32.mrb[0].mxu0
    %v522 = vadd.f32 0.0, %v521
    %v523 = vpop.f32.mrb[0].mxu0
    %524 = vmatprep.mubr.f32.mxu0 0.0
    %525 = vmatmul.mubr.f32.gmra.mrb[0].mxu0 %v405
    %v526 = vpop.f32.mrb[0].mxu0
    %v527 = vadd.f32 0.0, %v526
    %v528 = vpop.f32.mrb[0].mxu0
    %529 = vmatprep.mubr.f32.mxu0 0.0
    %530 = vmatmul.mubr.f32.gmra.mrb[0].mxu0 %v408
    %v531 = vpop.f32.mrb[0].mxu0
    %v532 = vadd.f32 0.0, %v531
    %v533 = vpop.f32.mrb[0].mxu0
    %534 = vmatprep.mubr.f32.mxu0 0.0
    %535 = vmatmul.mubr.f32.gmra.mrb[0].mxu0 %v411
    %v536 = vpop.f32.mrb[0].mxu0
    %v537 = vadd.f32 0.0, %v536
    %v538 = vpop.f32.mrb[0].mxu0
    %539 = vmatprep.mubr.f32.mxu0 0.0
    %540 = vmatmul.mubr.f32.gmra.mrb[0].mxu0 %v414
    %v541 = vpop.f32.mrb[0].mxu0
    %v542 = vadd.f32 0.0, %v541
    %v543 = vpop.f32.mrb[0].mxu0
    %544 = vmatprep.mubr.f32.mxu0 0.0
    %545 = vmatmul.mubr.f32.gmra.mrb[0].mxu0 %v417
    %v546 = vpop.f32.mrb[0].mxu0
    %v547 = vadd.f32 0.0, %v546
    %v548 = vpop.f32.mrb[0].mxu0
    %549 = vmatprep.mubr.f32.mxu0 0.0
    %550 = vmatmul.mubr.f32.gmra.mrb[0].mxu0 %v420
    %v551 = vpop.f32.mrb[0].mxu0
    %v552 = vadd.f32 0.0, %v551
    %v553 = vpop.f32.mrb[0].mxu0
    %554 = vmatprep.mubr.f32.mxu0 0.0
    %555 = vmatmul.mubr.f32.gmra.mrb[0].mxu0 %v423
    %v556 = vpop.f32.mrb[0].mxu0
    %v557 = vadd.f32 0.0, %v556
    %v558 = vpop.f32.mrb[0].mxu0
    %559 = vmatprep.mubr.f32.mxu0 0.0
    %560 = vmatmul.mubr.f32.gmra.mrb[0].mxu0 %v426
    %v561 = vpop.f32.mrb[0].mxu0
    %v562 = vadd.f32 0.0, %v561
    %v563 = vpop.f32.mrb[0].mxu0
    %564 = vmatprep.mubr.f32.mxu0 0.0
    %565 = vmatmul.mubr.f32.gmra.mrb[0].mxu0 %v429
    %v566 = vpop.f32.mrb[0].mxu0
    %v567 = vadd.f32 0.0, %v566
    %v568 = vpop.f32.mrb[0].mxu0
    %569 = vmatprep.mubr.f32.mxu0 0.0
    %570 = vmatmul.mubr.f32.gmra.mrb[0].mxu0 %v432
    %v571 = vpop.f32.mrb[0].mxu0
    %v572 = vadd.f32 0.0, %v571
    %v573 = vpop.f32.mrb[0].mxu0
    %574 = vmatprep.mubr.f32.mxu0 0.0
    %575 = vmatmul.mubr.f32.gmra.mrb[0].mxu0 %v435
    %v576 = vpop.f32.mrb[0].mxu0
    %v577 = vadd.f32 0.0, %v576
    %v578 = vpop.f32.mrb[0].mxu0
    %579 = vmatprep.mubr.f32.mxu0 0.0
    %580 = vmatmul.mubr.f32.gmra.mrb[0].mxu0 %v438
    %v581 = vpop.f32.mrb[0].mxu0
    %v582 = vadd.f32 0.0, %v581
    %v583 = vpop.f32.mrb[0].mxu0
    %584 = vmatprep.mubr.f32.mxu0 0.0
    %585 = vmatmul.mubr.f32.gmra.mrb[0].mxu0 %v441
    %v586 = vpop.f32.mrb[0].mxu0
    %v587 = vadd.f32 0.0, %v586
    %v588 = vpop.f32.mrb[0].mxu0
    %589 = vmatprep.mubr.f32.mxu0 0.0
    %590 = vmatmul.mubr.f32.gmra.mrb[0].mxu0 %v444
    %v591 = vpop.f32.mrb[0].mxu0
    %v592 = vadd.f32 0.0, %v591
    %v593 = vpop.f32.mrb[0].mxu0
    %594 = vmatprep.mubr.f32.mxu0 0.0
    %595 = vmatmul.mubr.f32.gmra.mrb[0].mxu0 %v447
    %v596 = vpop.f32.mrb[0].mxu0
    %v597 = vadd.f32 0.0, %v596
    %v598 = vpop.f32.mrb[0].mxu0
    %599 = vmatprep.mubr.f32.mxu0 0.0
    %600 = vmatmul.mubr.f32.gmra.mrb[0].mxu0 %v450
    %v601 = vpop.f32.mrb[0].mxu0
    %v602 = vadd.f32 0.0, %v601
    %v603 = vpop.f32.mrb[0].mxu0
    %604 = vmatprep.mubr.f32.mxu0 0.0
    %605 = vmatmul.mubr.f32.gmra.mrb[0].mxu0 %v453
    %v606 = vpop.f32.mrb[0].mxu0
    %v607 = vadd.f32 0.0, %v606
    %v608 = vpop.f32.mrb[0].mxu0
    %609 = vdwg.mxu0
    %626 = vrot.lane.b32.xlu0 %v532, 112
    %v627 = vpop.permute.xlu0 %626
    %628 = vrot.lane.b32.xlu0 %v537, 112
    %v629 = vpop.permute.xlu0 %628
    %630 = vrot.lane.b32.xlu0 %v542, 112
    %v631 = vpop.permute.xlu0 %630
    %632 = vrot.lane.b32.xlu0 %v547, 112
    %v633 = vpop.permute.xlu0 %632
    %634 = vrot.lane.b32.xlu0 %v552, 112
    %v635 = vpop.permute.xlu0 %634
    %636 = vrot.lane.b32.xlu0 %v557, 112
    %v637 = vpop.permute.xlu0 %636
    %638 = vrot.lane.b32.xlu0 %v562, 112
    %v639 = vpop.permute.xlu0 %638
    %640 = vrot.lane.b32.xlu0 %v567, 112
    %v641 = vpop.permute.xlu0 %640
    %642 = vrot.lane.b32.xlu0 %v572, 112
    %v643 = vpop.permute.xlu0 %642
    %644 = vrot.lane.b32.xlu0 %v577, 112
    %v645 = vpop.permute.xlu0 %644
    %646 = vrot.lane.b32.xlu0 %v582, 112
    %v647 = vpop.permute.xlu0 %646
    %648 = vrot.lane.b32.xlu0 %v587, 112
    %v649 = vpop.permute.xlu0 %648
    %650 = vrot.lane.b32.xlu0 %v592, 112
    %v651 = vpop.permute.xlu0 %650
    %652 = vrot.lane.b32.xlu0 %v597, 112
    %v653 = vpop.permute.xlu0 %652
    %654 = vrot.lane.b32.xlu0 %v602, 112
    %v655 = vpop.permute.xlu0 %654
    %656 = vrot.lane.b32.xlu0 %v607, 112
    %v657 = vpop.permute.xlu0 %656
    %v674 = vadd.f32 %v522, %v627
    %v675 = vadd.f32 %v527, %v629
    %v676 = vadd.f32 %v532, %v631
    %v677 = vadd.f32 %v537, %v633
    %v678 = vadd.f32 %v542, %v635
    %v679 = vadd.f32 %v547, %v637
    %v680 = vadd.f32 %v552, %v639
    %v681 = vadd.f32 %v557, %v641
    %v682 = vadd.f32 %v562, %v643
    %v683 = vadd.f32 %v567, %v645
    %v684 = vadd.f32 %v572, %v647
    %v685 = vadd.f32 %v577, %v649
    %v686 = vadd.f32 %v582, %v651
    %v687 = vadd.f32 %v587, %v653
    %v688 = vadd.f32 %v592, %v655
    %v689 = vadd.f32 %v597, %v657
    %v690 = vld [vmem:[%s3] sm:$0x1]
    %v692 = vlaneseq
    %v693 = vshrl.u32 %v692, 7
    %v694 = vsub.s32 0, %v693
    %v695 = vrot.slane %v690, %v694
    %v697 = vadd.f32 %v674, %v695
    %v698 = vadd.f32 %v675, %v695
    %v699 = vadd.f32 %v676, %v695
    %v700 = vadd.f32 %v677, %v695
    %v701 = vadd.f32 %v678, %v695
    %v702 = vadd.f32 %v679, %v695
    %v703 = vadd.f32 %v680, %v695
    %v704 = vadd.f32 %v681, %v695
    %v705 = vadd.f32 %v682, %v695
    %v706 = vadd.f32 %v683, %v695
    %v707 = vadd.f32 %v684, %v695
    %v708 = vadd.f32 %v685, %v695
    %v709 = vadd.f32 %v686, %v695
    %v710 = vadd.f32 %v687, %v695
    %v711 = vadd.f32 %v688, %v695
    %v712 = vadd.f32 %v689, %v695
    %v713 = vtanh.pop %v697
    %v714 = vtanh.pop %v698
    %v715 = vtanh.pop %v699
    %v716 = vtanh.pop %v700
    %v717 = vtanh.pop %v701
    %v718 = vtanh.pop %v702
    %v719 = vtanh.pop %v703
    %v720 = vtanh.pop %v704
    %v721 = vtanh.pop %v705
    %v722 = vtanh.pop %v706
    %v723 = vtanh.pop %v707
    %v724 = vtanh.pop %v708
    %v725 = vtanh.pop %v709
    %v726 = vtanh.pop %v710
    %v727 = vtanh.pop %v711
    %v728 = vtanh.pop %v712
    %v729 = vmax.f32 %v713, %v715
    %v730 = vmax.f32 %v714, %v716
    %v731 = vmax.f32 %v729, %v717
    %v732 = vmax.f32 %v730, %v718
    %v733 = vmax.f32 %v731, %v719
    %v734 = vmax.f32 %v732, %v720
    %v735 = vmax.f32 %v733, %v721
    %v736 = vmax.f32 %v734, %v722
    %v737 = vmax.f32 %v735, %v723
    %v738 = vmax.f32 %v736, %v724
    %v739 = vmax.f32 %v737, %v725
    %v740 = vmax.f32 %v738, %v726
    %v741 = vmax.f32 %v739, %v727
    %v742 = vmax.f32 %v740, %v728
    %743 = vrot.lane.b32.xlu0 %v542, 96
    %v744 = vpop.permute.xlu0 %743
    %745 = vrot.lane.b32.xlu0 %v547, 96
    %v746 = vpop.permute.xlu0 %745
    %747 = vrot.lane.b32.xlu0 %v552, 96
    %v748 = vpop.permute.xlu0 %747
    %749 = vrot.lane.b32.xlu0 %v557, 96
    %v750 = vpop.permute.xlu0 %749
    %751 = vrot.lane.b32.xlu0 %v562, 96
    %v752 = vpop.permute.xlu0 %751
    %753 = vrot.lane.b32.xlu0 %v567, 96
    %v754 = vpop.permute.xlu0 %753
    %755 = vrot.lane.b32.xlu0 %v572, 96
    %v756 = vpop.permute.xlu0 %755
    %757 = vrot.lane.b32.xlu0 %v577, 96
    %v758 = vpop.permute.xlu0 %757
    %759 = vrot.lane.b32.xlu0 %v582, 96
    %v760 = vpop.permute.xlu0 %759
    %761 = vrot.lane.b32.xlu0 %v587, 96
    %v762 = vpop.permute.xlu0 %761
    %763 = vrot.lane.b32.xlu0 %v592, 96
    %v764 = vpop.permute.xlu0 %763
    %765 = vrot.lane.b32.xlu0 %v597, 96
    %v766 = vpop.permute.xlu0 %765
    %767 = vrot.lane.b32.xlu0 %v602, 96
    %v768 = vpop.permute.xlu0 %767
    %769 = vrot.lane.b32.xlu0 %v607, 96
    %v770 = vpop.permute.xlu0 %769
    %v785 = vadd.f32 %v674, %v744
    %v786 = vadd.f32 %v675, %v746
    %v787 = vadd.f32 %v676, %v748
    %v788 = vadd.f32 %v677, %v750
    %v789 = vadd.f32 %v678, %v752
    %v790 = vadd.f32 %v679, %v754
    %v791 = vadd.f32 %v680, %v756
    %v792 = vadd.f32 %v681, %v758
    %v793 = vadd.f32 %v682, %v760
    %v794 = vadd.f32 %v683, %v762
    %v795 = vadd.f32 %v684, %v764
    %v796 = vadd.f32 %v685, %v766
    %v797 = vadd.f32 %v686, %v768
    %v798 = vadd.f32 %v687, %v770
    %v799 = vld [vmem:[%s4] sm:$0x1]
    %v801 = vlaneseq
    %v802 = vshrl.u32 %v801, 7
    %v803 = vsub.s32 0, %v802
    %v804 = vrot.slane %v799, %v803
    %805 = vrot.lane.b32.xlu0 %v804, 32
    %v806 = vpop.permute.xlu0 %805
    %v808 = vadd.f32 %v785, %v806
    %v809 = vadd.f32 %v786, %v806
    %v810 = vadd.f32 %v787, %v806
    %v811 = vadd.f32 %v788, %v806
    %v812 = vadd.f32 %v789, %v806
    %v813 = vadd.f32 %v790, %v806
    %v814 = vadd.f32 %v791, %v806
    %v815 = vadd.f32 %v792, %v806
    %v816 = vadd.f32 %v793, %v806
    %v817 = vadd.f32 %v794, %v806
    %v818 = vadd.f32 %v795, %v806
    %v819 = vadd.f32 %v796, %v806
    %v820 = vadd.f32 %v797, %v806
    %v821 = vadd.f32 %v798, %v806
    %v822 = vtanh.pop %v808
    %v823 = vtanh.pop %v809
    %v824 = vtanh.pop %v810
    %v825 = vtanh.pop %v811
    %v826 = vtanh.pop %v812
    %v827 = vtanh.pop %v813
    %v828 = vtanh.pop %v814
    %v829 = vtanh.pop %v815
    %v830 = vtanh.pop %v816
    %v831 = vtanh.pop %v817
    %v832 = vtanh.pop %v818
    %v833 = vtanh.pop %v819
    %v834 = vtanh.pop %v820
    %v835 = vtanh.pop %v821
    %v836 = vmax.f32 %v822, %v824
    %v837 = vmax.f32 %v823, %v825
    %v838 = vmax.f32 %v836, %v826
    %v839 = vmax.f32 %v837, %v827
    %v840 = vmax.f32 %v838, %v828
    %v841 = vmax.f32 %v839, %v829
    %v842 = vmax.f32 %v840, %v830
    %v843 = vmax.f32 %v841, %v831
    %v844 = vmax.f32 %v842, %v832
    %v845 = vmax.f32 %v843, %v833
    %v846 = vmax.f32 %v844, %v834
    %v847 = vmax.f32 %v845, %v835
    %850 = vrot.lane.b32.xlu0 %v846, 112
    %v851 = vpop.permute.xlu0 %850
    %852 = vrot.lane.b32.xlu0 %v847, 112
    %v853 = vpop.permute.xlu0 %852
    %v856 = vsel %vm400, %v741, %v851
    %v857 = vsel %vm400, %v742, %v853
    %v858 = vld [vmem:[%s5] sm:$0x1]
    %v860 = vlaneseq
    %v861 = vshrl.u32 %v860, 7
    %v862 = vsub.s32 0, %v861
    %v863 = vrot.slane %v858, %v862
    %v865 = vmul.f32 %v856, %v863
    %v866 = vmul.f32 %v857, %v863
    %vm867 = vcmask 261120
    %v868 = vsel %vm867, %v865, 0.0
    %869 = vadd.xlane.f32.xlu0 %v868
    %v870 = vpop.xlane.xlu0 %869
    %v871 = vsel %vm867, %v866, 0.0
    %872 = vadd.xlane.f32.xlu0 %v871
    %v873 = vpop.xlane.xlu0 %872
    %v874 = vld [vmem:[#allocation3] sm:$0x1]
    %v876 = vlaneseq
    %v877 = vshrl.u32 %v876, 7
    %v878 = vsub.s32 0, %v877
    %v879 = vrot.slane %v874, %v878
    %v881 = vadd.f32 %v870, %v879
    %v882 = vadd.f32 %v873, %v879
    %v883 = vxor.u32 %v881, 2147483648
    %v884 = vxor.u32 %v882, 2147483648
    %v885 = vmul.f32 %v883, 1.442695
    %v886 = vpow.pop %v885
    %v887 = vmul.f32 %v884, 1.442695
    %v888 = vpow.pop %v887
    %v889 = vadd.f32 %v886, 1.0
    %v890 = vadd.f32 %v888, 1.0
    %v891 = vrcp.pop %v889
    %v892 = vmul.f32 1.0, %v891
    %v893 = vrcp.pop %v890
    %v894 = vmul.f32 1.0, %v893
    %v895 = vld [vmem:[%s7] sm:$0xff]
    %v896 = vld [vmem:[%s7 + $0x8] sm:$0xff]
    %v897 = vld [vmem:[%s7 + $0x10] sm:$0xff]
    %v898 = vld [vmem:[%s7 + $0x18] sm:$0xff]
    %v899 = vld [vmem:[%s8] sm:$0x1]
    %v901 = vlaneseq
    %v902 = vshrl.u32 %v901, 7
    %v903 = vsub.s32 0, %v902
    %v904 = vrot.slane %v899, %v903
    %v907 = vsel %vm867, %v856, 0
    %v910 = vsel %vm867, %v857, 0
    %912 = vmatprep.subr.mxu0 0.0
    %913 = vmatpush1.msra.mxu0 %v895
    %914 = vmatprep.subr.mxu0 0.0
    %915 = vmatpush1.msra.mxu0 %v896
    %916 = vmatprep.subr.mxu0 0.0
    %917 = vmatpush1.msra.mxu0 %v897
    %918 = vmatprep.subr.mxu0 0.0
    %919 = vmatpush1.msra.mxu0 %v898
    %920 = vmatprep.subr.mxu0 0.0
    %921 = vmatpush1.msra.mxu0 0.0
    %922 = vmatprep.subr.mxu0 0.0
    %923 = vmatpush1.msra.mxu0 0.0
    %924 = vmatprep.subr.mxu0 0.0
    %925 = vmatpush1.msra.mxu0 0.0
    %926 = vmatprep.subr.mxu0 0.0
    %927 = vmatpush1.msra.mxu0 0.0
    %928 = vmatprep.subr.mxu0 0.0
    %929 = vmatpush1.msra.mxu0 0.0
    %930 = vmatprep.subr.mxu0 0.0
    %931 = vmatpush1.msra.mxu0 0.0
    %932 = vmatprep.subr.mxu0 0.0
    %933 = vmatpush1.msra.mxu0 0.0
    %934 = vmatprep.subr.mxu0 0.0
    %935 = vmatpush1.msra.mxu0 0.0
    %936 = vmatprep.subr.mxu0 0.0
    %937 = vmatpush1.msra.mxu0 0.0
    %938 = vmatprep.subr.mxu0 0.0
    %939 = vmatpush1.msra.mxu0 0.0
    %940 = vmatprep.subr.mxu0 0.0
    %941 = vmatpush1.msra.mxu0 0.0
    %942 = vmatprep.subr.mxu0 0.0
    %943 = vmatpush1.msra.mxu0 0.0
    %944 = vmatprep.subr.mxu0 0.0
    %945 = vmatpush1.msra.mxu0 0.0
    %946 = vmatprep.subr.mxu0 0.0
    %947 = vmatpush1.msra.mxu0 0.0
    %948 = vmatprep.subr.mxu0 0.0
    %949 = vmatpush1.msra.mxu0 0.0
    %950 = vmatprep.subr.mxu0 0.0
    %951 = vmatpush1.msra.mxu0 0.0
    %952 = vmatprep.subr.mxu0 0.0
    %953 = vmatpush1.msra.mxu0 0.0
    %954 = vmatprep.subr.mxu0 0.0
    %955 = vmatpush1.msra.mxu0 0.0
    %956 = vmatprep.subr.mxu0 0.0
    %957 = vmatpush1.msra.mxu0 0.0
    %958 = vmatprep.subr.mxu0 0.0
    %959 = vmatpush1.msra.mxu0 0.0
    %960 = vmatprep.subr.mxu0 0.0
    %961 = vmatpush1.msra.mxu0 0.0
    %962 = vmatprep.subr.mxu0 0.0
    %963 = vmatpush1.msra.mxu0 0.0
    %964 = vmatprep.subr.mxu0 0.0
    %965 = vmatpush1.msra.mxu0 0.0
    %966 = vmatprep.subr.mxu0 0.0
    %967 = vmatpush1.msra.mxu0 0.0
    %968 = vmatprep.subr.mxu0 0.0
    %969 = vmatpush1.msra.mxu0 0.0
    %970 = vmatprep.subr.mxu0 0.0
    %971 = vmatpush1.msra.mxu0 0.0
    %972 = vmatprep.subr.mxu0 0.0
    %973 = vmatpush1.msra.mxu0 0.0
    %974 = vmatprep.subr.mxu0 0.0
    %975 = vmatpush1.msra.mxu0 0.0
    %976 = vmatprep.mubr.f32.mxu0 0.0
    %977 = vmatmul.mubr.f32.gmra.mrb[0].mxu0 %v907
    %v978 = vpop.f32.mrb[0].mxu0
    %v979 = vadd.f32 %v904, %v978
    %v980 = vpop.f32.mrb[0].mxu0
    %981 = vmatprep.mubr.f32.mxu0 0.0
    %982 = vmatmul.mubr.f32.gmra.mrb[0].mxu0 %v910
    %v983 = vpop.f32.mrb[0].mxu0
    %v984 = vadd.f32 %v904, %v983
    %v985 = vpop.f32.mrb[0].mxu0
    %986 = vdwg.mxu0
    %v987 = vmax.f32 %v979, 0.0
    %v988 = vmax.f32 %v984, 0.0
    %990 = vset.pattern.permute.xlu0 0
    %991 = vperm.xlu0 %990, %v892
    %v992 = vpop.permute.xlu0 %991
    %995 = vset.pattern.permute.xlu0 0
    %996 = vperm.xlu0 %995, %v894
    %v997 = vpop.permute.xlu0 %996
    %v999 = vmul.f32 %v992, %v987
    %v1000 = vmul.f32 %v997, %v988
    %v1001 = vsub.f32 1.0, %v892
    %v1002 = vsub.f32 1.0, %v894
    %1004 = vset.pattern.permute.xlu0 0
    %1005 = vperm.xlu0 %1004, %v1001
    %v1006 = vpop.permute.xlu0 %1005
    %1009 = vset.pattern.permute.xlu0 0
    %1010 = vperm.xlu0 %1009, %v1002
    %v1011 = vpop.permute.xlu0 %1010
    %v1013 = vmul.f32 %v1006, %v856
    %v1014 = vmul.f32 %v1011, %v857
    %v1015 = vadd.f32 %v999, %v1013
    %v1016 = vadd.f32 %v1000, %v1014
    %v1017 = vld [vmem:[%s9] sm:$0xff]
    %v1018 = vld [vmem:[%s9 + $0x8] sm:$0xff]
    %v1019 = vld [vmem:[%s9 + $0x10] sm:$0xff]
    %v1020 = vld [vmem:[%s9 + $0x18] sm:$0xff]
    %v1021 = vld [vmem:[%s10] sm:$0xff]
    %v1022 = vld [vmem:[%s10 + $0x8] sm:$0xff]
    %v1023 = vld [vmem:[%s10 + $0x10] sm:$0xff]
    %v1024 = vld [vmem:[%s10 + $0x18] sm:$0xff]
    %v1025 = vld [vmem:[%s11] sm:$0x1]
    %v1027 = vlaneseq
    %v1028 = vshrl.u32 %v1027, 7
    %v1029 = vsub.s32 0, %v1028
    %v1030 = vrot.slane %v1025, %v1029
    %v1033 = vsel %vm867, %v1015, 0
    %v1036 = vsel %vm867, %v1016, 0
    %1038 = vmatprep.subr.mxu0 0.0
    %1039 = vmatpush1.msra.mxu0 %v1017
    %1040 = vmatprep.subr.mxu0 0.0
    %1041 = vmatpush1.msra.mxu0 %v1018
    %1042 = vmatprep.subr.mxu0 0.0
    %1043 = vmatpush1.msra.mxu0 %v1019
    %1044 = vmatprep.subr.mxu0 0.0
    %1045 = vmatpush1.msra.mxu0 %v1020
    %1046 = vmatprep.subr.mxu0 0.0
    %1047 = vmatpush1.msra.mxu0 0.0
    %1048 = vmatprep.subr.mxu0 0.0
    %1049 = vmatpush1.msra.mxu0 0.0
    %1050 = vmatprep.subr.mxu0 0.0
    %1051 = vmatpush1.msra.mxu0 0.0
    %1052 = vmatprep.subr.mxu0 0.0
    %1053 = vmatpush1.msra.mxu0 0.0
    %1054 = vmatprep.subr.mxu0 0.0
    %1055 = vmatpush1.msra.mxu0 0.0
    %1056 = vmatprep.subr.mxu0 0.0
    %1057 = vmatpush1.msra.mxu0 0.0
    %1058 = vmatprep.subr.mxu0 0.0
    %1059 = vmatpush1.msra.mxu0 0.0
    %1060 = vmatprep.subr.mxu0 0.0
    %1061 = vmatpush1.msra.mxu0 0.0
    %1062 = vmatprep.subr.mxu0 0.0
    %1063 = vmatpush1.msra.mxu0 0.0
    %1064 = vmatprep.subr.mxu0 0.0
    %1065 = vmatpush1.msra.mxu0 0.0
    %1066 = vmatprep.subr.mxu0 0.0
    %1067 = vmatpush1.msra.mxu0 0.0
    %1068 = vmatprep.subr.mxu0 0.0
    %1069 = vmatpush1.msra.mxu0 0.0
    %1070 = vmatprep.subr.mxu0 0.0
    %1071 = vmatpush1.msra.mxu0 0.0
    %1072 = vmatprep.subr.mxu0 0.0
    %1073 = vmatpush1.msra.mxu0 0.0
    %1074 = vmatprep.subr.mxu0 0.0
    %1075 = vmatpush1.msra.mxu0 0.0
    %1076 = vmatprep.subr.mxu0 0.0
    %1077 = vmatpush1.msra.mxu0 0.0
    %1078 = vmatprep.subr.mxu0 0.0
    %1079 = vmatpush1.msra.mxu0 0.0
    %1080 = vmatprep.subr.mxu0 0.0
    %1081 = vmatpush1.msra.mxu0 0.0
    %1082 = vmatprep.subr.mxu0 0.0
    %1083 = vmatpush1.msra.mxu0 0.0
    %1084 = vmatprep.subr.mxu0 0.0
    %1085 = vmatpush1.msra.mxu0 0.0
    %1086 = vmatprep.subr.mxu0 0.0
    %1087 = vmatpush1.msra.mxu0 0.0
    %1088 = vmatprep.subr.mxu0 0.0
    %1089 = vmatpush1.msra.mxu0 0.0
    %1090 = vmatprep.subr.mxu0 0.0
    %1091 = vmatpush1.msra.mxu0 0.0
    %1092 = vmatprep.subr.mxu0 0.0
    %1093 = vmatpush1.msra.mxu0 0.0
    %1094 = vmatprep.subr.mxu0 0.0
    %1095 = vmatpush1.msra.mxu0 0.0
    %1096 = vmatprep.subr.mxu0 0.0
    %1097 = vmatpush1.msra.mxu0 0.0
    %1098 = vmatprep.subr.mxu0 0.0
    %1099 = vmatpush1.msra.mxu0 0.0
    %1100 = vmatprep.subr.mxu0 0.0
    %1101 = vmatpush1.msra.mxu0 0.0
    %1102 = vmatprep.mubr.f32.mxu0 0.0
    %1103 = vmatmul.mubr.f32.gmra.mrb[0].mxu0 %v1033
    %v1104 = vpop.f32.mrb[0].mxu0
    %v1105 = vadd.f32 %v1030, %v1104
    %v1106 = vpop.f32.mrb[0].mxu0
    %1107 = vmatprep.mubr.f32.mxu0 0.0
    %1108 = vmatmul.mubr.f32.gmra.mrb[0].mxu0 %v1036
    %v1109 = vpop.f32.mrb[0].mxu0
    %v1110 = vadd.f32 %v1030, %v1109
    %v1111 = vpop.f32.mrb[0].mxu0
    %1112 = vdwg.mxu0
    %v1113 = vld [vmem:[%s15] sm:$0x3]
    %v1114 = vld [vmem:[%s16] sm:$0x3]
    %v1116 = vrot.slane %v1110, 7
    %vm1118 = vcmask 1040384
    %v1119 = vsel %vm1118, %v1105, %v1116
    %v1121 = vsel %vm867, %v1113, 0
    %1123 = vmatprep.subr.mxu0 0.0
    %1124 = vmatpush1.msra.mxu0 %v1021
    %1125 = vmatprep.subr.mxu0 0.0
    %1126 = vmatpush1.msra.mxu0 %v1022
    %1127 = vmatprep.subr.mxu0 0.0
    %1128 = vmatpush1.msra.mxu0 %v1023
    %1129 = vmatprep.subr.mxu0 0.0
    %1130 = vmatpush1.msra.mxu0 %v1024
    %1131 = vmatprep.subr.mxu0 0.0
    %1132 = vmatpush1.msra.mxu0 0.0
    %1133 = vmatprep.subr.mxu0 0.0
    %1134 = vmatpush1.msra.mxu0 0.0
    %1135 = vmatprep.subr.mxu0 0.0
    %1136 = vmatpush1.msra.mxu0 0.0
    %1137 = vmatprep.subr.mxu0 0.0
    %1138 = vmatpush1.msra.mxu0 0.0
    %1139 = vmatprep.subr.mxu0 0.0
    %1140 = vmatpush1.msra.mxu0 0.0
    %1141 = vmatprep.subr.mxu0 0.0
    %1142 = vmatpush1.msra.mxu0 0.0
    %1143 = vmatprep.subr.mxu0 0.0
    %1144 = vmatpush1.msra.mxu0 0.0
    %1145 = vmatprep.subr.mxu0 0.0
    %1146 = vmatpush1.msra.mxu0 0.0
    %1147 = vmatprep.subr.mxu0 0.0
    %1148 = vmatpush1.msra.mxu0 0.0
    %1149 = vmatprep.subr.mxu0 0.0
    %1150 = vmatpush1.msra.mxu0 0.0
    %1151 = vmatprep.subr.mxu0 0.0
    %1152 = vmatpush1.msra.mxu0 0.0
    %1153 = vmatprep.subr.mxu0 0.0
    %1154 = vmatpush1.msra.mxu0 0.0
    %1155 = vmatprep.subr.mxu0 0.0
    %1156 = vmatpush1.msra.mxu0 0.0
    %1157 = vmatprep.subr.mxu0 0.0
    %1158 = vmatpush1.msra.mxu0 0.0
    %1159 = vmatprep.subr.mxu0 0.0
    %1160 = vmatpush1.msra.mxu0 0.0
    %1161 = vmatprep.subr.mxu0 0.0
    %1162 = vmatpush1.msra.mxu0 0.0
    %1163 = vmatprep.subr.mxu0 0.0
    %1164 = vmatpush1.msra.mxu0 0.0
    %1165 = vmatprep.subr.mxu0 0.0
    %1166 = vmatpush1.msra.mxu0 0.0
    %1167 = vmatprep.subr.mxu0 0.0
    %1168 = vmatpush1.msra.mxu0 0.0
    %1169 = vmatprep.subr.mxu0 0.0
    %1170 = vmatpush1.msra.mxu0 0.0
    %1171 = vmatprep.subr.mxu0 0.0
    %1172 = vmatpush1.msra.mxu0 0.0
    %1173 = vmatprep.subr.mxu0 0.0
    %1174 = vmatpush1.msra.mxu0 0.0
    %1175 = vmatprep.subr.mxu0 0.0
    %1176 = vmatpush1.msra.mxu0 0.0
    %1177 = vmatprep.subr.mxu0 0.0
    %1178 = vmatpush1.msra.mxu0 0.0
    %1179 = vmatprep.subr.mxu0 0.0
    %1180 = vmatpush1.msra.mxu0 0.0
    %1181 = vmatprep.subr.mxu0 0.0
    %1182 = vmatpush1.msra.mxu0 0.0
    %1183 = vmatprep.subr.mxu0 0.0
    %1184 = vmatpush1.msra.mxu0 0.0
    %1185 = vmatprep.subr.mxu0 0.0
    %1186 = vmatpush1.msra.mxu0 0.0
    %1187 = vmatprep.mubr.f32.mxu0 0.0
    %1188 = vmatmul.mubr.f32.gmra.mrb[0].mxu0 %v1121
    %v1189 = vpop.f32.mrb[0].mxu0
    %v1190 = vadd.f32 0.0, %v1189
    %v1191 = vpop.f32.mrb[0].mxu0
    %1192 = vdwg.mxu0
    %v1193 = vadd.f32 %v1119, %v1190
    %v1194 = vxor.u32 %v1193, 2147483648
    %v1195 = vmul.f32 %v1194, 1.442695
    %v1196 = vpow.pop %v1195
    %v1197 = vadd.f32 %v1196, 1.0
    %v1198 = vrcp.pop %v1197
    %v1199 = vmul.f32 1.0, %v1198
    %v1200 = vtanh.pop %v1193
    %1202 = vrot.lane.b32.xlu0 %v1114, 32
    %v1203 = vpop.permute.xlu0 %1202
    %v1205 = vmul.f32 %v1199, %v1203
    %1207 = vrot.lane.b32.xlu0 %v1200, 64
    %v1208 = vpop.permute.xlu0 %1207
    %v1210 = vmul.f32 %v1199, %v1208
    %1212 = vrot.lane.b32.xlu0 %v1210, 32
    %v1213 = vpop.permute.xlu0 %1212
    %v1215 = vadd.f32 %v1205, %v1213
    %v1216 = vtanh.pop %v1215
    %1218 = vrot.lane.b32.xlu0 %v1216, 64
    %v1219 = vpop.permute.xlu0 %1218
    %v1221 = vmul.f32 %v1199, %v1219
    %1223 = vrot.lane.b32.xlu0 %v1221, 32
    %v1224 = vpop.permute.xlu0 %1223
    %vm1226 = vcmask 253952
    %1227 = vst.msk [vmem:[#allocation2] sm:$0x1] %vm1226, %v1224
    %vm1228 = vcmask 254977
    %1229 = vst.msk [vmem:[#allocation2 + $0x7] sm:$0x2] %vm1228, %v1224
    %v1231 = vrot.slane %v1105, 1
    %v1233 = vsel %vm1118, %v1231, %v1110
    %v1234 = vsel %vm867, %v1224, 0
    %1236 = vmatprep.subr.mxu0 0.0
    %1237 = vmatpush1.msra.mxu0 %v1021
    %1238 = vmatprep.subr.mxu0 0.0
    %1239 = vmatpush1.msra.mxu0 %v1022
    %1240 = vmatprep.subr.mxu0 0.0
    %1241 = vmatpush1.msra.mxu0 %v1023
    %1242 = vmatprep.subr.mxu0 0.0
    %1243 = vmatpush1.msra.mxu0 %v1024
    %1244 = vmatprep.subr.mxu0 0.0
    %1245 = vmatpush1.msra.mxu0 0.0
    %1246 = vmatprep.subr.mxu0 0.0
    %1247 = vmatpush1.msra.mxu0 0.0
    %1248 = vmatprep.subr.mxu0 0.0
    %1249 = vmatpush1.msra.mxu0 0.0
    %1250 = vmatprep.subr.mxu0 0.0
    %1251 = vmatpush1.msra.mxu0 0.0
    %1252 = vmatprep.subr.mxu0 0.0
    %1253 = vmatpush1.msra.mxu0 0.0
    %1254 = vmatprep.subr.mxu0 0.0
    %1255 = vmatpush1.msra.mxu0 0.0
    %1256 = vmatprep.subr.mxu0 0.0
    %1257 = vmatpush1.msra.mxu0 0.0
    %1258 = vmatprep.subr.mxu0 0.0
    %1259 = vmatpush1.msra.mxu0 0.0
    %1260 = vmatprep.subr.mxu0 0.0
    %1261 = vmatpush1.msra.mxu0 0.0
    %1262 = vmatprep.subr.mxu0 0.0
    %1263 = vmatpush1.msra.mxu0 0.0
    %1264 = vmatprep.subr.mxu0 0.0
    %1265 = vmatpush1.msra.mxu0 0.0
    %1266 = vmatprep.subr.mxu0 0.0
    %1267 = vmatpush1.msra.mxu0 0.0
    %1268 = vmatprep.subr.mxu0 0.0
    %1269 = vmatpush1.msra.mxu0 0.0
    %1270 = vmatprep.subr.mxu0 0.0
    %1271 = vmatpush1.msra.mxu0 0.0
    %1272 = vmatprep.subr.mxu0 0.0
    %1273 = vmatpush1.msra.mxu0 0.0
    %1274 = vmatprep.subr.mxu0 0.0
    %1275 = vmatpush1.msra.mxu0 0.0
    %1276 = vmatprep.subr.mxu0 0.0
    %1277 = vmatpush1.msra.mxu0 0.0
    %1278 = vmatprep.subr.mxu0 0.0
    %1279 = vmatpush1.msra.mxu0 0.0
    %1280 = vmatprep.subr.mxu0 0.0
    %1281 = vmatpush1.msra.mxu0 0.0
    %1282 = vmatprep.subr.mxu0 0.0
    %1283 = vmatpush1.msra.mxu0 0.0
    %1284 = vmatprep.subr.mxu0 0.0
    %1285 = vmatpush1.msra.mxu0 0.0
    %1286 = vmatprep.subr.mxu0 0.0
    %1287 = vmatpush1.msra.mxu0 0.0
    %1288 = vmatprep.subr.mxu0 0.0
    %1289 = vmatpush1.msra.mxu0 0.0
    %1290 = vmatprep.subr.mxu0 0.0
    %1291 = vmatpush1.msra.mxu0 0.0
    %1292 = vmatprep.subr.mxu0 0.0
    %1293 = vmatpush1.msra.mxu0 0.0
    %1294 = vmatprep.subr.mxu0 0.0
    %1295 = vmatpush1.msra.mxu0 0.0
    %1296 = vmatprep.subr.mxu0 0.0
    %1297 = vmatpush1.msra.mxu0 0.0
    %1298 = vmatprep.subr.mxu0 0.0
    %1299 = vmatpush1.msra.mxu0 0.0
    %1300 = vmatprep.mubr.f32.mxu0 0.0
    %1301 = vmatmul.mubr.f32.gmra.mrb[0].mxu0 %v1234
    %v1302 = vpop.f32.mrb[0].mxu0
    %v1303 = vadd.f32 0.0, %v1302
    %v1304 = vpop.f32.mrb[0].mxu0
    %1305 = vdwg.mxu0
    %v1306 = vadd.f32 %v1233, %v1303
    %v1307 = vxor.u32 %v1306, 2147483648
    %v1308 = vmul.f32 %v1307, 1.442695
    %v1309 = vpow.pop %v1308
    %v1310 = vadd.f32 %v1309, 1.0
    %v1311 = vrcp.pop %v1310
    %v1312 = vmul.f32 1.0, %v1311
    %v1313 = vtanh.pop %v1306
    %v1314 = vmul.f32 %v1312, %v1215
    %1316 = vrot.lane.b32.xlu0 %v1313, 64
    %v1317 = vpop.permute.xlu0 %1316
    %v1319 = vmul.f32 %v1312, %v1317
    %1321 = vrot.lane.b32.xlu0 %v1319, 32
    %v1322 = vpop.permute.xlu0 %1321
    %v1324 = vadd.f32 %v1314, %v1322
    %v1325 = vtanh.pop %v1324
    %1327 = vrot.lane.b32.xlu0 %v1325, 64
    %v1328 = vpop.permute.xlu0 %1327
    %v1330 = vmul.f32 %v1312, %v1328
    %1332 = vrot.lane.b32.xlu0 %v1330, 32
    %v1333 = vpop.permute.xlu0 %1332
    %1335 = vst.msk [vmem:[#allocation2 + $0x1] sm:$0x1] %vm1226, %v1333
    %1336 = vst.msk [vmem:[#allocation2 + $0x8] sm:$0x2] %vm1228, %v1333
    %v1337 = vrot.slane %v1105, 2
    %v1339 = vrot.slane %v1110, 1
    %v1341 = vsel %vm1118, %v1337, %v1339
    %v1342 = vsel %vm867, %v1333, 0
    %1344 = vmatprep.subr.mxu0 0.0
    %1345 = vmatpush1.msra.mxu0 %v1021
    %1346 = vmatprep.subr.mxu0 0.0
    %1347 = vmatpush1.msra.mxu0 %v1022
    %1348 = vmatprep.subr.mxu0 0.0
    %1349 = vmatpush1.msra.mxu0 %v1023
    %1350 = vmatprep.subr.mxu0 0.0
    %1351 = vmatpush1.msra.mxu0 %v1024
    %1352 = vmatprep.subr.mxu0 0.0
    %1353 = vmatpush1.msra.mxu0 0.0
    %1354 = vmatprep.subr.mxu0 0.0
    %1355 = vmatpush1.msra.mxu0 0.0
    %1356 = vmatprep.subr.mxu0 0.0
    %1357 = vmatpush1.msra.mxu0 0.0
    %1358 = vmatprep.subr.mxu0 0.0
    %1359 = vmatpush1.msra.mxu0 0.0
    %1360 = vmatprep.subr.mxu0 0.0
    %1361 = vmatpush1.msra.mxu0 0.0
    %1362 = vmatprep.subr.mxu0 0.0
    %1363 = vmatpush1.msra.mxu0 0.0
    %1364 = vmatprep.subr.mxu0 0.0
    %1365 = vmatpush1.msra.mxu0 0.0
    %1366 = vmatprep.subr.mxu0 0.0
    %1367 = vmatpush1.msra.mxu0 0.0
    %1368 = vmatprep.subr.mxu0 0.0
    %1369 = vmatpush1.msra.mxu0 0.0
    %1370 = vmatprep.subr.mxu0 0.0
    %1371 = vmatpush1.msra.mxu0 0.0
    %1372 = vmatprep.subr.mxu0 0.0
    %1373 = vmatpush1.msra.mxu0 0.0
    %1374 = vmatprep.subr.mxu0 0.0
    %1375 = vmatpush1.msra.mxu0 0.0
    %1376 = vmatprep.subr.mxu0 0.0
    %1377 = vmatpush1.msra.mxu0 0.0
    %1378 = vmatprep.subr.mxu0 0.0
    %1379 = vmatpush1.msra.mxu0 0.0
    %1380 = vmatprep.subr.mxu0 0.0
    %1381 = vmatpush1.msra.mxu0 0.0
    %1382 = vmatprep.subr.mxu0 0.0
    %1383 = vmatpush1.msra.mxu0 0.0
    %1384 = vmatprep.subr.mxu0 0.0
    %1385 = vmatpush1.msra.mxu0 0.0
    %1386 = vmatprep.subr.mxu0 0.0
    %1387 = vmatpush1.msra.mxu0 0.0
    %1388 = vmatprep.subr.mxu0 0.0
    %1389 = vmatpush1.msra.mxu0 0.0
    %1390 = vmatprep.subr.mxu0 0.0
    %1391 = vmatpush1.msra.mxu0 0.0
    %1392 = vmatprep.subr.mxu0 0.0
    %1393 = vmatpush1.msra.mxu0 0.0
    %1394 = vmatprep.subr.mxu0 0.0
    %1395 = vmatpush1.msra.mxu0 0.0
    %1396 = vmatprep.subr.mxu0 0.0
    %1397 = vmatpush1.msra.mxu0 0.0
    %1398 = vmatprep.subr.mxu0 0.0
    %1399 = vmatpush1.msra.mxu0 0.0
    %1400 = vmatprep.subr.mxu0 0.0
    %1401 = vmatpush1.msra.mxu0 0.0
    %1402 = vmatprep.subr.mxu0 0.0
    %1403 = vmatpush1.msra.mxu0 0.0
    %1404 = vmatprep.subr.mxu0 0.0
    %1405 = vmatpush1.msra.mxu0 0.0
    %1406 = vmatprep.subr.mxu0 0.0
    %1407 = vmatpush1.msra.mxu0 0.0
    %1408 = vmatprep.mubr.f32.mxu0 0.0
    %1409 = vmatmul.mubr.f32.gmra.mrb[0].mxu0 %v1342
    %v1410 = vpop.f32.mrb[0].mxu0
    %v1411 = vadd.f32 0.0, %v1410
    %v1412 = vpop.f32.mrb[0].mxu0
    %1413 = vdwg.mxu0
    %v1414 = vadd.f32 %v1341, %v1411
    %v1415 = vxor.u32 %v1414, 2147483648
    %v1416 = vmul.f32 %v1415, 1.442695
    %v1417 = vpow.pop %v1416
    %v1418 = vadd.f32 %v1417, 1.0
    %v1419 = vrcp.pop %v1418
    %v1420 = vmul.f32 1.0, %v1419
    %v1421 = vtanh.pop %v1414
    %v1422 = vmul.f32 %v1420, %v1324
    %1424 = vrot.lane.b32.xlu0 %v1421, 64
    %v1425 = vpop.permute.xlu0 %1424
    %v1427 = vmul.f32 %v1420, %v1425
    %1429 = vrot.lane.b32.xlu0 %v1427, 32
    %v1430 = vpop.permute.xlu0 %1429
    %v1432 = vadd.f32 %v1422, %v1430
    %v1433 = vtanh.pop %v1432
    %1435 = vrot.lane.b32.xlu0 %v1433, 64
    %v1436 = vpop.permute.xlu0 %1435
    %v1438 = vmul.f32 %v1420, %v1436
    %1440 = vrot.lane.b32.xlu0 %v1438, 32
    %v1441 = vpop.permute.xlu0 %1440
    %1443 = vst.msk [vmem:[#allocation2 + $0x2] sm:$0x1] %vm1226, %v1441
    %1444 = vst.msk [vmem:[#allocation2 + $0x9] sm:$0x2] %vm1228, %v1441
    %v1445 = vrot.slane %v1105, 3
    %v1447 = vrot.slane %v1110, 2
    %v1449 = vsel %vm1118, %v1445, %v1447
    %v1450 = vsel %vm867, %v1441, 0
    %1452 = vmatprep.subr.mxu0 0.0
    %1453 = vmatpush1.msra.mxu0 %v1021
    %1454 = vmatprep.subr.mxu0 0.0
    %1455 = vmatpush1.msra.mxu0 %v1022
    %1456 = vmatprep.subr.mxu0 0.0
    %1457 = vmatpush1.msra.mxu0 %v1023
    %1458 = vmatprep.subr.mxu0 0.0
    %1459 = vmatpush1.msra.mxu0 %v1024
    %1460 = vmatprep.subr.mxu0 0.0
    %1461 = vmatpush1.msra.mxu0 0.0
    %1462 = vmatprep.subr.mxu0 0.0
    %1463 = vmatpush1.msra.mxu0 0.0
    %1464 = vmatprep.subr.mxu0 0.0
    %1465 = vmatpush1.msra.mxu0 0.0
    %1466 = vmatprep.subr.mxu0 0.0
    %1467 = vmatpush1.msra.mxu0 0.0
    %1468 = vmatprep.subr.mxu0 0.0
    %1469 = vmatpush1.msra.mxu0 0.0
    %1470 = vmatprep.subr.mxu0 0.0
    %1471 = vmatpush1.msra.mxu0 0.0
    %1472 = vmatprep.subr.mxu0 0.0
    %1473 = vmatpush1.msra.mxu0 0.0
    %1474 = vmatprep.subr.mxu0 0.0
    %1475 = vmatpush1.msra.mxu0 0.0
    %1476 = vmatprep.subr.mxu0 0.0
    %1477 = vmatpush1.msra.mxu0 0.0
    %1478 = vmatprep.subr.mxu0 0.0
    %1479 = vmatpush1.msra.mxu0 0.0
    %1480 = vmatprep.subr.mxu0 0.0
    %1481 = vmatpush1.msra.mxu0 0.0
    %1482 = vmatprep.subr.mxu0 0.0
    %1483 = vmatpush1.msra.mxu0 0.0
    %1484 = vmatprep.subr.mxu0 0.0
    %1485 = vmatpush1.msra.mxu0 0.0
    %1486 = vmatprep.subr.mxu0 0.0
    %1487 = vmatpush1.msra.mxu0 0.0
    %1488 = vmatprep.subr.mxu0 0.0
    %1489 = vmatpush1.msra.mxu0 0.0
    %1490 = vmatprep.subr.mxu0 0.0
    %1491 = vmatpush1.msra.mxu0 0.0
    %1492 = vmatprep.subr.mxu0 0.0
    %1493 = vmatpush1.msra.mxu0 0.0
    %1494 = vmatprep.subr.mxu0 0.0
    %1495 = vmatpush1.msra.mxu0 0.0
    %1496 = vmatprep.subr.mxu0 0.0
    %1497 = vmatpush1.msra.mxu0 0.0
    %1498 = vmatprep.subr.mxu0 0.0
    %1499 = vmatpush1.msra.mxu0 0.0
    %1500 = vmatprep.subr.mxu0 0.0
    %1501 = vmatpush1.msra.mxu0 0.0
    %1502 = vmatprep.subr.mxu0 0.0
    %1503 = vmatpush1.msra.mxu0 0.0
    %1504 = vmatprep.subr.mxu0 0.0
    %1505 = vmatpush1.msra.mxu0 0.0
    %1506 = vmatprep.subr.mxu0 0.0
    %1507 = vmatpush1.msra.mxu0 0.0
    %1508 = vmatprep.subr.mxu0 0.0
    %1509 = vmatpush1.msra.mxu0 0.0
    %1510 = vmatprep.subr.mxu0 0.0
    %1511 = vmatpush1.msra.mxu0 0.0
    %1512 = vmatprep.subr.mxu0 0.0
    %1513 = vmatpush1.msra.mxu0 0.0
    %1514 = vmatprep.subr.mxu0 0.0
    %1515 = vmatpush1.msra.mxu0 0.0
    %1516 = vmatprep.mubr.f32.mxu0 0.0
    %1517 = vmatmul.mubr.f32.gmra.mrb[0].mxu0 %v1450
    %v1518 = vpop.f32.mrb[0].mxu0
    %v1519 = vadd.f32 0.0, %v1518
    %v1520 = vpop.f32.mrb[0].mxu0
    %1521 = vdwg.mxu0
    %v1522 = vadd.f32 %v1449, %v1519
    %v1523 = vxor.u32 %v1522, 2147483648
    %v1524 = vmul.f32 %v1523, 1.442695
    %v1525 = vpow.pop %v1524
    %v1526 = vadd.f32 %v1525, 1.0
    %v1527 = vrcp.pop %v1526
    %v1528 = vmul.f32 1.0, %v1527
    %v1529 = vtanh.pop %v1522
    %v1530 = vmul.f32 %v1528, %v1432
    %1532 = vrot.lane.b32.xlu0 %v1529, 64
    %v1533 = vpop.permute.xlu0 %1532
    %v1535 = vmul.f32 %v1528, %v1533
    %1537 = vrot.lane.b32.xlu0 %v1535, 32
    %v1538 = vpop.permute.xlu0 %1537
    %v1540 = vadd.f32 %v1530, %v1538
    %v1541 = vtanh.pop %v1540
    %1543 = vrot.lane.b32.xlu0 %v1541, 64
    %v1544 = vpop.permute.xlu0 %1543
    %v1546 = vmul.f32 %v1528, %v1544
    %1548 = vrot.lane.b32.xlu0 %v1546, 32
    %v1549 = vpop.permute.xlu0 %1548
    %1551 = vst.msk [vmem:[#allocation2 + $0x3] sm:$0x1] %vm1226, %v1549
    %1552 = vst.msk [vmem:[#allocation2 + $0xa] sm:$0x2] %vm1228, %v1549
    %v1553 = vrot.slane %v1105, 4
    %v1555 = vrot.slane %v1110, 3
    %v1557 = vsel %vm1118, %v1553, %v1555
    %v1558 = vsel %vm867, %v1549, 0
    %1560 = vmatprep.subr.mxu0 0.0
    %1561 = vmatpush1.msra.mxu0 %v1021
    %1562 = vmatprep.subr.mxu0 0.0
    %1563 = vmatpush1.msra.mxu0 %v1022
    %1564 = vmatprep.subr.mxu0 0.0
    %1565 = vmatpush1.msra.mxu0 %v1023
    %1566 = vmatprep.subr.mxu0 0.0
    %1567 = vmatpush1.msra.mxu0 %v1024
    %1568 = vmatprep.subr.mxu0 0.0
    %1569 = vmatpush1.msra.mxu0 0.0
    %1570 = vmatprep.subr.mxu0 0.0
    %1571 = vmatpush1.msra.mxu0 0.0
    %1572 = vmatprep.subr.mxu0 0.0
    %1573 = vmatpush1.msra.mxu0 0.0
    %1574 = vmatprep.subr.mxu0 0.0
    %1575 = vmatpush1.msra.mxu0 0.0
    %1576 = vmatprep.subr.mxu0 0.0
    %1577 = vmatpush1.msra.mxu0 0.0
    %1578 = vmatprep.subr.mxu0 0.0
    %1579 = vmatpush1.msra.mxu0 0.0
    %1580 = vmatprep.subr.mxu0 0.0
    %1581 = vmatpush1.msra.mxu0 0.0
    %1582 = vmatprep.subr.mxu0 0.0
    %1583 = vmatpush1.msra.mxu0 0.0
    %1584 = vmatprep.subr.mxu0 0.0
    %1585 = vmatpush1.msra.mxu0 0.0
    %1586 = vmatprep.subr.mxu0 0.0
    %1587 = vmatpush1.msra.mxu0 0.0
    %1588 = vmatprep.subr.mxu0 0.0
    %1589 = vmatpush1.msra.mxu0 0.0
    %1590 = vmatprep.subr.mxu0 0.0
    %1591 = vmatpush1.msra.mxu0 0.0
    %1592 = vmatprep.subr.mxu0 0.0
    %1593 = vmatpush1.msra.mxu0 0.0
    %1594 = vmatprep.subr.mxu0 0.0
    %1595 = vmatpush1.msra.mxu0 0.0
    %1596 = vmatprep.subr.mxu0 0.0
    %1597 = vmatpush1.msra.mxu0 0.0
    %1598 = vmatprep.subr.mxu0 0.0
    %1599 = vmatpush1.msra.mxu0 0.0
    %1600 = vmatprep.subr.mxu0 0.0
    %1601 = vmatpush1.msra.mxu0 0.0
    %1602 = vmatprep.subr.mxu0 0.0
    %1603 = vmatpush1.msra.mxu0 0.0
    %1604 = vmatprep.subr.mxu0 0.0
    %1605 = vmatpush1.msra.mxu0 0.0
    %1606 = vmatprep.subr.mxu0 0.0
    %1607 = vmatpush1.msra.mxu0 0.0
    %1608 = vmatprep.subr.mxu0 0.0
    %1609 = vmatpush1.msra.mxu0 0.0
    %1610 = vmatprep.subr.mxu0 0.0
    %1611 = vmatpush1.msra.mxu0 0.0
    %1612 = vmatprep.subr.mxu0 0.0
    %1613 = vmatpush1.msra.mxu0 0.0
    %1614 = vmatprep.subr.mxu0 0.0
    %1615 = vmatpush1.msra.mxu0 0.0
    %1616 = vmatprep.subr.mxu0 0.0
    %1617 = vmatpush1.msra.mxu0 0.0
    %1618 = vmatprep.subr.mxu0 0.0
    %1619 = vmatpush1.msra.mxu0 0.0
    %1620 = vmatprep.subr.mxu0 0.0
    %1621 = vmatpush1.msra.mxu0 0.0
    %1622 = vmatprep.subr.mxu0 0.0
    %1623 = vmatpush1.msra.mxu0 0.0
    %1624 = vmatprep.mubr.f32.mxu0 0.0
    %1625 = vmatmul.mubr.f32.gmra.mrb[0].mxu0 %v1558
    %v1626 = vpop.f32.mrb[0].mxu0
    %v1627 = vadd.f32 0.0, %v1626
    %v1628 = vpop.f32.mrb[0].mxu0
    %1629 = vdwg.mxu0
    %v1630 = vadd.f32 %v1557, %v1627
    %v1631 = vxor.u32 %v1630, 2147483648
    %v1632 = vmul.f32 %v1631, 1.442695
    %v1633 = vpow.pop %v1632
    %v1634 = vadd.f32 %v1633, 1.0
    %v1635 = vrcp.pop %v1634
    %v1636 = vmul.f32 1.0, %v1635
    %v1637 = vtanh.pop %v1630
    %v1638 = vmul.f32 %v1636, %v1540
    %1640 = vrot.lane.b32.xlu0 %v1637, 64
    %v1641 = vpop.permute.xlu0 %1640
    %v1643 = vmul.f32 %v1636, %v1641
    %1645 = vrot.lane.b32.xlu0 %v1643, 32
    %v1646 = vpop.permute.xlu0 %1645
    %v1648 = vadd.f32 %v1638, %v1646
    %v1649 = vtanh.pop %v1648
    %1651 = vrot.lane.b32.xlu0 %v1649, 64
    %v1652 = vpop.permute.xlu0 %1651
    %v1654 = vmul.f32 %v1636, %v1652
    %1656 = vrot.lane.b32.xlu0 %v1654, 32
    %v1657 = vpop.permute.xlu0 %1656
    %1659 = vst.msk [vmem:[#allocation2 + $0x4] sm:$0x1] %vm1226, %v1657
    %1660 = vst.msk [vmem:[#allocation2 + $0xb] sm:$0x2] %vm1228, %v1657
    %v1661 = vrot.slane %v1105, 5
    %v1663 = vrot.slane %v1110, 4
    %v1665 = vsel %vm1118, %v1661, %v1663
    %v1666 = vsel %vm867, %v1657, 0
    %1668 = vmatprep.subr.mxu0 0.0
    %1669 = vmatpush1.msra.mxu0 %v1021
    %1670 = vmatprep.subr.mxu0 0.0
    %1671 = vmatpush1.msra.mxu0 %v1022
    %1672 = vmatprep.subr.mxu0 0.0
    %1673 = vmatpush1.msra.mxu0 %v1023
    %1674 = vmatprep.subr.mxu0 0.0
    %1675 = vmatpush1.msra.mxu0 %v1024
    %1676 = vmatprep.subr.mxu0 0.0
    %1677 = vmatpush1.msra.mxu0 0.0
    %1678 = vmatprep.subr.mxu0 0.0
    %1679 = vmatpush1.msra.mxu0 0.0
    %1680 = vmatprep.subr.mxu0 0.0
    %1681 = vmatpush1.msra.mxu0 0.0
    %1682 = vmatprep.subr.mxu0 0.0
    %1683 = vmatpush1.msra.mxu0 0.0
    %1684 = vmatprep.subr.mxu0 0.0
    %1685 = vmatpush1.msra.mxu0 0.0
    %1686 = vmatprep.subr.mxu0 0.0
    %1687 = vmatpush1.msra.mxu0 0.0
    %1688 = vmatprep.subr.mxu0 0.0
    %1689 = vmatpush1.msra.mxu0 0.0
    %1690 = vmatprep.subr.mxu0 0.0
    %1691 = vmatpush1.msra.mxu0 0.0
    %1692 = vmatprep.subr.mxu0 0.0
    %1693 = vmatpush1.msra.mxu0 0.0
    %1694 = vmatprep.subr.mxu0 0.0
    %1695 = vmatpush1.msra.mxu0 0.0
    %1696 = vmatprep.subr.mxu0 0.0
    %1697 = vmatpush1.msra.mxu0 0.0
    %1698 = vmatprep.subr.mxu0 0.0
    %1699 = vmatpush1.msra.mxu0 0.0
    %1700 = vmatprep.subr.mxu0 0.0
    %1701 = vmatpush1.msra.mxu0 0.0
    %1702 = vmatprep.subr.mxu0 0.0
    %1703 = vmatpush1.msra.mxu0 0.0
    %1704 = vmatprep.subr.mxu0 0.0
    %1705 = vmatpush1.msra.mxu0 0.0
    %1706 = vmatprep.subr.mxu0 0.0
    %1707 = vmatpush1.msra.mxu0 0.0
    %1708 = vmatprep.subr.mxu0 0.0
    %1709 = vmatpush1.msra.mxu0 0.0
    %1710 = vmatprep.subr.mxu0 0.0
    %1711 = vmatpush1.msra.mxu0 0.0
    %1712 = vmatprep.subr.mxu0 0.0
    %1713 = vmatpush1.msra.mxu0 0.0
    %1714 = vmatprep.subr.mxu0 0.0
    %1715 = vmatpush1.msra.mxu0 0.0
    %1716 = vmatprep.subr.mxu0 0.0
    %1717 = vmatpush1.msra.mxu0 0.0
    %1718 = vmatprep.subr.mxu0 0.0
    %1719 = vmatpush1.msra.mxu0 0.0
    %1720 = vmatprep.subr.mxu0 0.0
    %1721 = vmatpush1.msra.mxu0 0.0
    %1722 = vmatprep.subr.mxu0 0.0
    %1723 = vmatpush1.msra.mxu0 0.0
    %1724 = vmatprep.subr.mxu0 0.0
    %1725 = vmatpush1.msra.mxu0 0.0
    %1726 = vmatprep.subr.mxu0 0.0
    %1727 = vmatpush1.msra.mxu0 0.0
    %1728 = vmatprep.subr.mxu0 0.0
    %1729 = vmatpush1.msra.mxu0 0.0
    %1730 = vmatprep.subr.mxu0 0.0
    %1731 = vmatpush1.msra.mxu0 0.0
    %1732 = vmatprep.mubr.f32.mxu0 0.0
    %1733 = vmatmul.mubr.f32.gmra.mrb[0].mxu0 %v1666
    %v1734 = vpop.f32.mrb[0].mxu0
    %v1735 = vadd.f32 0.0, %v1734
    %v1736 = vpop.f32.mrb[0].mxu0
    %1737 = vdwg.mxu0
    %v1738 = vadd.f32 %v1665, %v1735
    %v1739 = vxor.u32 %v1738, 2147483648
    %v1740 = vmul.f32 %v1739, 1.442695
    %v1741 = vpow.pop %v1740
    %v1742 = vadd.f32 %v1741, 1.0
    %v1743 = vrcp.pop %v1742
    %v1744 = vmul.f32 1.0, %v1743
    %v1745 = vtanh.pop %v1738
    %v1746 = vmul.f32 %v1744, %v1648
    %1748 = vrot.lane.b32.xlu0 %v1745, 64
    %v1749 = vpop.permute.xlu0 %1748
    %v1751 = vmul.f32 %v1744, %v1749
    %1753 = vrot.lane.b32.xlu0 %v1751, 32
    %v1754 = vpop.permute.xlu0 %1753
    %v1756 = vadd.f32 %v1746, %v1754
    %v1757 = vtanh.pop %v1756
    %1759 = vrot.lane.b32.xlu0 %v1757, 64
    %v1760 = vpop.permute.xlu0 %1759
    %v1762 = vmul.f32 %v1744, %v1760
    %1764 = vrot.lane.b32.xlu0 %v1762, 32
    %v1765 = vpop.permute.xlu0 %1764
    %1767 = vst.msk [vmem:[#allocation2 + $0x5] sm:$0x1] %vm1226, %v1765
    %1768 = vst.msk [vmem:[#allocation2 + $0xc] sm:$0x2] %vm1228, %v1765
    %v1769 = vrot.slane %v1105, 6
    %v1771 = vrot.slane %v1110, 5
    %v1773 = vsel %vm1118, %v1769, %v1771
    %v1774 = vsel %vm867, %v1765, 0
    %1776 = vmatprep.subr.mxu0 0.0
    %1777 = vmatpush1.msra.mxu0 %v1021
    %1778 = vmatprep.subr.mxu0 0.0
    %1779 = vmatpush1.msra.mxu0 %v1022
    %1780 = vmatprep.subr.mxu0 0.0
    %1781 = vmatpush1.msra.mxu0 %v1023
    %1782 = vmatprep.subr.mxu0 0.0
    %1783 = vmatpush1.msra.mxu0 %v1024
    %1784 = vmatprep.subr.mxu0 0.0
    %1785 = vmatpush1.msra.mxu0 0.0
    %1786 = vmatprep.subr.mxu0 0.0
    %1787 = vmatpush1.msra.mxu0 0.0
    %1788 = vmatprep.subr.mxu0 0.0
    %1789 = vmatpush1.msra.mxu0 0.0
    %1790 = vmatprep.subr.mxu0 0.0
    %1791 = vmatpush1.msra.mxu0 0.0
    %1792 = vmatprep.subr.mxu0 0.0
    %1793 = vmatpush1.msra.mxu0 0.0
    %1794 = vmatprep.subr.mxu0 0.0
    %1795 = vmatpush1.msra.mxu0 0.0
    %1796 = vmatprep.subr.mxu0 0.0
    %1797 = vmatpush1.msra.mxu0 0.0
    %1798 = vmatprep.subr.mxu0 0.0
    %1799 = vmatpush1.msra.mxu0 0.0
    %1800 = vmatprep.subr.mxu0 0.0
    %1801 = vmatpush1.msra.mxu0 0.0
    %1802 = vmatprep.subr.mxu0 0.0
    %1803 = vmatpush1.msra.mxu0 0.0
    %1804 = vmatprep.subr.mxu0 0.0
    %1805 = vmatpush1.msra.mxu0 0.0
    %1806 = vmatprep.subr.mxu0 0.0
    %1807 = vmatpush1.msra.mxu0 0.0
    %1808 = vmatprep.subr.mxu0 0.0
    %1809 = vmatpush1.msra.mxu0 0.0
    %1810 = vmatprep.subr.mxu0 0.0
    %1811 = vmatpush1.msra.mxu0 0.0
    %1812 = vmatprep.subr.mxu0 0.0
    %1813 = vmatpush1.msra.mxu0 0.0
    %1814 = vmatprep.subr.mxu0 0.0
    %1815 = vmatpush1.msra.mxu0 0.0
    %1816 = vmatprep.subr.mxu0 0.0
    %1817 = vmatpush1.msra.mxu0 0.0
    %1818 = vmatprep.subr.mxu0 0.0
    %1819 = vmatpush1.msra.mxu0 0.0
    %1820 = vmatprep.subr.mxu0 0.0
    %1821 = vmatpush1.msra.mxu0 0.0
    %1822 = vmatprep.subr.mxu0 0.0
    %1823 = vmatpush1.msra.mxu0 0.0
    %1824 = vmatprep.subr.mxu0 0.0
    %1825 = vmatpush1.msra.mxu0 0.0
    %1826 = vmatprep.subr.mxu0 0.0
    %1827 = vmatpush1.msra.mxu0 0.0
    %1828 = vmatprep.subr.mxu0 0.0
    %1829 = vmatpush1.msra.mxu0 0.0
    %1830 = vmatprep.subr.mxu0 0.0
    %1831 = vmatpush1.msra.mxu0 0.0
    %1832 = vmatprep.subr.mxu0 0.0
    %1833 = vmatpush1.msra.mxu0 0.0
    %1834 = vmatprep.subr.mxu0 0.0
    %1835 = vmatpush1.msra.mxu0 0.0
    %1836 = vmatprep.subr.mxu0 0.0
    %1837 = vmatpush1.msra.mxu0 0.0
    %1838 = vmatprep.subr.mxu0 0.0
    %1839 = vmatpush1.msra.mxu0 0.0
    %1840 = vmatprep.mubr.f32.mxu0 0.0
    %1841 = vmatmul.mubr.f32.gmra.mrb[0].mxu0 %v1774
    %v1842 = vpop.f32.mrb[0].mxu0
    %v1843 = vadd.f32 0.0, %v1842
    %v1844 = vpop.f32.mrb[0].mxu0
    %1845 = vdwg.mxu0
    %v1846 = vadd.f32 %v1773, %v1843
    %v1847 = vxor.u32 %v1846, 2147483648
    %v1848 = vmul.f32 %v1847, 1.442695
    %v1849 = vpow.pop %v1848
    %v1850 = vadd.f32 %v1849, 1.0
    %v1851 = vrcp.pop %v1850
    %v1852 = vmul.f32 1.0, %v1851
    %v1853 = vtanh.pop %v1846
    %v1854 = vmul.f32 %v1852, %v1756
    %1856 = vrot.lane.b32.xlu0 %v1853, 64
    %v1857 = vpop.permute.xlu0 %1856
    %v1859 = vmul.f32 %v1852, %v1857
    %1861 = vrot.lane.b32.xlu0 %v1859, 32
    %v1862 = vpop.permute.xlu0 %1861
    %v1864 = vadd.f32 %v1854, %v1862
    %v1865 = vtanh.pop %v1864
    %1867 = vrot.lane.b32.xlu0 %v1865, 64
    %v1868 = vpop.permute.xlu0 %1867
    %v1870 = vmul.f32 %v1852, %v1868
    %1872 = vrot.lane.b32.xlu0 %v1870, 32
    %v1873 = vpop.permute.xlu0 %1872
    %1875 = vst.msk [vmem:[#allocation2 + $0x6] sm:$0x1] %vm1226, %v1873
    %1876 = vst.msk [vmem:[#allocation2 + $0xd] sm:$0x2] %vm1228, %v1873
    %v1877 = vrot.slane %v1105, 7
    %v1879 = vrot.slane %v1110, 6
    %v1881 = vsel %vm1118, %v1877, %v1879
    %v1882 = vsel %vm867, %v1873, 0
    %1884 = vmatprep.subr.mxu0 0.0
    %1885 = vmatpush1.msra.mxu0 %v1021
    %1886 = vmatprep.subr.mxu0 0.0
    %1887 = vmatpush1.msra.mxu0 %v1022
    %1888 = vmatprep.subr.mxu0 0.0
    %1889 = vmatpush1.msra.mxu0 %v1023
    %1890 = vmatprep.subr.mxu0 0.0
    %1891 = vmatpush1.msra.mxu0 %v1024
    %1892 = vmatprep.subr.mxu0 0.0
    %1893 = vmatpush1.msra.mxu0 0.0
    %1894 = vmatprep.subr.mxu0 0.0
    %1895 = vmatpush1.msra.mxu0 0.0
    %1896 = vmatprep.subr.mxu0 0.0
    %1897 = vmatpush1.msra.mxu0 0.0
    %1898 = vmatprep.subr.mxu0 0.0
    %1899 = vmatpush1.msra.mxu0 0.0
    %1900 = vmatprep.subr.mxu0 0.0
    %1901 = vmatpush1.msra.mxu0 0.0
    %1902 = vmatprep.subr.mxu0 0.0
    %1903 = vmatpush1.msra.mxu0 0.0
    %1904 = vmatprep.subr.mxu0 0.0
    %1905 = vmatpush1.msra.mxu0 0.0
    %1906 = vmatprep.subr.mxu0 0.0
    %1907 = vmatpush1.msra.mxu0 0.0
    %1908 = vmatprep.subr.mxu0 0.0
    %1909 = vmatpush1.msra.mxu0 0.0
    %1910 = vmatprep.subr.mxu0 0.0
    %1911 = vmatpush1.msra.mxu0 0.0
    %1912 = vmatprep.subr.mxu0 0.0
    %1913 = vmatpush1.msra.mxu0 0.0
    %1914 = vmatprep.subr.mxu0 0.0
    %1915 = vmatpush1.msra.mxu0 0.0
    %1916 = vmatprep.subr.mxu0 0.0
    %1917 = vmatpush1.msra.mxu0 0.0
    %1918 = vmatprep.subr.mxu0 0.0
    %1919 = vmatpush1.msra.mxu0 0.0
    %1920 = vmatprep.subr.mxu0 0.0
    %1921 = vmatpush1.msra.mxu0 0.0
    %1922 = vmatprep.subr.mxu0 0.0
    %1923 = vmatpush1.msra.mxu0 0.0
    %1924 = vmatprep.subr.mxu0 0.0
    %1925 = vmatpush1.msra.mxu0 0.0
    %1926 = vmatprep.subr.mxu0 0.0
    %1927 = vmatpush1.msra.mxu0 0.0
    %1928 = vmatprep.subr.mxu0 0.0
    %1929 = vmatpush1.msra.mxu0 0.0
    %1930 = vmatprep.subr.mxu0 0.0
    %1931 = vmatpush1.msra.mxu0 0.0
    %1932 = vmatprep.subr.mxu0 0.0
    %1933 = vmatpush1.msra.mxu0 0.0
    %1934 = vmatprep.subr.mxu0 0.0
    %1935 = vmatpush1.msra.mxu0 0.0
    %1936 = vmatprep.subr.mxu0 0.0
    %1937 = vmatpush1.msra.mxu0 0.0
    %1938 = vmatprep.subr.mxu0 0.0
    %1939 = vmatpush1.msra.mxu0 0.0
    %1940 = vmatprep.subr.mxu0 0.0
    %1941 = vmatpush1.msra.mxu0 0.0
    %1942 = vmatprep.subr.mxu0 0.0
    %1943 = vmatpush1.msra.mxu0 0.0
    %1944 = vmatprep.subr.mxu0 0.0
    %1945 = vmatpush1.msra.mxu0 0.0
    %1946 = vmatprep.subr.mxu0 0.0
    %1947 = vmatpush1.msra.mxu0 0.0
    %1948 = vmatprep.mubr.f32.mxu0 0.0
    %1949 = vmatmul.mubr.f32.gmra.mrb[0].mxu0 %v1882
    %v1950 = vpop.f32.mrb[0].mxu0
    %v1951 = vadd.f32 0.0, %v1950
    %v1952 = vpop.f32.mrb[0].mxu0
    %1953 = vdwg.mxu0
    %v1954 = vadd.f32 %v1881, %v1951
    %v1955 = vxor.u32 %v1954, 2147483648
    %v1956 = vmul.f32 %v1955, 1.442695
    %v1957 = vpow.pop %v1956
    %v1958 = vadd.f32 %v1957, 1.0
    %v1959 = vrcp.pop %v1958
    %v1960 = vmul.f32 1.0, %v1959
    %v1961 = vtanh.pop %v1954
    %v1962 = vmul.f32 %v1960, %v1864
    %1964 = vrot.lane.b32.xlu0 %v1961, 64
    %v1965 = vpop.permute.xlu0 %1964
    %v1967 = vmul.f32 %v1960, %v1965
    %1969 = vrot.lane.b32.xlu0 %v1967, 32
    %v1970 = vpop.permute.xlu0 %1969
    %v1972 = vadd.f32 %v1962, %v1970
    %v1973 = vtanh.pop %v1972
    %1975 = vrot.lane.b32.xlu0 %v1973, 64
    %v1976 = vpop.permute.xlu0 %1975
    %v1978 = vmul.f32 %v1960, %v1976
    %1980 = vrot.lane.b32.xlu0 %v1978, 32
    %v1981 = vpop.permute.xlu0 %1980
    %1983 = vst.msk [vmem:[#allocation2 + $0x7] sm:$0x1] %vm1226, %v1981
    %1984 = vst.msk [vmem:[#allocation2 + $0xe] sm:$0x2] %vm1228, %v1981
    %vm1985 = vcmask 254976
    %1986 = vst.msk [vmem:[#allocation6] sm:$0x3] %vm1985, %v1981
    %1988 = vrot.lane.b32.xlu0 %v1972, 96
    %v1989 = vpop.permute.xlu0 %1988
    %1991 = vst.msk [vmem:[#allocation8] sm:$0x3] %vm1985, %v1989
    %v1992 = vld [vmem:[#allocation2] sm:$0xff]
    %v1993 = vld [vmem:[#allocation2 + $0x8] sm:$0xff]
    %v1994 = vld [vmem:[%s12] sm:$0xff]
    %v1995 = vld [vmem:[%s12 + $0x8] sm:$0xff]
    %v1996 = vld [vmem:[%s12 + $0x10] sm:$0xff]
    %v1997 = vld [vmem:[%s12 + $0x18] sm:$0xff]
    %v1998 = vld [vmem:[%s13] sm:$0xff]
    %v1999 = vld [vmem:[%s13 + $0x8] sm:$0xff]
    %v2000 = vld [vmem:[%s13 + $0x10] sm:$0xff]
    %v2001 = vld [vmem:[%s13 + $0x18] sm:$0xff]
    %v2002 = vld [vmem:[%s14] sm:$0x1]
    %v2004 = vlaneseq
    %v2005 = vshrl.u32 %v2004, 7
    %v2006 = vsub.s32 0, %v2005
    %v2007 = vrot.slane %v2002, %v2006
    %v2010 = vsel %vm867, %v1992, 0
    %v2013 = vsel %vm867, %v1993, 0
    %2015 = vmatprep.subr.mxu0 0.0
    %2016 = vmatpush1.msra.mxu0 %v1994
    %2017 = vmatprep.subr.mxu0 0.0
    %2018 = vmatpush1.msra.mxu0 %v1995
    %2019 = vmatprep.subr.mxu0 0.0
    %2020 = vmatpush1.msra.mxu0 %v1996
    %2021 = vmatprep.subr.mxu0 0.0
    %2022 = vmatpush1.msra.mxu0 %v1997
    %2023 = vmatprep.subr.mxu0 0.0
    %2024 = vmatpush1.msra.mxu0 0.0
    %2025 = vmatprep.subr.mxu0 0.0
    %2026 = vmatpush1.msra.mxu0 0.0
    %2027 = vmatprep.subr.mxu0 0.0
    %2028 = vmatpush1.msra.mxu0 0.0
    %2029 = vmatprep.subr.mxu0 0.0
    %2030 = vmatpush1.msra.mxu0 0.0
    %2031 = vmatprep.subr.mxu0 0.0
    %2032 = vmatpush1.msra.mxu0 0.0
    %2033 = vmatprep.subr.mxu0 0.0
    %2034 = vmatpush1.msra.mxu0 0.0
    %2035 = vmatprep.subr.mxu0 0.0
    %2036 = vmatpush1.msra.mxu0 0.0
    %2037 = vmatprep.subr.mxu0 0.0
    %2038 = vmatpush1.msra.mxu0 0.0
    %2039 = vmatprep.subr.mxu0 0.0
    %2040 = vmatpush1.msra.mxu0 0.0
    %2041 = vmatprep.subr.mxu0 0.0
    %2042 = vmatpush1.msra.mxu0 0.0
    %2043 = vmatprep.subr.mxu0 0.0
    %2044 = vmatpush1.msra.mxu0 0.0
    %2045 = vmatprep.subr.mxu0 0.0
    %2046 = vmatpush1.msra.mxu0 0.0
    %2047 = vmatprep.subr.mxu0 0.0
    %2048 = vmatpush1.msra.mxu0 0.0
    %2049 = vmatprep.subr.mxu0 0.0
    %2050 = vmatpush1.msra.mxu0 0.0
    %2051 = vmatprep.subr.mxu0 0.0
    %2052 = vmatpush1.msra.mxu0 0.0
    %2053 = vmatprep.subr.mxu0 0.0
    %2054 = vmatpush1.msra.mxu0 0.0
    %2055 = vmatprep.subr.mxu0 0.0
    %2056 = vmatpush1.msra.mxu0 0.0
    %2057 = vmatprep.subr.mxu0 0.0
    %2058 = vmatpush1.msra.mxu0 0.0
    %2059 = vmatprep.subr.mxu0 0.0
    %2060 = vmatpush1.msra.mxu0 0.0
    %2061 = vmatprep.subr.mxu0 0.0
    %2062 = vmatpush1.msra.mxu0 0.0
    %2063 = vmatprep.subr.mxu0 0.0
    %2064 = vmatpush1.msra.mxu0 0.0
    %2065 = vmatprep.subr.mxu0 0.0
    %2066 = vmatpush1.msra.mxu0 0.0
    %2067 = vmatprep.subr.mxu0 0.0
    %2068 = vmatpush1.msra.mxu0 0.0
    %2069 = vmatprep.subr.mxu0 0.0
    %2070 = vmatpush1.msra.mxu0 0.0
    %2071 = vmatprep.subr.mxu0 0.0
    %2072 = vmatpush1.msra.mxu0 0.0
    %2073 = vmatprep.subr.mxu0 0.0
    %2074 = vmatpush1.msra.mxu0 0.0
    %2075 = vmatprep.subr.mxu0 0.0
    %2076 = vmatpush1.msra.mxu0 0.0
    %2077 = vmatprep.subr.mxu0 0.0
    %2078 = vmatpush1.msra.mxu0 0.0
    %2079 = vmatprep.mubr.f32.mxu0 0.0
    %2080 = vmatmul.mubr.f32.gmra.mrb[0].mxu0 %v2010
    %v2081 = vpop.f32.mrb[0].mxu0
    %v2082 = vadd.f32 %v2007, %v2081
    %v2083 = vpop.f32.mrb[0].mxu0
    %2084 = vmatprep.mubr.f32.mxu0 0.0
    %2085 = vmatmul.mubr.f32.gmra.mrb[0].mxu0 %v2013
    %v2086 = vpop.f32.mrb[0].mxu0
    %v2087 = vadd.f32 %v2007, %v2086
    %v2088 = vpop.f32.mrb[0].mxu0
    %2089 = vdwg.mxu0
    %s2090 = scalar_lea.vmem %s15, 2
    %v2091 = vld [vmem:[%s2090] sm:$0x3]
    %s2092 = scalar_lea.vmem %s16, 2
    %v2093 = vld [vmem:[%s2092] sm:$0x3]
    %v2095 = vrot.slane %v2087, 7
    %v2097 = vsel %vm1118, %v2082, %v2095
    %v2099 = vsel %vm867, %v2091, 0
    %2101 = vmatprep.subr.mxu0 0.0
    %2102 = vmatpush1.msra.mxu0 %v1998
    %2103 = vmatprep.subr.mxu0 0.0
    %2104 = vmatpush1.msra.mxu0 %v1999
    %2105 = vmatprep.subr.mxu0 0.0
    %2106 = vmatpush1.msra.mxu0 %v2000
    %2107 = vmatprep.subr.mxu0 0.0
    %2108 = vmatpush1.msra.mxu0 %v2001
    %2109 = vmatprep.subr.mxu0 0.0
    %2110 = vmatpush1.msra.mxu0 0.0
    %2111 = vmatprep.subr.mxu0 0.0
    %2112 = vmatpush1.msra.mxu0 0.0
    %2113 = vmatprep.subr.mxu0 0.0
    %2114 = vmatpush1.msra.mxu0 0.0
    %2115 = vmatprep.subr.mxu0 0.0
    %2116 = vmatpush1.msra.mxu0 0.0
    %2117 = vmatprep.subr.mxu0 0.0
    %2118 = vmatpush1.msra.mxu0 0.0
    %2119 = vmatprep.subr.mxu0 0.0
    %2120 = vmatpush1.msra.mxu0 0.0
    %2121 = vmatprep.subr.mxu0 0.0
    %2122 = vmatpush1.msra.mxu0 0.0
    %2123 = vmatprep.subr.mxu0 0.0
    %2124 = vmatpush1.msra.mxu0 0.0
    %2125 = vmatprep.subr.mxu0 0.0
    %2126 = vmatpush1.msra.mxu0 0.0
    %2127 = vmatprep.subr.mxu0 0.0
    %2128 = vmatpush1.msra.mxu0 0.0
    %2129 = vmatprep.subr.mxu0 0.0
    %2130 = vmatpush1.msra.mxu0 0.0
    %2131 = vmatprep.subr.mxu0 0.0
    %2132 = vmatpush1.msra.mxu0 0.0
    %2133 = vmatprep.subr.mxu0 0.0
    %2134 = vmatpush1.msra.mxu0 0.0
    %2135 = vmatprep.subr.mxu0 0.0
    %2136 = vmatpush1.msra.mxu0 0.0
    %2137 = vmatprep.subr.mxu0 0.0
    %2138 = vmatpush1.msra.mxu0 0.0
    %2139 = vmatprep.subr.mxu0 0.0
    %2140 = vmatpush1.msra.mxu0 0.0
    %2141 = vmatprep.subr.mxu0 0.0
    %2142 = vmatpush1.msra.mxu0 0.0
    %2143 = vmatprep.subr.mxu0 0.0
    %2144 = vmatpush1.msra.mxu0 0.0
    %2145 = vmatprep.subr.mxu0 0.0
    %2146 = vmatpush1.msra.mxu0 0.0
    %2147 = vmatprep.subr.mxu0 0.0
    %2148 = vmatpush1.msra.mxu0 0.0
    %2149 = vmatprep.subr.mxu0 0.0
    %2150 = vmatpush1.msra.mxu0 0.0
    %2151 = vmatprep.subr.mxu0 0.0
    %2152 = vmatpush1.msra.mxu0 0.0
    %2153 = vmatprep.subr.mxu0 0.0
    %2154 = vmatpush1.msra.mxu0 0.0
    %2155 = vmatprep.subr.mxu0 0.0
    %2156 = vmatpush1.msra.mxu0 0.0
    %2157 = vmatprep.subr.mxu0 0.0
    %2158 = vmatpush1.msra.mxu0 0.0
    %2159 = vmatprep.subr.mxu0 0.0
    %2160 = vmatpush1.msra.mxu0 0.0
    %2161 = vmatprep.subr.mxu0 0.0
    %2162 = vmatpush1.msra.mxu0 0.0
    %2163 = vmatprep.subr.mxu0 0.0
    %2164 = vmatpush1.msra.mxu0 0.0
    %2165 = vmatprep.mubr.f32.mxu0 0.0
    %2166 = vmatmul.mubr.f32.gmra.mrb[0].mxu0 %v2099
    %v2167 = vpop.f32.mrb[0].mxu0
    %v2168 = vadd.f32 0.0, %v2167
    %v2169 = vpop.f32.mrb[0].mxu0
    %2170 = vdwg.mxu0
    %v2171 = vadd.f32 %v2097, %v2168
    %v2172 = vxor.u32 %v2171, 2147483648
    %v2173 = vmul.f32 %v2172, 1.442695
    %v2174 = vpow.pop %v2173
    %v2175 = vadd.f32 %v2174, 1.0
    %v2176 = vrcp.pop %v2175
    %v2177 = vmul.f32 1.0, %v2176
    %v2178 = vtanh.pop %v2171
    %2180 = vrot.lane.b32.xlu0 %v2093, 32
    %v2181 = vpop.permute.xlu0 %2180
    %v2183 = vmul.f32 %v2177, %v2181
    %2185 = vrot.lane.b32.xlu0 %v2178, 64
    %v2186 = vpop.permute.xlu0 %2185
    %v2188 = vmul.f32 %v2177, %v2186
    %2190 = vrot.lane.b32.xlu0 %v2188, 32
    %v2191 = vpop.permute.xlu0 %2190
    %v2193 = vadd.f32 %v2183, %v2191
    %v2194 = vtanh.pop %v2193
    %2196 = vrot.lane.b32.xlu0 %v2194, 64
    %v2197 = vpop.permute.xlu0 %2196
    %v2199 = vmul.f32 %v2177, %v2197
    %2201 = vrot.lane.b32.xlu0 %v2199, 32
    %v2202 = vpop.permute.xlu0 %2201
    %2204 = vst.msk [vmem:[#allocation2] sm:$0x1] %vm1226, %v2202
    %2205 = vst.msk [vmem:[#allocation2 + $0x7] sm:$0x2] %vm1228, %v2202
    %v2207 = vrot.slane %v2082, 1
    %v2209 = vsel %vm1118, %v2207, %v2087
    %v2210 = vsel %vm867, %v2202, 0
    %2212 = vmatprep.subr.mxu0 0.0
    %2213 = vmatpush1.msra.mxu0 %v1998
    %2214 = vmatprep.subr.mxu0 0.0
    %2215 = vmatpush1.msra.mxu0 %v1999
    %2216 = vmatprep.subr.mxu0 0.0
    %2217 = vmatpush1.msra.mxu0 %v2000
    %2218 = vmatprep.subr.mxu0 0.0
    %2219 = vmatpush1.msra.mxu0 %v2001
    %2220 = vmatprep.subr.mxu0 0.0
    %2221 = vmatpush1.msra.mxu0 0.0
    %2222 = vmatprep.subr.mxu0 0.0
    %2223 = vmatpush1.msra.mxu0 0.0
    %2224 = vmatprep.subr.mxu0 0.0
    %2225 = vmatpush1.msra.mxu0 0.0
    %2226 = vmatprep.subr.mxu0 0.0
    %2227 = vmatpush1.msra.mxu0 0.0
    %2228 = vmatprep.subr.mxu0 0.0
    %2229 = vmatpush1.msra.mxu0 0.0
    %2230 = vmatprep.subr.mxu0 0.0
    %2231 = vmatpush1.msra.mxu0 0.0
    %2232 = vmatprep.subr.mxu0 0.0
    %2233 = vmatpush1.msra.mxu0 0.0
    %2234 = vmatprep.subr.mxu0 0.0
    %2235 = vmatpush1.msra.mxu0 0.0
    %2236 = vmatprep.subr.mxu0 0.0
    %2237 = vmatpush1.msra.mxu0 0.0
    %2238 = vmatprep.subr.mxu0 0.0
    %2239 = vmatpush1.msra.mxu0 0.0
    %2240 = vmatprep.subr.mxu0 0.0
    %2241 = vmatpush1.msra.mxu0 0.0
    %2242 = vmatprep.subr.mxu0 0.0
    %2243 = vmatpush1.msra.mxu0 0.0
    %2244 = vmatprep.subr.mxu0 0.0
    %2245 = vmatpush1.msra.mxu0 0.0
    %2246 = vmatprep.subr.mxu0 0.0
    %2247 = vmatpush1.msra.mxu0 0.0
    %2248 = vmatprep.subr.mxu0 0.0
    %2249 = vmatpush1.msra.mxu0 0.0
    %2250 = vmatprep.subr.mxu0 0.0
    %2251 = vmatpush1.msra.mxu0 0.0
    %2252 = vmatprep.subr.mxu0 0.0
    %2253 = vmatpush1.msra.mxu0 0.0
    %2254 = vmatprep.subr.mxu0 0.0
    %2255 = vmatpush1.msra.mxu0 0.0
    %2256 = vmatprep.subr.mxu0 0.0
    %2257 = vmatpush1.msra.mxu0 0.0
    %2258 = vmatprep.subr.mxu0 0.0
    %2259 = vmatpush1.msra.mxu0 0.0
    %2260 = vmatprep.subr.mxu0 0.0
    %2261 = vmatpush1.msra.mxu0 0.0
    %2262 = vmatprep.subr.mxu0 0.0
    %2263 = vmatpush1.msra.mxu0 0.0
    %2264 = vmatprep.subr.mxu0 0.0
    %2265 = vmatpush1.msra.mxu0 0.0
    %2266 = vmatprep.subr.mxu0 0.0
    %2267 = vmatpush1.msra.mxu0 0.0
    %2268 = vmatprep.subr.mxu0 0.0
    %2269 = vmatpush1.msra.mxu0 0.0
    %2270 = vmatprep.subr.mxu0 0.0
    %2271 = vmatpush1.msra.mxu0 0.0
    %2272 = vmatprep.subr.mxu0 0.0
    %2273 = vmatpush1.msra.mxu0 0.0
    %2274 = vmatprep.subr.mxu0 0.0
    %2275 = vmatpush1.msra.mxu0 0.0
    %2276 = vmatprep.mubr.f32.mxu0 0.0
    %2277 = vmatmul.mubr.f32.gmra.mrb[0].mxu0 %v2210
    %v2278 = vpop.f32.mrb[0].mxu0
    %v2279 = vadd.f32 0.0, %v2278
    %v2280 = vpop.f32.mrb[0].mxu0
    %2281 = vdwg.mxu0
    %v2282 = vadd.f32 %v2209, %v2279
    %v2283 = vxor.u32 %v2282, 2147483648
    %v2284 = vmul.f32 %v2283, 1.442695
    %v2285 = vpow.pop %v2284
    %v2286 = vadd.f32 %v2285, 1.0
    %v2287 = vrcp.pop %v2286
    %v2288 = vmul.f32 1.0, %v2287
    %v2289 = vtanh.pop %v2282
    %v2290 = vmul.f32 %v2288, %v2193
    %2292 = vrot.lane.b32.xlu0 %v2289, 64
    %v2293 = vpop.permute.xlu0 %2292
    %v2295 = vmul.f32 %v2288, %v2293
    %2297 = vrot.lane.b32.xlu0 %v2295, 32
    %v2298 = vpop.permute.xlu0 %2297
    %v2300 = vadd.f32 %v2290, %v2298
    %v2301 = vtanh.pop %v2300
    %2303 = vrot.lane.b32.xlu0 %v2301, 64
    %v2304 = vpop.permute.xlu0 %2303
    %v2306 = vmul.f32 %v2288, %v2304
    %2308 = vrot.lane.b32.xlu0 %v2306, 32
    %v2309 = vpop.permute.xlu0 %2308
    %2311 = vst.msk [vmem:[#allocation2 + $0x1] sm:$0x1] %vm1226, %v2309
    %2312 = vst.msk [vmem:[#allocation2 + $0x8] sm:$0x2] %vm1228, %v2309
    %v2313 = vrot.slane %v2082, 2
    %v2315 = vrot.slane %v2087, 1
    %v2317 = vsel %vm1118, %v2313, %v2315
    %v2318 = vsel %vm867, %v2309, 0
    %2320 = vmatprep.subr.mxu0 0.0
    %2321 = vmatpush1.msra.mxu0 %v1998
    %2322 = vmatprep.subr.mxu0 0.0
    %2323 = vmatpush1.msra.mxu0 %v1999
    %2324 = vmatprep.subr.mxu0 0.0
    %2325 = vmatpush1.msra.mxu0 %v2000
    %2326 = vmatprep.subr.mxu0 0.0
    %2327 = vmatpush1.msra.mxu0 %v2001
    %2328 = vmatprep.subr.mxu0 0.0
    %2329 = vmatpush1.msra.mxu0 0.0
    %2330 = vmatprep.subr.mxu0 0.0
    %2331 = vmatpush1.msra.mxu0 0.0
    %2332 = vmatprep.subr.mxu0 0.0
    %2333 = vmatpush1.msra.mxu0 0.0
    %2334 = vmatprep.subr.mxu0 0.0
    %2335 = vmatpush1.msra.mxu0 0.0
    %2336 = vmatprep.subr.mxu0 0.0
    %2337 = vmatpush1.msra.mxu0 0.0
    %2338 = vmatprep.subr.mxu0 0.0
    %2339 = vmatpush1.msra.mxu0 0.0
    %2340 = vmatprep.subr.mxu0 0.0
    %2341 = vmatpush1.msra.mxu0 0.0
    %2342 = vmatprep.subr.mxu0 0.0
    %2343 = vmatpush1.msra.mxu0 0.0
    %2344 = vmatprep.subr.mxu0 0.0
    %2345 = vmatpush1.msra.mxu0 0.0
    %2346 = vmatprep.subr.mxu0 0.0
    %2347 = vmatpush1.msra.mxu0 0.0
    %2348 = vmatprep.subr.mxu0 0.0
    %2349 = vmatpush1.msra.mxu0 0.0
    %2350 = vmatprep.subr.mxu0 0.0
    %2351 = vmatpush1.msra.mxu0 0.0
    %2352 = vmatprep.subr.mxu0 0.0
    %2353 = vmatpush1.msra.mxu0 0.0
    %2354 = vmatprep.subr.mxu0 0.0
    %2355 = vmatpush1.msra.mxu0 0.0
    %2356 = vmatprep.subr.mxu0 0.0
    %2357 = vmatpush1.msra.mxu0 0.0
    %2358 = vmatprep.subr.mxu0 0.0
    %2359 = vmatpush1.msra.mxu0 0.0
    %2360 = vmatprep.subr.mxu0 0.0
    %2361 = vmatpush1.msra.mxu0 0.0
    %2362 = vmatprep.subr.mxu0 0.0
    %2363 = vmatpush1.msra.mxu0 0.0
    %2364 = vmatprep.subr.mxu0 0.0
    %2365 = vmatpush1.msra.mxu0 0.0
    %2366 = vmatprep.subr.mxu0 0.0
    %2367 = vmatpush1.msra.mxu0 0.0
    %2368 = vmatprep.subr.mxu0 0.0
    %2369 = vmatpush1.msra.mxu0 0.0
    %2370 = vmatprep.subr.mxu0 0.0
    %2371 = vmatpush1.msra.mxu0 0.0
    %2372 = vmatprep.subr.mxu0 0.0
    %2373 = vmatpush1.msra.mxu0 0.0
    %2374 = vmatprep.subr.mxu0 0.0
    %2375 = vmatpush1.msra.mxu0 0.0
    %2376 = vmatprep.subr.mxu0 0.0
    %2377 = vmatpush1.msra.mxu0 0.0
    %2378 = vmatprep.subr.mxu0 0.0
    %2379 = vmatpush1.msra.mxu0 0.0
    %2380 = vmatprep.subr.mxu0 0.0
    %2381 = vmatpush1.msra.mxu0 0.0
    %2382 = vmatprep.subr.mxu0 0.0
    %2383 = vmatpush1.msra.mxu0 0.0
    %2384 = vmatprep.mubr.f32.mxu0 0.0
    %2385 = vmatmul.mubr.f32.gmra.mrb[0].mxu0 %v2318
    %v2386 = vpop.f32.mrb[0].mxu0
    %v2387 = vadd.f32 0.0, %v2386
    %v2388 = vpop.f32.mrb[0].mxu0
    %2389 = vdwg.mxu0
    %v2390 = vadd.f32 %v2317, %v2387
    %v2391 = vxor.u32 %v2390, 2147483648
    %v2392 = vmul.f32 %v2391, 1.442695
    %v2393 = vpow.pop %v2392
    %v2394 = vadd.f32 %v2393, 1.0
    %v2395 = vrcp.pop %v2394
    %v2396 = vmul.f32 1.0, %v2395
    %v2397 = vtanh.pop %v2390
    %v2398 = vmul.f32 %v2396, %v2300
    %2400 = vrot.lane.b32.xlu0 %v2397, 64
    %v2401 = vpop.permute.xlu0 %2400
    %v2403 = vmul.f32 %v2396, %v2401
    %2405 = vrot.lane.b32.xlu0 %v2403, 32
    %v2406 = vpop.permute.xlu0 %2405
    %v2408 = vadd.f32 %v2398, %v2406
    %v2409 = vtanh.pop %v2408
    %2411 = vrot.lane.b32.xlu0 %v2409, 64
    %v2412 = vpop.permute.xlu0 %2411
    %v2414 = vmul.f32 %v2396, %v2412
    %2416 = vrot.lane.b32.xlu0 %v2414, 32
    %v2417 = vpop.permute.xlu0 %2416
    %2419 = vst.msk [vmem:[#allocation2 + $0x2] sm:$0x1] %vm1226, %v2417
    %2420 = vst.msk [vmem:[#allocation2 + $0x9] sm:$0x2] %vm1228, %v2417
    %v2421 = vrot.slane %v2082, 3
    %v2423 = vrot.slane %v2087, 2
    %v2425 = vsel %vm1118, %v2421, %v2423
    %v2426 = vsel %vm867, %v2417, 0
    %2428 = vmatprep.subr.mxu0 0.0
    %2429 = vmatpush1.msra.mxu0 %v1998
    %2430 = vmatprep.subr.mxu0 0.0
    %2431 = vmatpush1.msra.mxu0 %v1999
    %2432 = vmatprep.subr.mxu0 0.0
    %2433 = vmatpush1.msra.mxu0 %v2000
    %2434 = vmatprep.subr.mxu0 0.0
    %2435 = vmatpush1.msra.mxu0 %v2001
    %2436 = vmatprep.subr.mxu0 0.0
    %2437 = vmatpush1.msra.mxu0 0.0
    %2438 = vmatprep.subr.mxu0 0.0
    %2439 = vmatpush1.msra.mxu0 0.0
    %2440 = vmatprep.subr.mxu0 0.0
    %2441 = vmatpush1.msra.mxu0 0.0
    %2442 = vmatprep.subr.mxu0 0.0
    %2443 = vmatpush1.msra.mxu0 0.0
    %2444 = vmatprep.subr.mxu0 0.0
    %2445 = vmatpush1.msra.mxu0 0.0
    %2446 = vmatprep.subr.mxu0 0.0
    %2447 = vmatpush1.msra.mxu0 0.0
    %2448 = vmatprep.subr.mxu0 0.0
    %2449 = vmatpush1.msra.mxu0 0.0
    %2450 = vmatprep.subr.mxu0 0.0
    %2451 = vmatpush1.msra.mxu0 0.0
    %2452 = vmatprep.subr.mxu0 0.0
    %2453 = vmatpush1.msra.mxu0 0.0
    %2454 = vmatprep.subr.mxu0 0.0
    %2455 = vmatpush1.msra.mxu0 0.0
    %2456 = vmatprep.subr.mxu0 0.0
    %2457 = vmatpush1.msra.mxu0 0.0
    %2458 = vmatprep.subr.mxu0 0.0
    %2459 = vmatpush1.msra.mxu0 0.0
    %2460 = vmatprep.subr.mxu0 0.0
    %2461 = vmatpush1.msra.mxu0 0.0
    %2462 = vmatprep.subr.mxu0 0.0
    %2463 = vmatpush1.msra.mxu0 0.0
    %2464 = vmatprep.subr.mxu0 0.0
    %2465 = vmatpush1.msra.mxu0 0.0
    %2466 = vmatprep.subr.mxu0 0.0
    %2467 = vmatpush1.msra.mxu0 0.0
    %2468 = vmatprep.subr.mxu0 0.0
    %2469 = vmatpush1.msra.mxu0 0.0
    %2470 = vmatprep.subr.mxu0 0.0
    %2471 = vmatpush1.msra.mxu0 0.0
    %2472 = vmatprep.subr.mxu0 0.0
    %2473 = vmatpush1.msra.mxu0 0.0
    %2474 = vmatprep.subr.mxu0 0.0
    %2475 = vmatpush1.msra.mxu0 0.0
    %2476 = vmatprep.subr.mxu0 0.0
    %2477 = vmatpush1.msra.mxu0 0.0
    %2478 = vmatprep.subr.mxu0 0.0
    %2479 = vmatpush1.msra.mxu0 0.0
    %2480 = vmatprep.subr.mxu0 0.0
    %2481 = vmatpush1.msra.mxu0 0.0
    %2482 = vmatprep.subr.mxu0 0.0
    %2483 = vmatpush1.msra.mxu0 0.0
    %2484 = vmatprep.subr.mxu0 0.0
    %2485 = vmatpush1.msra.mxu0 0.0
    %2486 = vmatprep.subr.mxu0 0.0
    %2487 = vmatpush1.msra.mxu0 0.0
    %2488 = vmatprep.subr.mxu0 0.0
    %2489 = vmatpush1.msra.mxu0 0.0
    %2490 = vmatprep.subr.mxu0 0.0
    %2491 = vmatpush1.msra.mxu0 0.0
    %2492 = vmatprep.mubr.f32.mxu0 0.0
    %2493 = vmatmul.mubr.f32.gmra.mrb[0].mxu0 %v2426
    %v2494 = vpop.f32.mrb[0].mxu0
    %v2495 = vadd.f32 0.0, %v2494
    %v2496 = vpop.f32.mrb[0].mxu0
    %2497 = vdwg.mxu0
    %v2498 = vadd.f32 %v2425, %v2495
    %v2499 = vxor.u32 %v2498, 2147483648
    %v2500 = vmul.f32 %v2499, 1.442695
    %v2501 = vpow.pop %v2500
    %v2502 = vadd.f32 %v2501, 1.0
    %v2503 = vrcp.pop %v2502
    %v2504 = vmul.f32 1.0, %v2503
    %v2505 = vtanh.pop %v2498
    %v2506 = vmul.f32 %v2504, %v2408
    %2508 = vrot.lane.b32.xlu0 %v2505, 64
    %v2509 = vpop.permute.xlu0 %2508
    %v2511 = vmul.f32 %v2504, %v2509
    %2513 = vrot.lane.b32.xlu0 %v2511, 32
    %v2514 = vpop.permute.xlu0 %2513
    %v2516 = vadd.f32 %v2506, %v2514
    %v2517 = vtanh.pop %v2516
    %2519 = vrot.lane.b32.xlu0 %v2517, 64
    %v2520 = vpop.permute.xlu0 %2519
    %v2522 = vmul.f32 %v2504, %v2520
    %2524 = vrot.lane.b32.xlu0 %v2522, 32
    %v2525 = vpop.permute.xlu0 %2524
    %2527 = vst.msk [vmem:[#allocation2 + $0x3] sm:$0x1] %vm1226, %v2525
    %2528 = vst.msk [vmem:[#allocation2 + $0xa] sm:$0x2] %vm1228, %v2525
    %v2529 = vrot.slane %v2082, 4
    %v2531 = vrot.slane %v2087, 3
    %v2533 = vsel %vm1118, %v2529, %v2531
    %v2534 = vsel %vm867, %v2525, 0
    %2536 = vmatprep.subr.mxu0 0.0
    %2537 = vmatpush1.msra.mxu0 %v1998
    %2538 = vmatprep.subr.mxu0 0.0
    %2539 = vmatpush1.msra.mxu0 %v1999
    %2540 = vmatprep.subr.mxu0 0.0
    %2541 = vmatpush1.msra.mxu0 %v2000
    %2542 = vmatprep.subr.mxu0 0.0
    %2543 = vmatpush1.msra.mxu0 %v2001
    %2544 = vmatprep.subr.mxu0 0.0
    %2545 = vmatpush1.msra.mxu0 0.0
    %2546 = vmatprep.subr.mxu0 0.0
    %2547 = vmatpush1.msra.mxu0 0.0
    %2548 = vmatprep.subr.mxu0 0.0
    %2549 = vmatpush1.msra.mxu0 0.0
    %2550 = vmatprep.subr.mxu0 0.0
    %2551 = vmatpush1.msra.mxu0 0.0
    %2552 = vmatprep.subr.mxu0 0.0
    %2553 = vmatpush1.msra.mxu0 0.0
    %2554 = vmatprep.subr.mxu0 0.0
    %2555 = vmatpush1.msra.mxu0 0.0
    %2556 = vmatprep.subr.mxu0 0.0
    %2557 = vmatpush1.msra.mxu0 0.0
    %2558 = vmatprep.subr.mxu0 0.0
    %2559 = vmatpush1.msra.mxu0 0.0
    %2560 = vmatprep.subr.mxu0 0.0
    %2561 = vmatpush1.msra.mxu0 0.0
    %2562 = vmatprep.subr.mxu0 0.0
    %2563 = vmatpush1.msra.mxu0 0.0
    %2564 = vmatprep.subr.mxu0 0.0
    %2565 = vmatpush1.msra.mxu0 0.0
    %2566 = vmatprep.subr.mxu0 0.0
    %2567 = vmatpush1.msra.mxu0 0.0
    %2568 = vmatprep.subr.mxu0 0.0
    %2569 = vmatpush1.msra.mxu0 0.0
    %2570 = vmatprep.subr.mxu0 0.0
    %2571 = vmatpush1.msra.mxu0 0.0
    %2572 = vmatprep.subr.mxu0 0.0
    %2573 = vmatpush1.msra.mxu0 0.0
    %2574 = vmatprep.subr.mxu0 0.0
    %2575 = vmatpush1.msra.mxu0 0.0
    %2576 = vmatprep.subr.mxu0 0.0
    %2577 = vmatpush1.msra.mxu0 0.0
    %2578 = vmatprep.subr.mxu0 0.0
    %2579 = vmatpush1.msra.mxu0 0.0
    %2580 = vmatprep.subr.mxu0 0.0
    %2581 = vmatpush1.msra.mxu0 0.0
    %2582 = vmatprep.subr.mxu0 0.0
    %2583 = vmatpush1.msra.mxu0 0.0
    %2584 = vmatprep.subr.mxu0 0.0
    %2585 = vmatpush1.msra.mxu0 0.0
    %2586 = vmatprep.subr.mxu0 0.0
    %2587 = vmatpush1.msra.mxu0 0.0
    %2588 = vmatprep.subr.mxu0 0.0
    %2589 = vmatpush1.msra.mxu0 0.0
    %2590 = vmatprep.subr.mxu0 0.0
    %2591 = vmatpush1.msra.mxu0 0.0
    %2592 = vmatprep.subr.mxu0 0.0
    %2593 = vmatpush1.msra.mxu0 0.0
    %2594 = vmatprep.subr.mxu0 0.0
    %2595 = vmatpush1.msra.mxu0 0.0
    %2596 = vmatprep.subr.mxu0 0.0
    %2597 = vmatpush1.msra.mxu0 0.0
    %2598 = vmatprep.subr.mxu0 0.0
    %2599 = vmatpush1.msra.mxu0 0.0
    %2600 = vmatprep.mubr.f32.mxu0 0.0
    %2601 = vmatmul.mubr.f32.gmra.mrb[0].mxu0 %v2534
    %v2602 = vpop.f32.mrb[0].mxu0
    %v2603 = vadd.f32 0.0, %v2602
    %v2604 = vpop.f32.mrb[0].mxu0
    %2605 = vdwg.mxu0
    %v2606 = vadd.f32 %v2533, %v2603
    %v2607 = vxor.u32 %v2606, 2147483648
    %v2608 = vmul.f32 %v2607, 1.442695
    %v2609 = vpow.pop %v2608
    %v2610 = vadd.f32 %v2609, 1.0
    %v2611 = vrcp.pop %v2610
    %v2612 = vmul.f32 1.0, %v2611
    %v2613 = vtanh.pop %v2606
    %v2614 = vmul.f32 %v2612, %v2516
    %2616 = vrot.lane.b32.xlu0 %v2613, 64
    %v2617 = vpop.permute.xlu0 %2616
    %v2619 = vmul.f32 %v2612, %v2617
    %2621 = vrot.lane.b32.xlu0 %v2619, 32
    %v2622 = vpop.permute.xlu0 %2621
    %v2624 = vadd.f32 %v2614, %v2622
    %v2625 = vtanh.pop %v2624
    %2627 = vrot.lane.b32.xlu0 %v2625, 64
    %v2628 = vpop.permute.xlu0 %2627
    %v2630 = vmul.f32 %v2612, %v2628
    %2632 = vrot.lane.b32.xlu0 %v2630, 32
    %v2633 = vpop.permute.xlu0 %2632
    %2635 = vst.msk [vmem:[#allocation2 + $0x4] sm:$0x1] %vm1226, %v2633
    %2636 = vst.msk [vmem:[#allocation2 + $0xb] sm:$0x2] %vm1228, %v2633
    %v2637 = vrot.slane %v2082, 5
    %v2639 = vrot.slane %v2087, 4
    %v2641 = vsel %vm1118, %v2637, %v2639
    %v2642 = vsel %vm867, %v2633, 0
    %2644 = vmatprep.subr.mxu0 0.0
    %2645 = vmatpush1.msra.mxu0 %v1998
    %2646 = vmatprep.subr.mxu0 0.0
    %2647 = vmatpush1.msra.mxu0 %v1999
    %2648 = vmatprep.subr.mxu0 0.0
    %2649 = vmatpush1.msra.mxu0 %v2000
    %2650 = vmatprep.subr.mxu0 0.0
    %2651 = vmatpush1.msra.mxu0 %v2001
    %2652 = vmatprep.subr.mxu0 0.0
    %2653 = vmatpush1.msra.mxu0 0.0
    %2654 = vmatprep.subr.mxu0 0.0
    %2655 = vmatpush1.msra.mxu0 0.0
    %2656 = vmatprep.subr.mxu0 0.0
    %2657 = vmatpush1.msra.mxu0 0.0
    %2658 = vmatprep.subr.mxu0 0.0
    %2659 = vmatpush1.msra.mxu0 0.0
    %2660 = vmatprep.subr.mxu0 0.0
    %2661 = vmatpush1.msra.mxu0 0.0
    %2662 = vmatprep.subr.mxu0 0.0
    %2663 = vmatpush1.msra.mxu0 0.0
    %2664 = vmatprep.subr.mxu0 0.0
    %2665 = vmatpush1.msra.mxu0 0.0
    %2666 = vmatprep.subr.mxu0 0.0
    %2667 = vmatpush1.msra.mxu0 0.0
    %2668 = vmatprep.subr.mxu0 0.0
    %2669 = vmatpush1.msra.mxu0 0.0
    %2670 = vmatprep.subr.mxu0 0.0
    %2671 = vmatpush1.msra.mxu0 0.0
    %2672 = vmatprep.subr.mxu0 0.0
    %2673 = vmatpush1.msra.mxu0 0.0
    %2674 = vmatprep.subr.mxu0 0.0
    %2675 = vmatpush1.msra.mxu0 0.0
    %2676 = vmatprep.subr.mxu0 0.0
    %2677 = vmatpush1.msra.mxu0 0.0
    %2678 = vmatprep.subr.mxu0 0.0
    %2679 = vmatpush1.msra.mxu0 0.0
    %2680 = vmatprep.subr.mxu0 0.0
    %2681 = vmatpush1.msra.mxu0 0.0
    %2682 = vmatprep.subr.mxu0 0.0
    %2683 = vmatpush1.msra.mxu0 0.0
    %2684 = vmatprep.subr.mxu0 0.0
    %2685 = vmatpush1.msra.mxu0 0.0
    %2686 = vmatprep.subr.mxu0 0.0
    %2687 = vmatpush1.msra.mxu0 0.0
    %2688 = vmatprep.subr.mxu0 0.0
    %2689 = vmatpush1.msra.mxu0 0.0
    %2690 = vmatprep.subr.mxu0 0.0
    %2691 = vmatpush1.msra.mxu0 0.0
    %2692 = vmatprep.subr.mxu0 0.0
    %2693 = vmatpush1.msra.mxu0 0.0
    %2694 = vmatprep.subr.mxu0 0.0
    %2695 = vmatpush1.msra.mxu0 0.0
    %2696 = vmatprep.subr.mxu0 0.0
    %2697 = vmatpush1.msra.mxu0 0.0
    %2698 = vmatprep.subr.mxu0 0.0
    %2699 = vmatpush1.msra.mxu0 0.0
    %2700 = vmatprep.subr.mxu0 0.0
    %2701 = vmatpush1.msra.mxu0 0.0
    %2702 = vmatprep.subr.mxu0 0.0
    %2703 = vmatpush1.msra.mxu0 0.0
    %2704 = vmatprep.subr.mxu0 0.0
    %2705 = vmatpush1.msra.mxu0 0.0
    %2706 = vmatprep.subr.mxu0 0.0
    %2707 = vmatpush1.msra.mxu0 0.0
    %2708 = vmatprep.mubr.f32.mxu0 0.0
    %2709 = vmatmul.mubr.f32.gmra.mrb[0].mxu0 %v2642
    %v2710 = vpop.f32.mrb[0].mxu0
    %v2711 = vadd.f32 0.0, %v2710
    %v2712 = vpop.f32.mrb[0].mxu0
    %2713 = vdwg.mxu0
    %v2714 = vadd.f32 %v2641, %v2711
    %v2715 = vxor.u32 %v2714, 2147483648
    %v2716 = vmul.f32 %v2715, 1.442695
    %v2717 = vpow.pop %v2716
    %v2718 = vadd.f32 %v2717, 1.0
    %v2719 = vrcp.pop %v2718
    %v2720 = vmul.f32 1.0, %v2719
    %v2721 = vtanh.pop %v2714
    %v2722 = vmul.f32 %v2720, %v2624
    %2724 = vrot.lane.b32.xlu0 %v2721, 64
    %v2725 = vpop.permute.xlu0 %2724
    %v2727 = vmul.f32 %v2720, %v2725
    %2729 = vrot.lane.b32.xlu0 %v2727, 32
    %v2730 = vpop.permute.xlu0 %2729
    %v2732 = vadd.f32 %v2722, %v2730
    %v2733 = vtanh.pop %v2732
    %2735 = vrot.lane.b32.xlu0 %v2733, 64
    %v2736 = vpop.permute.xlu0 %2735
    %v2738 = vmul.f32 %v2720, %v2736
    %2740 = vrot.lane.b32.xlu0 %v2738, 32
    %v2741 = vpop.permute.xlu0 %2740
    %2743 = vst.msk [vmem:[#allocation2 + $0x5] sm:$0x1] %vm1226, %v2741
    %2744 = vst.msk [vmem:[#allocation2 + $0xc] sm:$0x2] %vm1228, %v2741
    %v2745 = vrot.slane %v2082, 6
    %v2747 = vrot.slane %v2087, 5
    %v2749 = vsel %vm1118, %v2745, %v2747
    %v2750 = vsel %vm867, %v2741, 0
    %2752 = vmatprep.subr.mxu0 0.0
    %2753 = vmatpush1.msra.mxu0 %v1998
    %2754 = vmatprep.subr.mxu0 0.0
    %2755 = vmatpush1.msra.mxu0 %v1999
    %2756 = vmatprep.subr.mxu0 0.0
    %2757 = vmatpush1.msra.mxu0 %v2000
    %2758 = vmatprep.subr.mxu0 0.0
    %2759 = vmatpush1.msra.mxu0 %v2001
    %2760 = vmatprep.subr.mxu0 0.0
    %2761 = vmatpush1.msra.mxu0 0.0
    %2762 = vmatprep.subr.mxu0 0.0
    %2763 = vmatpush1.msra.mxu0 0.0
    %2764 = vmatprep.subr.mxu0 0.0
    %2765 = vmatpush1.msra.mxu0 0.0
    %2766 = vmatprep.subr.mxu0 0.0
    %2767 = vmatpush1.msra.mxu0 0.0
    %2768 = vmatprep.subr.mxu0 0.0
    %2769 = vmatpush1.msra.mxu0 0.0
    %2770 = vmatprep.subr.mxu0 0.0
    %2771 = vmatpush1.msra.mxu0 0.0
    %2772 = vmatprep.subr.mxu0 0.0
    %2773 = vmatpush1.msra.mxu0 0.0
    %2774 = vmatprep.subr.mxu0 0.0
    %2775 = vmatpush1.msra.mxu0 0.0
    %2776 = vmatprep.subr.mxu0 0.0
    %2777 = vmatpush1.msra.mxu0 0.0
    %2778 = vmatprep.subr.mxu0 0.0
    %2779 = vmatpush1.msra.mxu0 0.0
    %2780 = vmatprep.subr.mxu0 0.0
    %2781 = vmatpush1.msra.mxu0 0.0
    %2782 = vmatprep.subr.mxu0 0.0
    %2783 = vmatpush1.msra.mxu0 0.0
    %2784 = vmatprep.subr.mxu0 0.0
    %2785 = vmatpush1.msra.mxu0 0.0
    %2786 = vmatprep.subr.mxu0 0.0
    %2787 = vmatpush1.msra.mxu0 0.0
    %2788 = vmatprep.subr.mxu0 0.0
    %2789 = vmatpush1.msra.mxu0 0.0
    %2790 = vmatprep.subr.mxu0 0.0
    %2791 = vmatpush1.msra.mxu0 0.0
    %2792 = vmatprep.subr.mxu0 0.0
    %2793 = vmatpush1.msra.mxu0 0.0
    %2794 = vmatprep.subr.mxu0 0.0
    %2795 = vmatpush1.msra.mxu0 0.0
    %2796 = vmatprep.subr.mxu0 0.0
    %2797 = vmatpush1.msra.mxu0 0.0
    %2798 = vmatprep.subr.mxu0 0.0
    %2799 = vmatpush1.msra.mxu0 0.0
    %2800 = vmatprep.subr.mxu0 0.0
    %2801 = vmatpush1.msra.mxu0 0.0
    %2802 = vmatprep.subr.mxu0 0.0
    %2803 = vmatpush1.msra.mxu0 0.0
    %2804 = vmatprep.subr.mxu0 0.0
    %2805 = vmatpush1.msra.mxu0 0.0
    %2806 = vmatprep.subr.mxu0 0.0
    %2807 = vmatpush1.msra.mxu0 0.0
    %2808 = vmatprep.subr.mxu0 0.0
    %2809 = vmatpush1.msra.mxu0 0.0
    %2810 = vmatprep.subr.mxu0 0.0
    %2811 = vmatpush1.msra.mxu0 0.0
    %2812 = vmatprep.subr.mxu0 0.0
    %2813 = vmatpush1.msra.mxu0 0.0
    %2814 = vmatprep.subr.mxu0 0.0
    %2815 = vmatpush1.msra.mxu0 0.0
    %2816 = vmatprep.mubr.f32.mxu0 0.0
    %2817 = vmatmul.mubr.f32.gmra.mrb[0].mxu0 %v2750
    %v2818 = vpop.f32.mrb[0].mxu0
    %v2819 = vadd.f32 0.0, %v2818
    %v2820 = vpop.f32.mrb[0].mxu0
    %2821 = vdwg.mxu0
    %v2822 = vadd.f32 %v2749, %v2819
    %v2823 = vxor.u32 %v2822, 2147483648
    %v2824 = vmul.f32 %v2823, 1.442695
    %v2825 = vpow.pop %v2824
    %v2826 = vadd.f32 %v2825, 1.0
    %v2827 = vrcp.pop %v2826
    %v2828 = vmul.f32 1.0, %v2827
    %v2829 = vtanh.pop %v2822
    %v2830 = vmul.f32 %v2828, %v2732
    %2832 = vrot.lane.b32.xlu0 %v2829, 64
    %v2833 = vpop.permute.xlu0 %2832
    %v2835 = vmul.f32 %v2828, %v2833
    %2837 = vrot.lane.b32.xlu0 %v2835, 32
    %v2838 = vpop.permute.xlu0 %2837
    %v2840 = vadd.f32 %v2830, %v2838
    %v2841 = vtanh.pop %v2840
    %2843 = vrot.lane.b32.xlu0 %v2841, 64
    %v2844 = vpop.permute.xlu0 %2843
    %v2846 = vmul.f32 %v2828, %v2844
    %2848 = vrot.lane.b32.xlu0 %v2846, 32
    %v2849 = vpop.permute.xlu0 %2848
    %2851 = vst.msk [vmem:[#allocation2 + $0x6] sm:$0x1] %vm1226, %v2849
    %2852 = vst.msk [vmem:[#allocation2 + $0xd] sm:$0x2] %vm1228, %v2849
    %v2853 = vrot.slane %v2082, 7
    %v2855 = vrot.slane %v2087, 6
    %v2857 = vsel %vm1118, %v2853, %v2855
    %v2858 = vsel %vm867, %v2849, 0
    %2860 = vmatprep.subr.mxu0 0.0
    %2861 = vmatpush1.msra.mxu0 %v1998
    %2862 = vmatprep.subr.mxu0 0.0
    %2863 = vmatpush1.msra.mxu0 %v1999
    %2864 = vmatprep.subr.mxu0 0.0
    %2865 = vmatpush1.msra.mxu0 %v2000
    %2866 = vmatprep.subr.mxu0 0.0
    %2867 = vmatpush1.msra.mxu0 %v2001
    %2868 = vmatprep.subr.mxu0 0.0
    %2869 = vmatpush1.msra.mxu0 0.0
    %2870 = vmatprep.subr.mxu0 0.0
    %2871 = vmatpush1.msra.mxu0 0.0
    %2872 = vmatprep.subr.mxu0 0.0
    %2873 = vmatpush1.msra.mxu0 0.0
    %2874 = vmatprep.subr.mxu0 0.0
    %2875 = vmatpush1.msra.mxu0 0.0
    %2876 = vmatprep.subr.mxu0 0.0
    %2877 = vmatpush1.msra.mxu0 0.0
    %2878 = vmatprep.subr.mxu0 0.0
    %2879 = vmatpush1.msra.mxu0 0.0
    %2880 = vmatprep.subr.mxu0 0.0
    %2881 = vmatpush1.msra.mxu0 0.0
    %2882 = vmatprep.subr.mxu0 0.0
    %2883 = vmatpush1.msra.mxu0 0.0
    %2884 = vmatprep.subr.mxu0 0.0
    %2885 = vmatpush1.msra.mxu0 0.0
    %2886 = vmatprep.subr.mxu0 0.0
    %2887 = vmatpush1.msra.mxu0 0.0
    %2888 = vmatprep.subr.mxu0 0.0
    %2889 = vmatpush1.msra.mxu0 0.0
    %2890 = vmatprep.subr.mxu0 0.0
    %2891 = vmatpush1.msra.mxu0 0.0
    %2892 = vmatprep.subr.mxu0 0.0
    %2893 = vmatpush1.msra.mxu0 0.0
    %2894 = vmatprep.subr.mxu0 0.0
    %2895 = vmatpush1.msra.mxu0 0.0
    %2896 = vmatprep.subr.mxu0 0.0
    %2897 = vmatpush1.msra.mxu0 0.0
    %2898 = vmatprep.subr.mxu0 0.0
    %2899 = vmatpush1.msra.mxu0 0.0
    %2900 = vmatprep.subr.mxu0 0.0
    %2901 = vmatpush1.msra.mxu0 0.0
    %2902 = vmatprep.subr.mxu0 0.0
    %2903 = vmatpush1.msra.mxu0 0.0
    %2904 = vmatprep.subr.mxu0 0.0
    %2905 = vmatpush1.msra.mxu0 0.0
    %2906 = vmatprep.subr.mxu0 0.0
    %2907 = vmatpush1.msra.mxu0 0.0
    %2908 = vmatprep.subr.mxu0 0.0
    %2909 = vmatpush1.msra.mxu0 0.0
    %2910 = vmatprep.subr.mxu0 0.0
    %2911 = vmatpush1.msra.mxu0 0.0
    %2912 = vmatprep.subr.mxu0 0.0
    %2913 = vmatpush1.msra.mxu0 0.0
    %2914 = vmatprep.subr.mxu0 0.0
    %2915 = vmatpush1.msra.mxu0 0.0
    %2916 = vmatprep.subr.mxu0 0.0
    %2917 = vmatpush1.msra.mxu0 0.0
    %2918 = vmatprep.subr.mxu0 0.0
    %2919 = vmatpush1.msra.mxu0 0.0
    %2920 = vmatprep.subr.mxu0 0.0
    %2921 = vmatpush1.msra.mxu0 0.0
    %2922 = vmatprep.subr.mxu0 0.0
    %2923 = vmatpush1.msra.mxu0 0.0
    %2924 = vmatprep.mubr.f32.mxu0 0.0
    %2925 = vmatmul.mubr.f32.gmra.mrb[0].mxu0 %v2858
    %v2926 = vpop.f32.mrb[0].mxu0
    %v2927 = vadd.f32 0.0, %v2926
    %v2928 = vpop.f32.mrb[0].mxu0
    %2929 = vdwg.mxu0
    %v2930 = vadd.f32 %v2857, %v2927
    %v2931 = vxor.u32 %v2930, 2147483648
    %v2932 = vmul.f32 %v2931, 1.442695
    %v2933 = vpow.pop %v2932
    %v2934 = vadd.f32 %v2933, 1.0
    %v2935 = vrcp.pop %v2934
    %v2936 = vmul.f32 1.0, %v2935
    %v2937 = vtanh.pop %v2930
    %v2938 = vmul.f32 %v2936, %v2840
    %2940 = vrot.lane.b32.xlu0 %v2937, 64
    %v2941 = vpop.permute.xlu0 %2940
    %v2943 = vmul.f32 %v2936, %v2941
    %2945 = vrot.lane.b32.xlu0 %v2943, 32
    %v2946 = vpop.permute.xlu0 %2945
    %v2948 = vadd.f32 %v2938, %v2946
    %v2949 = vtanh.pop %v2948
    %2951 = vrot.lane.b32.xlu0 %v2949, 64
    %v2952 = vpop.permute.xlu0 %2951
    %v2954 = vmul.f32 %v2936, %v2952
    %2956 = vrot.lane.b32.xlu0 %v2954, 32
    %v2957 = vpop.permute.xlu0 %2956
    %2959 = vst.msk [vmem:[#allocation2 + $0x7] sm:$0x1] %vm1226, %v2957
    %2960 = vst.msk [vmem:[#allocation2 + $0xe] sm:$0x2] %vm1228, %v2957
    %s2961 = scalar_lea.vmem [#allocation6], 2
    %2962 = vst.msk [vmem:[%s2961] sm:$0x3] %vm1985, %v2957
    %2964 = vrot.lane.b32.xlu0 %v2948, 96
    %v2965 = vpop.permute.xlu0 %2964
    %s2967 = scalar_lea.vmem [#allocation8], 2
    %2968 = vst.msk [vmem:[%s2967] sm:$0x3] %vm1985, %v2965
    %v2969 = vld [vmem:[#allocation2] sm:$0xff]
    %v2970 = vld [vmem:[#allocation2 + $0x8] sm:$0xff]
    %v2971 = vld [vmem:[%s17] sm:$0xff]
    %v2972 = vld [vmem:[%s17 + $0x8] sm:$0xff]
    %v2973 = vld [vmem:[%s17 + $0x10] sm:$0xff]
    %v2974 = vld [vmem:[%s17 + $0x18] sm:$0xff]
    %v2975 = vld [vmem:[%s18] sm:$0x1]
    %v2977 = vlaneseq
    %v2978 = vshrl.u32 %v2977, 7
    %v2979 = vsub.s32 0, %v2978
    %v2980 = vrot.slane %v2975, %v2979
    %v2983 = vsel %vm867, %v2969, 0
    %v2986 = vsel %vm867, %v2970, 0
    %2988 = vmatprep.subr.mxu0 0.0
    %2989 = vmatpush1.msra.mxu0 %v2971
    %2990 = vmatprep.subr.mxu0 0.0
    %2991 = vmatpush1.msra.mxu0 %v2972
    %2992 = vmatprep.subr.mxu0 0.0
    %2993 = vmatpush1.msra.mxu0 %v2973
    %2994 = vmatprep.subr.mxu0 0.0
    %2995 = vmatpush1.msra.mxu0 %v2974
    %2996 = vmatprep.subr.mxu0 0.0
    %2997 = vmatpush1.msra.mxu0 0.0
    %2998 = vmatprep.subr.mxu0 0.0
    %2999 = vmatpush1.msra.mxu0 0.0
    %3000 = vmatprep.subr.mxu0 0.0
    %3001 = vmatpush1.msra.mxu0 0.0
    %3002 = vmatprep.subr.mxu0 0.0
    %3003 = vmatpush1.msra.mxu0 0.0
    %3004 = vmatprep.subr.mxu0 0.0
    %3005 = vmatpush1.msra.mxu0 0.0
    %3006 = vmatprep.subr.mxu0 0.0
    %3007 = vmatpush1.msra.mxu0 0.0
    %3008 = vmatprep.subr.mxu0 0.0
    %3009 = vmatpush1.msra.mxu0 0.0
    %3010 = vmatprep.subr.mxu0 0.0
    %3011 = vmatpush1.msra.mxu0 0.0
    %3012 = vmatprep.subr.mxu0 0.0
    %3013 = vmatpush1.msra.mxu0 0.0
    %3014 = vmatprep.subr.mxu0 0.0
    %3015 = vmatpush1.msra.mxu0 0.0
    %3016 = vmatprep.subr.mxu0 0.0
    %3017 = vmatpush1.msra.mxu0 0.0
    %3018 = vmatprep.subr.mxu0 0.0
    %3019 = vmatpush1.msra.mxu0 0.0
    %3020 = vmatprep.subr.mxu0 0.0
    %3021 = vmatpush1.msra.mxu0 0.0
    %3022 = vmatprep.subr.mxu0 0.0
    %3023 = vmatpush1.msra.mxu0 0.0
    %3024 = vmatprep.subr.mxu0 0.0
    %3025 = vmatpush1.msra.mxu0 0.0
    %3026 = vmatprep.subr.mxu0 0.0
    %3027 = vmatpush1.msra.mxu0 0.0
    %3028 = vmatprep.subr.mxu0 0.0
    %3029 = vmatpush1.msra.mxu0 0.0
    %3030 = vmatprep.subr.mxu0 0.0
    %3031 = vmatpush1.msra.mxu0 0.0
    %3032 = vmatprep.subr.mxu0 0.0
    %3033 = vmatpush1.msra.mxu0 0.0
    %3034 = vmatprep.subr.mxu0 0.0
    %3035 = vmatpush1.msra.mxu0 0.0
    %3036 = vmatprep.subr.mxu0 0.0
    %3037 = vmatpush1.msra.mxu0 0.0
    %3038 = vmatprep.subr.mxu0 0.0
    %3039 = vmatpush1.msra.mxu0 0.0
    %3040 = vmatprep.subr.mxu0 0.0
    %3041 = vmatpush1.msra.mxu0 0.0
    %3042 = vmatprep.subr.mxu0 0.0
    %3043 = vmatpush1.msra.mxu0 0.0
    %3044 = vmatprep.subr.mxu0 0.0
    %3045 = vmatpush1.msra.mxu0 0.0
    %3046 = vmatprep.subr.mxu0 0.0
    %3047 = vmatpush1.msra.mxu0 0.0
    %3048 = vmatprep.subr.mxu0 0.0
    %3049 = vmatpush1.msra.mxu0 0.0
    %3050 = vmatprep.subr.mxu0 0.0
    %3051 = vmatpush1.msra.mxu0 0.0
    %3052 = vmatprep.mubr.f32.mxu0 0.0
    %3053 = vmatmul.mubr.f32.gmra.mrb[0].mxu0 %v2983
    %v3054 = vpop.f32.mrb[0].mxu0
    %v3055 = vadd.f32 %v2980, %v3054
    %v3056 = vpop.f32.mrb[0].mxu0
    %3057 = vmatprep.mubr.f32.mxu0 0.0
    %3058 = vmatmul.mubr.f32.gmra.mrb[0].mxu0 %v2986
    %v3059 = vpop.f32.mrb[0].mxu0
    %v3060 = vadd.f32 %v2980, %v3059
    %v3061 = vpop.f32.mrb[0].mxu0
    %3062 = vdwg.mxu0
    %vm3063 = vcmask 195584
    %3064 = vst.msk [vmem:[#allocation4] sm:$0xff] %vm3063, %v3055
    %3065 = vst.msk [vmem:[#allocation4 + $0x8] sm:$0xff] %vm3063, %v3060
    // Predicated region
    $region78: #{char_cnn_lstm_forward.1} parent=1 // pred_check
      _
    $region79: #{char_cnn_lstm_forward.1} parent=1 // pred_check_branch
      %3067 = sbr.rel (0) target = $region81
    $region80: #{char_cnn_lstm_forward.1} parent=1 // pred_region
      %s3069 = ssub.s32 256, 256
      %3070 = vsyncadd [#allocation5], %s3069
      %s3071 = sshll.u32 [#allocation4], 4
      %s3072 = int_to_ptr.vmem [resolvable:$true] %s3071
      %3077 = dma.vmem_to_hbm [thread:$0]  %s3072, 256, %s19, [#allocation5], 128, 128, 8
    $region81: #{char_cnn_lstm_forward.1} parent=1 // pred_fallthru
      _
    // Predicated region
    $region82: #{char_cnn_lstm_forward.1} parent=1 // pred_check
      _
    $region83: #{char_cnn_lstm_forward.1} parent=1 // pred_check_branch
      %3079 = sbr.rel (0) target = $region85
    $region84: #{char_cnn_lstm_forward.1} parent=1 // pred_region
      %s3081 = ssub.s32 64, 64
      %3082 = vsyncadd [#allocation7], %s3081
      %s3083 = sshll.u32 [#allocation6], 4
      %s3084 = int_to_ptr.vmem [resolvable:$true] %s3083
      %3089 = dma.vmem_to_hbm [thread:$0]  %s3084, 64, %s20, [#allocation7], 32, 32, 2
    $region85: #{char_cnn_lstm_forward.1} parent=1 // pred_fallthru
      _
    // Predicated region
    $region86: #{char_cnn_lstm_forward.1} parent=1 // pred_check
      _
    $region87: #{char_cnn_lstm_forward.1} parent=1 // pred_check_branch
      %3091 = sbr.rel (0) target = $region89
    $region88: #{char_cnn_lstm_forward.1} parent=1 // pred_region
      %s3093 = ssub.s32 64, 64
      %3094 = vsyncadd [#allocation7], %s3093
      %s3095 = sshll.u32 [#allocation8], 4
      %s3096 = int_to_ptr.vmem [resolvable:$true] %s3095
      %3101 = dma.vmem_to_hbm [thread:$0]  %s3096, 64, %s21, [#allocation7], 32, 32, 2
    $region89: #{char_cnn_lstm_forward.1} parent=1 // pred_fallthru
      _
    // Predicated region
    $region90: #{char_cnn_lstm_forward.1} parent=1 // pred_check
      _
    $region91: #{char_cnn_lstm_forward.1} parent=1 // pred_check_branch
      %3103 = sbr.rel (0) target = $region93
    $region92: #{char_cnn_lstm_forward.1} parent=1 // pred_region
      %3104 = dma.done [#allocation5], 256
    $region93: #{char_cnn_lstm_forward.1} parent=1 // pred_fallthru
      _
    // Predicated region
    $region94: #{char_cnn_lstm_forward.1} parent=1 // pred_check
      _
    $region95: #{char_cnn_lstm_forward.1} parent=1 // pred_check_branch
      %3106 = sbr.rel (0) target = $region97
    $region96: #{char_cnn_lstm_forward.1} parent=1 // pred_region
      %3107 = dma.done [#allocation7], 64
    $region97: #{char_cnn_lstm_forward.1} parent=1 // pred_fallthru
      _
    // Predicated region
    $region98: #{char_cnn_lstm_forward.1} parent=1 // pred_check
      _
    $region99: #{char_cnn_lstm_forward.1} parent=1 // pred_check_branch
      %3109 = sbr.rel (0) target = $region101
    $region100: #{char_cnn_lstm_forward.1} parent=1 // pred_region
      %3110 = dma.done [#allocation7], 64
    $region101: #{char_cnn_lstm_forward.1} parent=1 // pred_fallthru
      _
    %3111 = vsyncpa [#allocation5], 1
    %3112 = vsyncpa [#allocation7], 1

</llo_original>
